<compile_context>
chip_gen: v6e
topology: v6e:2x2x1
jax: 0.10.0
libtpu: 0.0.40
codegen_flags: <defaults>
</compile_context>

<pallas_src>
import functools

import jax
import jax.numpy as jnp
from jax import lax
from jax.experimental import pallas as pl
from jax.experimental.pallas import tpu as pltpu


def _round_up(x, m):
    return ((x + m - 1) // m) * m


# -----------------------------------------------------------------------------
# Fused kernel: time-chunked LSTM recurrence + length-masked max-pool + head
# grid = (S_pad // Tt,)  — sequential recurrence -> "arbitrary"
# -----------------------------------------------------------------------------
def rte_fused_kernel(x_ref, lens_ref, wih_ref, whh_ref, bl_ref,
                     wm_ref, bm_ref, wp_ref, bp_ref,
                     logits_ref, probs_ref, pred_ref,
                     h_sc, c_sc, mx_sc, xw_sc, *, seq_len, time_chunk):
    t = pl.program_id(0)
    Tt = time_chunk
    BB, Hp = h_sc.shape
    H3 = 3 * Hp
    bf = jnp.bfloat16

    @pl.when(t == 0)
    def _init():
        h_sc[...] = jnp.zeros_like(h_sc)
        c_sc[...] = jnp.zeros_like(c_sc)
        mx_sc[...] = jnp.full_like(mx_sc, -jnp.inf)

    # Hoisted input projection: one (Tt*BB, E) @ (E, 4Hp) matmul per chunk,
    # LSTM bias folded in.  Off the serial recurrence chain.
    xw_sc[...] = (jnp.dot(x_ref[...], wih_ref[...],
                          preferred_element_type=jnp.float32)
                  + bl_ref[...])                      # (Tt*BB, 4Hp) f32

    lens_col = lens_ref[...]                          # (BB, 1) int32
    whh = whh_ref[...]                                # (Hp, 4Hp) bf16

    def step(s, carry):
        h, c, mx = carry                              # register-carried state
        t_glob = t * Tt + s
        start = pl.multiple_of(s * BB, BB)
        gates = (jnp.dot(h.astype(bf), whh, preferred_element_type=jnp.float32)
                 + xw_sc[pl.ds(start, BB), :])        # (BB, 4Hp) f32
        # gate columns pre-reordered offline to [i | f | o | g] -> lane-aligned
        # sigmoid via single-EUP-pass tanh form
        sig = 0.5 * (jnp.tanh(0.5 * gates[:, :H3]) + 1.0)
        g_g = jnp.tanh(gates[:, H3:])
        i_g = sig[:, 0:Hp]
        f_g = sig[:, Hp:2 * Hp]
        o_g = sig[:, 2 * Hp:H3]
        c_new = f_g * c + i_g * g_g
        h_new = o_g * jnp.tanh(c_new)
        # valid step -> h ; masked-but-real step -> 0 (matches h*mask then max)
        # time-padding step (>= true seq_len) -> -inf (contributes nothing)
        fill = jnp.where(t_glob < seq_len, 0.0, -jnp.inf)
        contrib = jnp.where(t_glob < lens_col, h_new, fill)
        return (h_new, c_new, jnp.maximum(mx, contrib))

    h, c, mx = lax.fori_loop(
        0, Tt, step, (h_sc[...], c_sc[...], mx_sc[...]), unroll=True)
    h_sc[...] = h
    c_sc[...] = c
    mx_sc[...] = mx

    @pl.when(t == pl.num_programs(0) - 1)
    def _head():
        Bp = logits_ref.shape[0]
        p = mx[0:Bp]
        hh = mx[Bp:2 * Bp]
        # lane-concatenate (all blocks 128-lane aligned) -> one MXU dot
        feat = jnp.concatenate([p, hh, p - hh, p * hh], axis=1).astype(bf)
        mlp = (jnp.dot(feat, wm_ref[...], preferred_element_type=jnp.float32)
               + bm_ref[...])
        mlp = jnp.maximum(mlp, 0.0)                   # ReLU; dropout = id (eval)
        logits = (jnp.dot(mlp.astype(bf), wp_ref[...],
                          preferred_element_type=jnp.float32)
                  + bp_ref[...])                      # padded classes get -1e9 bias
        logits_ref[...] = logits

        m = jnp.max(logits, axis=1, keepdims=True)
        e = jnp.exp(logits - m)
        probs_ref[...] = e / jnp.sum(e, axis=1, keepdims=True)

        # argmax on logits (softmax is monotone); first index among ties
        Cp = logits.shape[1]
        ids = lax.broadcasted_iota(jnp.int32, logits.shape, 1)
        cand = jnp.where(logits >= m, ids, Cp)
        pred_ref[...] = jnp.min(cand, axis=1, keepdims=True)


def rte_pallas(x_cb, lens, kp, *, seq_len, time_chunk):
    n_chunks, TtBB, E = x_cb.shape
    BB = lens.shape[0]
    Tt = time_chunk
    Hp = kp["whh"].shape[0]
    Cp = kp["wp"].shape[1]
    Bp = BB // 2
    const2 = lambda t: (0, 0)

    return pl.pallas_call(
        functools.partial(rte_fused_kernel, seq_len=seq_len, time_chunk=Tt),
        out_shape=(jax.ShapeDtypeStruct((Bp, Cp), jnp.float32),
                   jax.ShapeDtypeStruct((Bp, Cp), jnp.float32),
                   jax.ShapeDtypeStruct((Bp, 1), jnp.int32)),
        grid_spec=pltpu.PrefetchScalarGridSpec(
            num_scalar_prefetch=0,
            grid=(n_chunks,),
            in_specs=[
                # x chunk: leading chunk axis squeezed; kernel sees (Tt*BB, E)
                pl.BlockSpec((None, TtBB, E), lambda t: (t, 0, 0)),
                pl.BlockSpec((BB, 1), const2),                     # lengths
                pl.BlockSpec((E, 4 * Hp), const2),                 # w_ih^T
                pl.BlockSpec((Hp, 4 * Hp), const2),                # w_hh^T
                pl.BlockSpec((1, 4 * Hp), const2),                 # lstm bias
                pl.BlockSpec((4 * Hp, Hp), const2),                # mlp weight
                pl.BlockSpec((1, Hp), const2),                     # mlp bias
                pl.BlockSpec((Hp, Cp), const2),                    # proj weight
                pl.BlockSpec((1, Cp), const2),                     # proj bias
            ],
            out_specs=(pl.BlockSpec((Bp, Cp), const2),
                       pl.BlockSpec((Bp, Cp), const2),
                       pl.BlockSpec((Bp, 1), const2)),
            scratch_shapes=[pltpu.VMEM((BB, Hp), jnp.float32),     # h
                            pltpu.VMEM((BB, Hp), jnp.float32),     # c
                            pltpu.VMEM((BB, Hp), jnp.float32),     # running max
                            pltpu.VMEM((TtBB, 4 * Hp), jnp.float32)],  # hoisted xw
        ),
        compiler_params=pltpu.CompilerParams(
            dimension_semantics=("arbitrary",),
            vmem_limit_bytes=32 * 1024 * 1024),
    )(x_cb, lens, kp["wih"], kp["whh"], kp["bl"],
      kp["wm"], kp["bm"], kp["wp"], kp["bp"])


# -----------------------------------------------------------------------------
# Offline parameter prep: transpose / gate reorder [i|f|g|o]->[i|f|o|g] /
# pad H,C to lane multiples (E left unpadded) / cast MXU operands to bf16.
# -----------------------------------------------------------------------------
def prepare_kernel_params(params):
    w_ih_t = params["w_ih_t"]      # (E, 4H)  columns [i|f|g|o]
    w_hh_t = params["w_hh_t"]      # (H, 4H)
    b_lstm = params["b_lstm"]      # (1, 4H)
    w_mlp_t = params["w_mlp_t"]    # (4H, H)  rows [p|h|p-h|p*h]
    b_mlp = params["b_mlp"]        # (1, H)
    w_proj_t = params["w_proj_t"]  # (H, C)
    b_proj = params["b_proj"]      # (1, C)

    H = w_hh_t.shape[0]
    C = w_proj_t.shape[1]
    Hp = _round_up(H, 128)
    Cp = _round_up(C, 128)

    def reorder_pad_gate_cols(w):
        i, f, g, o = jnp.split(w, 4, axis=1)
        blocks = [jnp.pad(b, ((0, 0), (0, Hp - H))) for b in (i, f, o, g)]
        return jnp.concatenate(blocks, axis=1)

    wih = reorder_pad_gate_cols(w_ih_t)                          # (E, 4Hp)
    whh = jnp.pad(reorder_pad_gate_cols(w_hh_t), ((0, Hp - H), (0, 0)))
    bl = reorder_pad_gate_cols(b_lstm)

    w1, w2, w3, w4 = jnp.split(w_mlp_t, 4, axis=0)
    wm = jnp.concatenate(
        [jnp.pad(w, ((0, Hp - H), (0, Hp - H))) for w in (w1, w2, w3, w4)],
        axis=0)                                                  # (4Hp, Hp)
    bm = jnp.pad(b_mlp, ((0, 0), (0, Hp - H)))

    wp = jnp.pad(w_proj_t, ((0, Hp - H), (0, Cp - C)))
    bp = jnp.pad(b_proj, ((0, 0), (0, Cp - C)), constant_values=-1e9)

    return {
        "emb": params["emb"].astype(jnp.float32),
        "wih": wih.astype(jnp.bfloat16),
        "whh": whh.astype(jnp.bfloat16),
        "bl": bl.astype(jnp.float32),
        "wm": wm.astype(jnp.bfloat16),
        "bm": bm.astype(jnp.float32),
        "wp": wp.astype(jnp.bfloat16),
        "bp": bp.astype(jnp.float32),
    }


# -----------------------------------------------------------------------------
# Full forward (glue: embedding gather in time-major order, padding, batching
# premise+hypothesis).  Premise and hypothesis share the same step_size S.
# -----------------------------------------------------------------------------
def rte_forward(premise, premise_len, hypothesis, hypothesis_len, kp,
                *, num_classes, time_chunk=32):
    B, S = premise.shape
    emb = kp["emb"]
    E = emb.shape[1]
    Bp = _round_up(B, 8)
    BB = 2 * Bp
    Tt = min(time_chunk, S)
    S_pad = _round_up(S, Tt)

    # one encoder call: premise rows [0:Bp), hypothesis rows [Bp:2Bp)
    tokens = jnp.concatenate([
        jnp.pad(premise, ((0, Bp - B), (0, 0))),
        jnp.pad(hypothesis, ((0, Bp - B), (0, 0)))], axis=0)      # (BB, S)
    # gather directly time-major; keep true E (no lane padding of the stream)
    x_sbe = emb[tokens.T].astype(jnp.bfloat16)                    # (S, BB, E)
    x_sbe = jnp.pad(x_sbe, ((0, S_pad - S), (0, 0), (0, 0)))
    x_cb = x_sbe.reshape(S_pad // Tt, Tt * BB, E)                 # chunk-major

    lens = jnp.concatenate([
        jnp.pad(premise_len, (0, Bp - B)),
        jnp.pad(hypothesis_len, (0, Bp - B))]).astype(jnp.int32)[:, None]  # (BB,1)

    logits_p, probs_p, pred_p = rte_pallas(
        x_cb, lens, kp, seq_len=S, time_chunk=Tt)

    C = num_classes
    return logits_p[:B, :C], probs_p[:B, :C], pred_p[:B, 0]


# -----------------------------------------------------------------------------
# Pure-JAX reference (for a sanity check)
# -----------------------------------------------------------------------------
def ref_forward(premise, premise_len, hypothesis, hypothesis_len, params):
    H = params["w_hh_t"].shape[0]
    hi = lax.Precision.HIGHEST

    def encode(tokens, lens):
        B, S = tokens.shape
        x = params["emb"][tokens].astype(jnp.float32)

        def step(carry, x_t):
            h, c = carry
            gates = (jnp.dot(x_t, params["w_ih_t"], precision=hi)
                     + jnp.dot(h, params["w_hh_t"], precision=hi)
                     + params["b_lstm"][0])
            i_g = jax.nn.sigmoid(gates[:, 0:H])
            f_g = jax.nn.sigmoid(gates[:, H:2 * H])
            g_g = jnp.tanh(gates[:, 2 * H:3 * H])
            o_g = jax.nn.sigmoid(gates[:, 3 * H:4 * H])
            c = f_g * c + i_g * g_g
            h = o_g * jnp.tanh(c)
            return (h, c), h

        h0 = jnp.zeros((B, H), jnp.float32)
        _, outs = lax.scan(step, (h0, h0), jnp.transpose(x, (1, 0, 2)))
        outs = jnp.transpose(outs, (1, 0, 2))                     # (B, S, H)
        mask = (jnp.arange(S)[None, :] < lens[:, None]).astype(jnp.float32)
        outs = outs * mask[:, :, None]
        return jnp.max(outs, axis=1)

    p_rep = encode(premise, premise_len)
    h_rep = encode(hypothesis, hypothesis_len)
    feat = jnp.concatenate([p_rep, h_rep, p_rep - h_rep, p_rep * h_rep], axis=1)
    mlp = jnp.maximum(jnp.dot(feat, params["w_mlp_t"], precision=hi)
                      + params["b_mlp"][0], 0.0)
    logits = jnp.dot(mlp, params["w_proj_t"], precision=hi) + params["b_proj"][0]
    probs = jax.nn.softmax(logits, axis=1)
    return logits, probs, jnp.argmax(probs, axis=1)


if __name__ == "__main__":
    # small, module-consistent sizes
    B, S, E, H, V, C = 2, 8, 16, 32, 50, 2

    key = jax.random.PRNGKey(0)
    ks = jax.random.split(key, 12)
    u = lambda k, shape, s=0.1: jax.random.uniform(k, shape, jnp.float32, -s, s)

    params = {
        "emb":      jax.random.normal(ks[0], (V, E), jnp.float32) * 0.1,
        "w_ih_t":   u(ks[1], (E, 4 * H)),                 # (weight_ih_l0).T, [i|f|g|o]
        "w_hh_t":   u(ks[2], (H, 4 * H)),                 # (weight_hh_l0).T
        "b_lstm":   u(ks[3], (1, 4 * H)),                 # b_ih + b_hh combined
        "w_mlp_t":  u(ks[4], (4 * H, H)),                 # Linear(4H -> H).weight.T
        "b_mlp":    u(ks[5], (1, H)),
        "w_proj_t": u(ks[6], (H, C)),                     # Linear(H -> C).weight.T
        "b_proj":   u(ks[7], (1, C)),
    }

    premise = jax.random.randint(ks[8], (B, S), 0, V, jnp.int32)
    hypothesis = jax.random.randint(ks[9], (B, S), 0, V, jnp.int32)
    premise_len = jnp.array([S, 5], jnp.int32)
    hypothesis_len = jnp.array([6, S], jnp.int32)

    kp = prepare_kernel_params(params)

    run = jax.jit(functools.partial(rte_forward, num_classes=C))
    logits, probs, pred = run(premise, premise_len, hypothesis, hypothesis_len, kp)
    jax.block_until_ready((logits, probs, pred))

    ref_logits, ref_probs, ref_pred = ref_forward(
        premise, premise_len, hypothesis, hypothesis_len, params)

    assert logits.shape == (B, C) and probs.shape == (B, C) and pred.shape == (B,)
    assert jnp.allclose(logits, ref_logits, rtol=2e-2, atol=2e-2), "logits mismatch"
    assert jnp.allclose(probs, ref_probs, rtol=2e-2, atol=2e-2), "probs mismatch"
    assert bool(jnp.all(pred == jnp.argmax(logits, axis=1))), "pred inconsistent"

    print("KERNEL_OK")
</pallas_src>

<mosaic_0001>
module attributes {stable_mosaic.version = 11 : i64} {
  func.func @rte_fused_kernel(%arg0: i32, %arg1: memref<1x128x16xbf16, #tpu.memory_space<vmem>>, %arg2: memref<16x1xi32, #tpu.memory_space<vmem>>, %arg3: memref<16x512xbf16, #tpu.memory_space<vmem>>, %arg4: memref<128x512xbf16, #tpu.memory_space<vmem>>, %arg5: memref<1x512xf32, #tpu.memory_space<vmem>>, %arg6: memref<512x128xbf16, #tpu.memory_space<vmem>>, %arg7: memref<1x128xf32, #tpu.memory_space<vmem>>, %arg8: memref<128x128xbf16, #tpu.memory_space<vmem>>, %arg9: memref<1x128xf32, #tpu.memory_space<vmem>>, %arg10: memref<8x128xf32, #tpu.memory_space<vmem>>, %arg11: memref<8x128xf32, #tpu.memory_space<vmem>>, %arg12: memref<8x1xi32, #tpu.memory_space<vmem>>, %arg13: memref<16x128xf32, #tpu.memory_space<vmem>>, %arg14: memref<16x128xf32, #tpu.memory_space<vmem>>, %arg15: memref<16x128xf32, #tpu.memory_space<vmem>>, %arg16: memref<128x512xf32, #tpu.memory_space<vmem>>) attributes {dimension_semantics = [#tpu.dimension_semantics<arbitrary>], iteration_bounds = array<i64: 1>, scalar_prefetch = 0 : i64, scratch_operands = 4 : i64, tpu.core_type = #tpu.core_type<tc>, window_params = [{transform_indices = @transform_0, window_bounds = array<i64: 1, 128, 16>}, {pipeline_mode = #tpu.pipeline_mode<synchronous>, transform_indices = @transform_1, window_bounds = array<i64: 16, 1>}, {pipeline_mode = #tpu.pipeline_mode<synchronous>, transform_indices = @transform_2, window_bounds = array<i64: 16, 512>}, {pipeline_mode = #tpu.pipeline_mode<synchronous>, transform_indices = @transform_3, window_bounds = array<i64: 128, 512>}, {pipeline_mode = #tpu.pipeline_mode<synchronous>, transform_indices = @transform_4, window_bounds = array<i64: 1, 512>}, {pipeline_mode = #tpu.pipeline_mode<synchronous>, transform_indices = @transform_5, window_bounds = array<i64: 512, 128>}, {pipeline_mode = #tpu.pipeline_mode<synchronous>, transform_indices = @transform_6, window_bounds = array<i64: 1, 128>}, {pipeline_mode = #tpu.pipeline_mode<synchronous>, transform_indices = @transform_7, window_bounds = array<i64: 128, 128>}, {pipeline_mode = #tpu.pipeline_mode<synchronous>, transform_indices = @transform_8, window_bounds = array<i64: 1, 128>}, {pipeline_mode = #tpu.pipeline_mode<synchronous>, transform_indices = @transform_9, window_bounds = array<i64: 8, 128>}, {pipeline_mode = #tpu.pipeline_mode<synchronous>, transform_indices = @transform_10, window_bounds = array<i64: 8, 128>}, {pipeline_mode = #tpu.pipeline_mode<synchronous>, transform_indices = @transform_11, window_bounds = array<i64: 8, 1>}]} {
    %c0_i32 = arith.constant 0 : i32
    %0 = arith.cmpi eq, %arg0, %c0_i32 : i32
    %1 = arith.extui %0 : i1 to i32
    %c0_i32_0 = arith.constant 0 : i32
    %2 = arith.cmpi ne, %1, %c0_i32_0 : i32
    scf.if %2 {
      %cst_107 = arith.constant 0.000000e+00 : f32
      %310 = vector.broadcast %cst_107 : f32 to vector<16x128xf32>
      %c0_108 = arith.constant 0 : index
      %c0_109 = arith.constant 0 : index
      %311 = vector.load %arg13[%c0_108, %c0_109] : memref<16x128xf32, #tpu.memory_space<vmem>>, vector<16x128xf32>
      tpu.vector_store %arg13[%c0_108, %c0_109], %310 {strides = array<i32>} : memref<16x128xf32, #tpu.memory_space<vmem>>, vector<16x128xf32>,
      %cst_110 = arith.constant 0.000000e+00 : f32
      %312 = vector.broadcast %cst_110 : f32 to vector<16x128xf32>
      %c0_111 = arith.constant 0 : index
      %c0_112 = arith.constant 0 : index
      %313 = vector.load %arg14[%c0_111, %c0_112] : memref<16x128xf32, #tpu.memory_space<vmem>>, vector<16x128xf32>
      tpu.vector_store %arg14[%c0_111, %c0_112], %312 {strides = array<i32>} : memref<16x128xf32, #tpu.memory_space<vmem>>, vector<16x128xf32>,
      %cst_113 = arith.constant 0xFF800000 : f32
      %314 = vector.broadcast %cst_113 : f32 to vector<16x128xf32>
      %c0_114 = arith.constant 0 : index
      %c0_115 = arith.constant 0 : index
      %315 = vector.load %arg15[%c0_114, %c0_115] : memref<16x128xf32, #tpu.memory_space<vmem>>, vector<16x128xf32>
      tpu.vector_store %arg15[%c0_114, %c0_115], %314 {strides = array<i32>} : memref<16x128xf32, #tpu.memory_space<vmem>>, vector<16x128xf32>,
    } else {
    }
    %c0 = arith.constant 0 : index
    %c0_1 = arith.constant 0 : index
    %c0_2 = arith.constant 0 : index
    %3 = vector.load %arg1[%c0, %c0_1, %c0_2] : memref<1x128x16xbf16, #tpu.memory_space<vmem>>, vector<1x128x16xbf16>
    %4 = vector.shape_cast %3 : vector<1x128x16xbf16> to vector<128x16xbf16>
    %c0_3 = arith.constant 0 : index
    %c0_4 = arith.constant 0 : index
    %5 = vector.load %arg3[%c0_3, %c0_4] : memref<16x512xbf16, #tpu.memory_space<vmem>>, vector<16x512xbf16>
    %cst = arith.constant dense<0.000000e+00> : vector<128x512xf32>
    %6 = tpu.matmul %4, %5, %cst {dimension_numbers = #tpu.dot_dimension_numbers<[1], [0], [0], [1], [0, 0, 1, 1], [], []>} : vector<128x16xbf16>, vector<16x512xbf16>, vector<128x512xf32> -> vector<128x512xf32>
    %c0_5 = arith.constant 0 : index
    %c0_6 = arith.constant 0 : index
    %7 = vector.load %arg5[%c0_5, %c0_6] : memref<1x512xf32, #tpu.memory_space<vmem>>, vector<1x512xf32>
    %8 = vector.broadcast %7 : vector<1x512xf32> to vector<128x512xf32>
    %9 = arith.addf %6, %8 : vector<128x512xf32>
    %c0_7 = arith.constant 0 : index
    %c0_8 = arith.constant 0 : index
    %10 = vector.load %arg16[%c0_7, %c0_8] : memref<128x512xf32, #tpu.memory_space<vmem>>, vector<128x512xf32>
    tpu.vector_store %arg16[%c0_7, %c0_8], %9 {strides = array<i32>} : memref<128x512xf32, #tpu.memory_space<vmem>>, vector<128x512xf32>,
    %c0_9 = arith.constant 0 : index
    %c0_10 = arith.constant 0 : index
    %11 = vector.load %arg2[%c0_9, %c0_10] : memref<16x1xi32, #tpu.memory_space<vmem>>, vector<16x1xi32>
    %c0_11 = arith.constant 0 : index
    %c0_12 = arith.constant 0 : index
    %12 = vector.load %arg4[%c0_11, %c0_12] : memref<128x512xbf16, #tpu.memory_space<vmem>>, vector<128x512xbf16>
    %c0_13 = arith.constant 0 : index
    %c0_14 = arith.constant 0 : index
    %13 = vector.load %arg13[%c0_13, %c0_14] : memref<16x128xf32, #tpu.memory_space<vmem>>, vector<16x128xf32>
    %c0_15 = arith.constant 0 : index
    %c0_16 = arith.constant 0 : index
    %14 = vector.load %arg14[%c0_15, %c0_16] : memref<16x128xf32, #tpu.memory_space<vmem>>, vector<16x128xf32>
    %c0_17 = arith.constant 0 : index
    %c0_18 = arith.constant 0 : index
    %15 = vector.load %arg15[%c0_17, %c0_18] : memref<16x128xf32, #tpu.memory_space<vmem>>, vector<16x128xf32>
    %c0_i32_19 = arith.constant 0 : i32
    %c8_i32 = arith.constant 8 : i32
    %16 = arith.muli %arg0, %c8_i32 : i32
    %17 = arith.addi %16, %c0_i32_19 : i32
    %c16_i32 = arith.constant 16 : i32
    %18 = arith.muli %c0_i32_19, %c16_i32 : i32
    %19 = tpu.assume_multiple %18, 16 : i32
    %20 = arith.truncf %13 : vector<16x128xf32> to vector<16x128xbf16>
    %cst_20 = arith.constant dense<0.000000e+00> : vector<16x512xf32>
    %21 = tpu.matmul %20, %12, %cst_20 {dimension_numbers = #tpu.dot_dimension_numbers<[1], [0], [0], [1], [0, 0, 1, 1], [], []>} : vector<16x128xbf16>, vector<128x512xbf16>, vector<16x512xf32> -> vector<16x512xf32>
    %22 = arith.index_cast %19 : i32 to index
    %c0_21 = arith.constant 0 : index
    %23 = vector.load %arg16[%22, %c0_21] : memref<128x512xf32, #tpu.memory_space<vmem>>, vector<16x512xf32>
    %24 = arith.addf %21, %23 : vector<16x512xf32>
    %25 = vector.extract_strided_slice %24 {offsets = [0, 0], sizes = [16, 384], strides = [1, 1]} : vector<16x512xf32> to vector<16x384xf32>
    %cst_22 = arith.constant 5.000000e-01 : f32
    %26 = vector.broadcast %cst_22 : f32 to vector<16x384xf32>
    %27 = arith.mulf %26, %25 : vector<16x384xf32>
    %28 = math.tanh %27 : vector<16x384xf32>
    %cst_23 = arith.constant 1.000000e+00 : f32
    %29 = vector.broadcast %cst_23 : f32 to vector<16x384xf32>
    %30 = arith.addf %28, %29 : vector<16x384xf32>
    %cst_24 = arith.constant 5.000000e-01 : f32
    %31 = vector.broadcast %cst_24 : f32 to vector<16x384xf32>
    %32 = arith.mulf %31, %30 : vector<16x384xf32>
    %33 = vector.extract_strided_slice %24 {offsets = [0, 384], sizes = [16, 128], strides = [1, 1]} : vector<16x512xf32> to vector<16x128xf32>
    %34 = math.tanh %33 : vector<16x128xf32>
    %35 = vector.extract_strided_slice %32 {offsets = [0, 0], sizes = [16, 128], strides = [1, 1]} : vector<16x384xf32> to vector<16x128xf32>
    %36 = vector.extract_strided_slice %32 {offsets = [0, 128], sizes = [16, 128], strides = [1, 1]} : vector<16x384xf32> to vector<16x128xf32>
    %37 = vector.extract_strided_slice %32 {offsets = [0, 256], sizes = [16, 128], strides = [1, 1]} : vector<16x384xf32> to vector<16x128xf32>
    %38 = arith.mulf %36, %14 : vector<16x128xf32>
    %39 = arith.mulf %35, %34 : vector<16x128xf32>
    %40 = arith.addf %38, %39 : vector<16x128xf32>
    %41 = math.tanh %40 : vector<16x128xf32>
    %42 = arith.mulf %37, %41 : vector<16x128xf32>
    %c8_i32_25 = arith.constant 8 : i32
    %43 = arith.cmpi slt, %17, %c8_i32_25 : i32
    %cst_26 = arith.constant 0.000000e+00 : f32
    %cst_27 = arith.constant 0xFF800000 : f32
    %44 = arith.select %43, %cst_26, %cst_27 : f32
    %45 = vector.broadcast %17 : i32 to vector<16x1xi32>
    %46 = arith.cmpi slt, %45, %11 : vector<16x1xi32>
    %47 = vector.shape_cast %46 : vector<16x1xi1> to vector<16x1xi1>
    %48 = vector.broadcast %47 : vector<16x1xi1> to vector<16x128xi1>
    %49 = vector.broadcast %44 : f32 to vector<16x128xf32>
    %50 = arith.select %48, %42, %49 : vector<16x128xi1>, vector<16x128xf32>
    %51 = arith.maximumf %15, %50 : vector<16x128xf32>
    %c1_i32 = arith.constant 1 : i32
    %c8_i32_28 = arith.constant 8 : i32
    %52 = arith.muli %arg0, %c8_i32_28 : i32
    %53 = arith.addi %52, %c1_i32 : i32
    %c16_i32_29 = arith.constant 16 : i32
    %54 = arith.muli %c1_i32, %c16_i32_29 : i32
    %55 = tpu.assume_multiple %54, 16 : i32
    %56 = arith.truncf %42 : vector<16x128xf32> to vector<16x128xbf16>
    %cst_30 = arith.constant dense<0.000000e+00> : vector<16x512xf32>
    %57 = tpu.matmul %56, %12, %cst_30 {dimension_numbers = #tpu.dot_dimension_numbers<[1], [0], [0], [1], [0, 0, 1, 1], [], []>} : vector<16x128xbf16>, vector<128x512xbf16>, vector<16x512xf32> -> vector<16x512xf32>
    %58 = arith.index_cast %55 : i32 to index
    %c0_31 = arith.constant 0 : index
    %59 = vector.load %arg16[%58, %c0_31] : memref<128x512xf32, #tpu.memory_space<vmem>>, vector<16x512xf32>
    %60 = arith.addf %57, %59 : vector<16x512xf32>
    %61 = vector.extract_strided_slice %60 {offsets = [0, 0], sizes = [16, 384], strides = [1, 1]} : vector<16x512xf32> to vector<16x384xf32>
    %cst_32 = arith.constant 5.000000e-01 : f32
    %62 = vector.broadcast %cst_32 : f32 to vector<16x384xf32>
    %63 = arith.mulf %62, %61 : vector<16x384xf32>
    %64 = math.tanh %63 : vector<16x384xf32>
    %cst_33 = arith.constant 1.000000e+00 : f32
    %65 = vector.broadcast %cst_33 : f32 to vector<16x384xf32>
    %66 = arith.addf %64, %65 : vector<16x384xf32>
    %cst_34 = arith.constant 5.000000e-01 : f32
    %67 = vector.broadcast %cst_34 : f32 to vector<16x384xf32>
    %68 = arith.mulf %67, %66 : vector<16x384xf32>
    %69 = vector.extract_strided_slice %60 {offsets = [0, 384], sizes = [16, 128], strides = [1, 1]} : vector<16x512xf32> to vector<16x128xf32>
    %70 = math.tanh %69 : vector<16x128xf32>
    %71 = vector.extract_strided_slice %68 {offsets = [0, 0], sizes = [16, 128], strides = [1, 1]} : vector<16x384xf32> to vector<16x128xf32>
    %72 = vector.extract_strided_slice %68 {offsets = [0, 128], sizes = [16, 128], strides = [1, 1]} : vector<16x384xf32> to vector<16x128xf32>
    %73 = vector.extract_strided_slice %68 {offsets = [0, 256], sizes = [16, 128], strides = [1, 1]} : vector<16x384xf32> to vector<16x128xf32>
    %74 = arith.mulf %72, %40 : vector<16x128xf32>
    %75 = arith.mulf %71, %70 : vector<16x128xf32>
    %76 = arith.addf %74, %75 : vector<16x128xf32>
    %77 = math.tanh %76 : vector<16x128xf32>
    %78 = arith.mulf %73, %77 : vector<16x128xf32>
    %c8_i32_35 = arith.constant 8 : i32
    %79 = arith.cmpi slt, %53, %c8_i32_35 : i32
    %cst_36 = arith.constant 0.000000e+00 : f32
    %cst_37 = arith.constant 0xFF800000 : f32
    %80 = arith.select %79, %cst_36, %cst_37 : f32
    %81 = vector.broadcast %53 : i32 to vector<16x1xi32>
    %82 = arith.cmpi slt, %81, %11 : vector<16x1xi32>
    %83 = vector.shape_cast %82 : vector<16x1xi1> to vector<16x1xi1>
    %84 = vector.broadcast %83 : vector<16x1xi1> to vector<16x128xi1>
    %85 = vector.broadcast %80 : f32 to vector<16x128xf32>
    %86 = arith.select %84, %78, %85 : vector<16x128xi1>, vector<16x128xf32>
    %87 = arith.maximumf %51, %86 : vector<16x128xf32>
    %c2_i32 = arith.constant 2 : i32
    %c8_i32_38 = arith.constant 8 : i32
    %88 = arith.muli %arg0, %c8_i32_38 : i32
    %89 = arith.addi %88, %c2_i32 : i32
    %c16_i32_39 = arith.constant 16 : i32
    %90 = arith.muli %c2_i32, %c16_i32_39 : i32
    %91 = tpu.assume_multiple %90, 16 : i32
    %92 = arith.truncf %78 : vector<16x128xf32> to vector<16x128xbf16>
    %cst_40 = arith.constant dense<0.000000e+00> : vector<16x512xf32>
    %93 = tpu.matmul %92, %12, %cst_40 {dimension_numbers = #tpu.dot_dimension_numbers<[1], [0], [0], [1], [0, 0, 1, 1], [], []>} : vector<16x128xbf16>, vector<128x512xbf16>, vector<16x512xf32> -> vector<16x512xf32>
    %94 = arith.index_cast %91 : i32 to index
    %c0_41 = arith.constant 0 : index
    %95 = vector.load %arg16[%94, %c0_41] : memref<128x512xf32, #tpu.memory_space<vmem>>, vector<16x512xf32>
    %96 = arith.addf %93, %95 : vector<16x512xf32>
    %97 = vector.extract_strided_slice %96 {offsets = [0, 0], sizes = [16, 384], strides = [1, 1]} : vector<16x512xf32> to vector<16x384xf32>
    %cst_42 = arith.constant 5.000000e-01 : f32
    %98 = vector.broadcast %cst_42 : f32 to vector<16x384xf32>
    %99 = arith.mulf %98, %97 : vector<16x384xf32>
    %100 = math.tanh %99 : vector<16x384xf32>
    %cst_43 = arith.constant 1.000000e+00 : f32
    %101 = vector.broadcast %cst_43 : f32 to vector<16x384xf32>
    %102 = arith.addf %100, %101 : vector<16x384xf32>
    %cst_44 = arith.constant 5.000000e-01 : f32
    %103 = vector.broadcast %cst_44 : f32 to vector<16x384xf32>
    %104 = arith.mulf %103, %102 : vector<16x384xf32>
    %105 = vector.extract_strided_slice %96 {offsets = [0, 384], sizes = [16, 128], strides = [1, 1]} : vector<16x512xf32> to vector<16x128xf32>
    %106 = math.tanh %105 : vector<16x128xf32>
    %107 = vector.extract_strided_slice %104 {offsets = [0, 0], sizes = [16, 128], strides = [1, 1]} : vector<16x384xf32> to vector<16x128xf32>
    %108 = vector.extract_strided_slice %104 {offsets = [0, 128], sizes = [16, 128], strides = [1, 1]} : vector<16x384xf32> to vector<16x128xf32>
    %109 = vector.extract_strided_slice %104 {offsets = [0, 256], sizes = [16, 128], strides = [1, 1]} : vector<16x384xf32> to vector<16x128xf32>
    %110 = arith.mulf %108, %76 : vector<16x128xf32>
    %111 = arith.mulf %107, %106 : vector<16x128xf32>
    %112 = arith.addf %110, %111 : vector<16x128xf32>
    %113 = math.tanh %112 : vector<16x128xf32>
    %114 = arith.mulf %109, %113 : vector<16x128xf32>
    %c8_i32_45 = arith.constant 8 : i32
    %115 = arith.cmpi slt, %89, %c8_i32_45 : i32
    %cst_46 = arith.constant 0.000000e+00 : f32
    %cst_47 = arith.constant 0xFF800000 : f32
    %116 = arith.select %115, %cst_46, %cst_47 : f32
    %117 = vector.broadcast %89 : i32 to vector<16x1xi32>
    %118 = arith.cmpi slt, %117, %11 : vector<16x1xi32>
    %119 = vector.shape_cast %118 : vector<16x1xi1> to vector<16x1xi1>
    %120 = vector.broadcast %119 : vector<16x1xi1> to vector<16x128xi1>
    %121 = vector.broadcast %116 : f32 to vector<16x128xf32>
    %122 = arith.select %120, %114, %121 : vector<16x128xi1>, vector<16x128xf32>
    %123 = arith.maximumf %87, %122 : vector<16x128xf32>
    %c3_i32 = arith.constant 3 : i32
    %c8_i32_48 = arith.constant 8 : i32
    %124 = arith.muli %arg0, %c8_i32_48 : i32
    %125 = arith.addi %124, %c3_i32 : i32
    %c16_i32_49 = arith.constant 16 : i32
    %126 = arith.muli %c3_i32, %c16_i32_49 : i32
    %127 = tpu.assume_multiple %126, 16 : i32
    %128 = arith.truncf %114 : vector<16x128xf32> to vector<16x128xbf16>
    %cst_50 = arith.constant dense<0.000000e+00> : vector<16x512xf32>
    %129 = tpu.matmul %128, %12, %cst_50 {dimension_numbers = #tpu.dot_dimension_numbers<[1], [0], [0], [1], [0, 0, 1, 1], [], []>} : vector<16x128xbf16>, vector<128x512xbf16>, vector<16x512xf32> -> vector<16x512xf32>
    %130 = arith.index_cast %127 : i32 to index
    %c0_51 = arith.constant 0 : index
    %131 = vector.load %arg16[%130, %c0_51] : memref<128x512xf32, #tpu.memory_space<vmem>>, vector<16x512xf32>
    %132 = arith.addf %129, %131 : vector<16x512xf32>
    %133 = vector.extract_strided_slice %132 {offsets = [0, 0], sizes = [16, 384], strides = [1, 1]} : vector<16x512xf32> to vector<16x384xf32>
    %cst_52 = arith.constant 5.000000e-01 : f32
    %134 = vector.broadcast %cst_52 : f32 to vector<16x384xf32>
    %135 = arith.mulf %134, %133 : vector<16x384xf32>
    %136 = math.tanh %135 : vector<16x384xf32>
    %cst_53 = arith.constant 1.000000e+00 : f32
    %137 = vector.broadcast %cst_53 : f32 to vector<16x384xf32>
    %138 = arith.addf %136, %137 : vector<16x384xf32>
    %cst_54 = arith.constant 5.000000e-01 : f32
    %139 = vector.broadcast %cst_54 : f32 to vector<16x384xf32>
    %140 = arith.mulf %139, %138 : vector<16x384xf32>
    %141 = vector.extract_strided_slice %132 {offsets = [0, 384], sizes = [16, 128], strides = [1, 1]} : vector<16x512xf32> to vector<16x128xf32>
    %142 = math.tanh %141 : vector<16x128xf32>
    %143 = vector.extract_strided_slice %140 {offsets = [0, 0], sizes = [16, 128], strides = [1, 1]} : vector<16x384xf32> to vector<16x128xf32>
    %144 = vector.extract_strided_slice %140 {offsets = [0, 128], sizes = [16, 128], strides = [1, 1]} : vector<16x384xf32> to vector<16x128xf32>
    %145 = vector.extract_strided_slice %140 {offsets = [0, 256], sizes = [16, 128], strides = [1, 1]} : vector<16x384xf32> to vector<16x128xf32>
    %146 = arith.mulf %144, %112 : vector<16x128xf32>
    %147 = arith.mulf %143, %142 : vector<16x128xf32>
    %148 = arith.addf %146, %147 : vector<16x128xf32>
    %149 = math.tanh %148 : vector<16x128xf32>
    %150 = arith.mulf %145, %149 : vector<16x128xf32>
    %c8_i32_55 = arith.constant 8 : i32
    %151 = arith.cmpi slt, %125, %c8_i32_55 : i32
    %cst_56 = arith.constant 0.000000e+00 : f32
    %cst_57 = arith.constant 0xFF800000 : f32
    %152 = arith.select %151, %cst_56, %cst_57 : f32
    %153 = vector.broadcast %125 : i32 to vector<16x1xi32>
    %154 = arith.cmpi slt, %153, %11 : vector<16x1xi32>
    %155 = vector.shape_cast %154 : vector<16x1xi1> to vector<16x1xi1>
    %156 = vector.broadcast %155 : vector<16x1xi1> to vector<16x128xi1>
    %157 = vector.broadcast %152 : f32 to vector<16x128xf32>
    %158 = arith.select %156, %150, %157 : vector<16x128xi1>, vector<16x128xf32>
    %159 = arith.maximumf %123, %158 : vector<16x128xf32>
    %c4_i32 = arith.constant 4 : i32
    %c8_i32_58 = arith.constant 8 : i32
    %160 = arith.muli %arg0, %c8_i32_58 : i32
    %161 = arith.addi %160, %c4_i32 : i32
    %c16_i32_59 = arith.constant 16 : i32
    %162 = arith.muli %c4_i32, %c16_i32_59 : i32
    %163 = tpu.assume_multiple %162, 16 : i32
    %164 = arith.truncf %150 : vector<16x128xf32> to vector<16x128xbf16>
    %cst_60 = arith.constant dense<0.000000e+00> : vector<16x512xf32>
    %165 = tpu.matmul %164, %12, %cst_60 {dimension_numbers = #tpu.dot_dimension_numbers<[1], [0], [0], [1], [0, 0, 1, 1], [], []>} : vector<16x128xbf16>, vector<128x512xbf16>, vector<16x512xf32> -> vector<16x512xf32>
    %166 = arith.index_cast %163 : i32 to index
    %c0_61 = arith.constant 0 : index
    %167 = vector.load %arg16[%166, %c0_61] : memref<128x512xf32, #tpu.memory_space<vmem>>, vector<16x512xf32>
    %168 = arith.addf %165, %167 : vector<16x512xf32>
    %169 = vector.extract_strided_slice %168 {offsets = [0, 0], sizes = [16, 384], strides = [1, 1]} : vector<16x512xf32> to vector<16x384xf32>
    %cst_62 = arith.constant 5.000000e-01 : f32
    %170 = vector.broadcast %cst_62 : f32 to vector<16x384xf32>
    %171 = arith.mulf %170, %169 : vector<16x384xf32>
    %172 = math.tanh %171 : vector<16x384xf32>
    %cst_63 = arith.constant 1.000000e+00 : f32
    %173 = vector.broadcast %cst_63 : f32 to vector<16x384xf32>
    %174 = arith.addf %172, %173 : vector<16x384xf32>
    %cst_64 = arith.constant 5.000000e-01 : f32
    %175 = vector.broadcast %cst_64 : f32 to vector<16x384xf32>
    %176 = arith.mulf %175, %174 : vector<16x384xf32>
    %177 = vector.extract_strided_slice %168 {offsets = [0, 384], sizes = [16, 128], strides = [1, 1]} : vector<16x512xf32> to vector<16x128xf32>
    %178 = math.tanh %177 : vector<16x128xf32>
    %179 = vector.extract_strided_slice %176 {offsets = [0, 0], sizes = [16, 128], strides = [1, 1]} : vector<16x384xf32> to vector<16x128xf32>
    %180 = vector.extract_strided_slice %176 {offsets = [0, 128], sizes = [16, 128], strides = [1, 1]} : vector<16x384xf32> to vector<16x128xf32>
    %181 = vector.extract_strided_slice %176 {offsets = [0, 256], sizes = [16, 128], strides = [1, 1]} : vector<16x384xf32> to vector<16x128xf32>
    %182 = arith.mulf %180, %148 : vector<16x128xf32>
    %183 = arith.mulf %179, %178 : vector<16x128xf32>
    %184 = arith.addf %182, %183 : vector<16x128xf32>
    %185 = math.tanh %184 : vector<16x128xf32>
    %186 = arith.mulf %181, %185 : vector<16x128xf32>
    %c8_i32_65 = arith.constant 8 : i32
    %187 = arith.cmpi slt, %161, %c8_i32_65 : i32
    %cst_66 = arith.constant 0.000000e+00 : f32
    %cst_67 = arith.constant 0xFF800000 : f32
    %188 = arith.select %187, %cst_66, %cst_67 : f32
    %189 = vector.broadcast %161 : i32 to vector<16x1xi32>
    %190 = arith.cmpi slt, %189, %11 : vector<16x1xi32>
    %191 = vector.shape_cast %190 : vector<16x1xi1> to vector<16x1xi1>
    %192 = vector.broadcast %191 : vector<16x1xi1> to vector<16x128xi1>
    %193 = vector.broadcast %188 : f32 to vector<16x128xf32>
    %194 = arith.select %192, %186, %193 : vector<16x128xi1>, vector<16x128xf32>
    %195 = arith.maximumf %159, %194 : vector<16x128xf32>
    %c5_i32 = arith.constant 5 : i32
    %c8_i32_68 = arith.constant 8 : i32
    %196 = arith.muli %arg0, %c8_i32_68 : i32
    %197 = arith.addi %196, %c5_i32 : i32
    %c16_i32_69 = arith.constant 16 : i32
    %198 = arith.muli %c5_i32, %c16_i32_69 : i32
    %199 = tpu.assume_multiple %198, 16 : i32
    %200 = arith.truncf %186 : vector<16x128xf32> to vector<16x128xbf16>
    %cst_70 = arith.constant dense<0.000000e+00> : vector<16x512xf32>
    %201 = tpu.matmul %200, %12, %cst_70 {dimension_numbers = #tpu.dot_dimension_numbers<[1], [0], [0], [1], [0, 0, 1, 1], [], []>} : vector<16x128xbf16>, vector<128x512xbf16>, vector<16x512xf32> -> vector<16x512xf32>
    %202 = arith.index_cast %199 : i32 to index
    %c0_71 = arith.constant 0 : index
    %203 = vector.load %arg16[%202, %c0_71] : memref<128x512xf32, #tpu.memory_space<vmem>>, vector<16x512xf32>
    %204 = arith.addf %201, %203 : vector<16x512xf32>
    %205 = vector.extract_strided_slice %204 {offsets = [0, 0], sizes = [16, 384], strides = [1, 1]} : vector<16x512xf32> to vector<16x384xf32>
    %cst_72 = arith.constant 5.000000e-01 : f32
    %206 = vector.broadcast %cst_72 : f32 to vector<16x384xf32>
    %207 = arith.mulf %206, %205 : vector<16x384xf32>
    %208 = math.tanh %207 : vector<16x384xf32>
    %cst_73 = arith.constant 1.000000e+00 : f32
    %209 = vector.broadcast %cst_73 : f32 to vector<16x384xf32>
    %210 = arith.addf %208, %209 : vector<16x384xf32>
    %cst_74 = arith.constant 5.000000e-01 : f32
    %211 = vector.broadcast %cst_74 : f32 to vector<16x384xf32>
    %212 = arith.mulf %211, %210 : vector<16x384xf32>
    %213 = vector.extract_strided_slice %204 {offsets = [0, 384], sizes = [16, 128], strides = [1, 1]} : vector<16x512xf32> to vector<16x128xf32>
    %214 = math.tanh %213 : vector<16x128xf32>
    %215 = vector.extract_strided_slice %212 {offsets = [0, 0], sizes = [16, 128], strides = [1, 1]} : vector<16x384xf32> to vector<16x128xf32>
    %216 = vector.extract_strided_slice %212 {offsets = [0, 128], sizes = [16, 128], strides = [1, 1]} : vector<16x384xf32> to vector<16x128xf32>
    %217 = vector.extract_strided_slice %212 {offsets = [0, 256], sizes = [16, 128], strides = [1, 1]} : vector<16x384xf32> to vector<16x128xf32>
    %218 = arith.mulf %216, %184 : vector<16x128xf32>
    %219 = arith.mulf %215, %214 : vector<16x128xf32>
    %220 = arith.addf %218, %219 : vector<16x128xf32>
    %221 = math.tanh %220 : vector<16x128xf32>
    %222 = arith.mulf %217, %221 : vector<16x128xf32>
    %c8_i32_75 = arith.constant 8 : i32
    %223 = arith.cmpi slt, %197, %c8_i32_75 : i32
    %cst_76 = arith.constant 0.000000e+00 : f32
    %cst_77 = arith.constant 0xFF800000 : f32
    %224 = arith.select %223, %cst_76, %cst_77 : f32
    %225 = vector.broadcast %197 : i32 to vector<16x1xi32>
    %226 = arith.cmpi slt, %225, %11 : vector<16x1xi32>
    %227 = vector.shape_cast %226 : vector<16x1xi1> to vector<16x1xi1>
    %228 = vector.broadcast %227 : vector<16x1xi1> to vector<16x128xi1>
    %229 = vector.broadcast %224 : f32 to vector<16x128xf32>
    %230 = arith.select %228, %222, %229 : vector<16x128xi1>, vector<16x128xf32>
    %231 = arith.maximumf %195, %230 : vector<16x128xf32>
    %c6_i32 = arith.constant 6 : i32
    %c8_i32_78 = arith.constant 8 : i32
    %232 = arith.muli %arg0, %c8_i32_78 : i32
    %233 = arith.addi %232, %c6_i32 : i32
    %c16_i32_79 = arith.constant 16 : i32
    %234 = arith.muli %c6_i32, %c16_i32_79 : i32
    %235 = tpu.assume_multiple %234, 16 : i32
    %236 = arith.truncf %222 : vector<16x128xf32> to vector<16x128xbf16>
    %cst_80 = arith.constant dense<0.000000e+00> : vector<16x512xf32>
    %237 = tpu.matmul %236, %12, %cst_80 {dimension_numbers = #tpu.dot_dimension_numbers<[1], [0], [0], [1], [0, 0, 1, 1], [], []>} : vector<16x128xbf16>, vector<128x512xbf16>, vector<16x512xf32> -> vector<16x512xf32>
    %238 = arith.index_cast %235 : i32 to index
    %c0_81 = arith.constant 0 : index
    %239 = vector.load %arg16[%238, %c0_81] : memref<128x512xf32, #tpu.memory_space<vmem>>, vector<16x512xf32>
    %240 = arith.addf %237, %239 : vector<16x512xf32>
    %241 = vector.extract_strided_slice %240 {offsets = [0, 0], sizes = [16, 384], strides = [1, 1]} : vector<16x512xf32> to vector<16x384xf32>
    %cst_82 = arith.constant 5.000000e-01 : f32
    %242 = vector.broadcast %cst_82 : f32 to vector<16x384xf32>
    %243 = arith.mulf %242, %241 : vector<16x384xf32>
    %244 = math.tanh %243 : vector<16x384xf32>
    %cst_83 = arith.constant 1.000000e+00 : f32
    %245 = vector.broadcast %cst_83 : f32 to vector<16x384xf32>
    %246 = arith.addf %244, %245 : vector<16x384xf32>
    %cst_84 = arith.constant 5.000000e-01 : f32
    %247 = vector.broadcast %cst_84 : f32 to vector<16x384xf32>
    %248 = arith.mulf %247, %246 : vector<16x384xf32>
    %249 = vector.extract_strided_slice %240 {offsets = [0, 384], sizes = [16, 128], strides = [1, 1]} : vector<16x512xf32> to vector<16x128xf32>
    %250 = math.tanh %249 : vector<16x128xf32>
    %251 = vector.extract_strided_slice %248 {offsets = [0, 0], sizes = [16, 128], strides = [1, 1]} : vector<16x384xf32> to vector<16x128xf32>
    %252 = vector.extract_strided_slice %248 {offsets = [0, 128], sizes = [16, 128], strides = [1, 1]} : vector<16x384xf32> to vector<16x128xf32>
    %253 = vector.extract_strided_slice %248 {offsets = [0, 256], sizes = [16, 128], strides = [1, 1]} : vector<16x384xf32> to vector<16x128xf32>
    %254 = arith.mulf %252, %220 : vector<16x128xf32>
    %255 = arith.mulf %251, %250 : vector<16x128xf32>
    %256 = arith.addf %254, %255 : vector<16x128xf32>
    %257 = math.tanh %256 : vector<16x128xf32>
    %258 = arith.mulf %253, %257 : vector<16x128xf32>
    %c8_i32_85 = arith.constant 8 : i32
    %259 = arith.cmpi slt, %233, %c8_i32_85 : i32
    %cst_86 = arith.constant 0.000000e+00 : f32
    %cst_87 = arith.constant 0xFF800000 : f32
    %260 = arith.select %259, %cst_86, %cst_87 : f32
    %261 = vector.broadcast %233 : i32 to vector<16x1xi32>
    %262 = arith.cmpi slt, %261, %11 : vector<16x1xi32>
    %263 = vector.shape_cast %262 : vector<16x1xi1> to vector<16x1xi1>
    %264 = vector.broadcast %263 : vector<16x1xi1> to vector<16x128xi1>
    %265 = vector.broadcast %260 : f32 to vector<16x128xf32>
    %266 = arith.select %264, %258, %265 : vector<16x128xi1>, vector<16x128xf32>
    %267 = arith.maximumf %231, %266 : vector<16x128xf32>
    %c7_i32 = arith.constant 7 : i32
    %c8_i32_88 = arith.constant 8 : i32
    %268 = arith.muli %arg0, %c8_i32_88 : i32
    %269 = arith.addi %268, %c7_i32 : i32
    %c16_i32_89 = arith.constant 16 : i32
    %270 = arith.muli %c7_i32, %c16_i32_89 : i32
    %271 = tpu.assume_multiple %270, 16 : i32
    %272 = arith.truncf %258 : vector<16x128xf32> to vector<16x128xbf16>
    %cst_90 = arith.constant dense<0.000000e+00> : vector<16x512xf32>
    %273 = tpu.matmul %272, %12, %cst_90 {dimension_numbers = #tpu.dot_dimension_numbers<[1], [0], [0], [1], [0, 0, 1, 1], [], []>} : vector<16x128xbf16>, vector<128x512xbf16>, vector<16x512xf32> -> vector<16x512xf32>
    %274 = arith.index_cast %271 : i32 to index
    %c0_91 = arith.constant 0 : index
    %275 = vector.load %arg16[%274, %c0_91] : memref<128x512xf32, #tpu.memory_space<vmem>>, vector<16x512xf32>
    %276 = arith.addf %273, %275 : vector<16x512xf32>
    %277 = vector.extract_strided_slice %276 {offsets = [0, 0], sizes = [16, 384], strides = [1, 1]} : vector<16x512xf32> to vector<16x384xf32>
    %cst_92 = arith.constant 5.000000e-01 : f32
    %278 = vector.broadcast %cst_92 : f32 to vector<16x384xf32>
    %279 = arith.mulf %278, %277 : vector<16x384xf32>
    %280 = math.tanh %279 : vector<16x384xf32>
    %cst_93 = arith.constant 1.000000e+00 : f32
    %281 = vector.broadcast %cst_93 : f32 to vector<16x384xf32>
    %282 = arith.addf %280, %281 : vector<16x384xf32>
    %cst_94 = arith.constant 5.000000e-01 : f32
    %283 = vector.broadcast %cst_94 : f32 to vector<16x384xf32>
    %284 = arith.mulf %283, %282 : vector<16x384xf32>
    %285 = vector.extract_strided_slice %276 {offsets = [0, 384], sizes = [16, 128], strides = [1, 1]} : vector<16x512xf32> to vector<16x128xf32>
    %286 = math.tanh %285 : vector<16x128xf32>
    %287 = vector.extract_strided_slice %284 {offsets = [0, 0], sizes = [16, 128], strides = [1, 1]} : vector<16x384xf32> to vector<16x128xf32>
    %288 = vector.extract_strided_slice %284 {offsets = [0, 128], sizes = [16, 128], strides = [1, 1]} : vector<16x384xf32> to vector<16x128xf32>
    %289 = vector.extract_strided_slice %284 {offsets = [0, 256], sizes = [16, 128], strides = [1, 1]} : vector<16x384xf32> to vector<16x128xf32>
    %290 = arith.mulf %288, %256 : vector<16x128xf32>
    %291 = arith.mulf %287, %286 : vector<16x128xf32>
    %292 = arith.addf %290, %291 : vector<16x128xf32>
    %293 = math.tanh %292 : vector<16x128xf32>
    %294 = arith.mulf %289, %293 : vector<16x128xf32>
    %c8_i32_95 = arith.constant 8 : i32
    %295 = arith.cmpi slt, %269, %c8_i32_95 : i32
    %cst_96 = arith.constant 0.000000e+00 : f32
    %cst_97 = arith.constant 0xFF800000 : f32
    %296 = arith.select %295, %cst_96, %cst_97 : f32
    %297 = vector.broadcast %269 : i32 to vector<16x1xi32>
    %298 = arith.cmpi slt, %297, %11 : vector<16x1xi32>
    %299 = vector.shape_cast %298 : vector<16x1xi1> to vector<16x1xi1>
    %300 = vector.broadcast %299 : vector<16x1xi1> to vector<16x128xi1>
    %301 = vector.broadcast %296 : f32 to vector<16x128xf32>
    %302 = arith.select %300, %294, %301 : vector<16x128xi1>, vector<16x128xf32>
    %303 = arith.maximumf %267, %302 : vector<16x128xf32>
    %c8_i32_98 = arith.constant 8 : i32
    %c0_99 = arith.constant 0 : index
    %c0_100 = arith.constant 0 : index
    %304 = vector.load %arg13[%c0_99, %c0_100] : memref<16x128xf32, #tpu.memory_space<vmem>>, vector<16x128xf32>
    tpu.vector_store %arg13[%c0_99, %c0_100], %294 {strides = array<i32>} : memref<16x128xf32, #tpu.memory_space<vmem>>, vector<16x128xf32>,
    %c0_101 = arith.constant 0 : index
    %c0_102 = arith.constant 0 : index
    %305 = vector.load %arg14[%c0_101, %c0_102] : memref<16x128xf32, #tpu.memory_space<vmem>>, vector<16x128xf32>
    tpu.vector_store %arg14[%c0_101, %c0_102], %292 {strides = array<i32>} : memref<16x128xf32, #tpu.memory_space<vmem>>, vector<16x128xf32>,
    %c0_103 = arith.constant 0 : index
    %c0_104 = arith.constant 0 : index
    %306 = vector.load %arg15[%c0_103, %c0_104] : memref<16x128xf32, #tpu.memory_space<vmem>>, vector<16x128xf32>
    tpu.vector_store %arg15[%c0_103, %c0_104], %303 {strides = array<i32>} : memref<16x128xf32, #tpu.memory_space<vmem>>, vector<16x128xf32>,
    %c0_i32_105 = arith.constant 0 : i32
    %307 = arith.cmpi eq, %arg0, %c0_i32_105 : i32
    %308 = arith.extui %307 : i1 to i32
    %c0_i32_106 = arith.constant 0 : i32
    %309 = arith.cmpi ne, %308, %c0_i32_106 : i32
    scf.if %309 {
      %310 = vector.extract_strided_slice %303 {offsets = [0, 0], sizes = [8, 128], strides = [1, 1]} : vector<16x128xf32> to vector<8x128xf32>
      %311 = vector.extract_strided_slice %303 {offsets = [8, 0], sizes = [8, 128], strides = [1, 1]} : vector<16x128xf32> to vector<8x128xf32>
      %312 = arith.subf %310, %311 : vector<8x128xf32>
      %313 = arith.mulf %310, %311 : vector<8x128xf32>
      %314 = tpu.concatenate %310, %311, %312, %313 in 1 : vector<8x128xf32>, vector<8x128xf32>, vector<8x128xf32>, vector<8x128xf32> -> vector<8x512xf32>
      %315 = arith.truncf %314 : vector<8x512xf32> to vector<8x512xbf16>
      %c0_107 = arith.constant 0 : index
      %c0_108 = arith.constant 0 : index
      %316 = vector.load %arg6[%c0_107, %c0_108] : memref<512x128xbf16, #tpu.memory_space<vmem>>, vector<512x128xbf16>
      %cst_109 = arith.constant dense<0.000000e+00> : vector<8x128xf32>
      %317 = tpu.matmul %315, %316, %cst_109 {dimension_numbers = #tpu.dot_dimension_numbers<[1], [0], [0], [1], [0, 0, 1, 1], [], []>} : vector<8x512xbf16>, vector<512x128xbf16>, vector<8x128xf32> -> vector<8x128xf32>
      %c0_110 = arith.constant 0 : index
      %c0_111 = arith.constant 0 : index
      %318 = vector.load %arg7[%c0_110, %c0_111] : memref<1x128xf32, #tpu.memory_space<vmem>>, vector<1x128xf32>
      %319 = vector.broadcast %318 : vector<1x128xf32> to vector<8x128xf32>
      %320 = arith.addf %317, %319 : vector<8x128xf32>
      %cst_112 = arith.constant 0.000000e+00 : f32
      %321 = vector.broadcast %cst_112 : f32 to vector<8x128xf32>
      %322 = arith.maximumf %320, %321 : vector<8x128xf32>
      %323 = arith.truncf %322 : vector<8x128xf32> to vector<8x128xbf16>
      %c0_113 = arith.constant 0 : index
      %c0_114 = arith.constant 0 : index
      %324 = vector.load %arg8[%c0_113, %c0_114] : memref<128x128xbf16, #tpu.memory_space<vmem>>, vector<128x128xbf16>
      %cst_115 = arith.constant dense<0.000000e+00> : vector<8x128xf32>
      %325 = tpu.matmul %323, %324, %cst_115 {dimension_numbers = #tpu.dot_dimension_numbers<[1], [0], [0], [1], [0, 0, 1, 1], [], []>} : vector<8x128xbf16>, vector<128x128xbf16>, vector<8x128xf32> -> vector<8x128xf32>
      %c0_116 = arith.constant 0 : index
      %c0_117 = arith.constant 0 : index
      %326 = vector.load %arg9[%c0_116, %c0_117] : memref<1x128xf32, #tpu.memory_space<vmem>>, vector<1x128xf32>
      %327 = vector.broadcast %326 : vector<1x128xf32> to vector<8x128xf32>
      %328 = arith.addf %325, %327 : vector<8x128xf32>
      %c0_118 = arith.constant 0 : index
      %c0_119 = arith.constant 0 : index
      %329 = vector.load %arg10[%c0_118, %c0_119] : memref<8x128xf32, #tpu.memory_space<vmem>>, vector<8x128xf32>
      tpu.vector_store %arg10[%c0_118, %c0_119], %328 {strides = array<i32>} : memref<8x128xf32, #tpu.memory_space<vmem>>, vector<8x128xf32>,
      %cst_120 = arith.constant dense<0xFF800000> : vector<8xf32>
      %330 = vector.multi_reduction <maximumf>, %328, %cst_120 [1] : vector<8x128xf32> to vector<8xf32>
      %331 = vector.shape_cast %330 : vector<8xf32> to vector<8x1xf32>
      %332 = vector.broadcast %331 : vector<8x1xf32> to vector<8x128xf32>
      %333 = arith.subf %328, %332 : vector<8x128xf32>
      %334 = math.exp %333 : vector<8x128xf32>
      %cst_121 = arith.constant dense<0.000000e+00> : vector<8xf32>
      %335 = vector.multi_reduction <add>, %334, %cst_121 [1] : vector<8x128xf32> to vector<8xf32>
      %336 = vector.shape_cast %335 : vector<8xf32> to vector<8x1xf32>
      %337 = vector.broadcast %336 : vector<8x1xf32> to vector<8x128xf32>
      %338 = arith.divf %334, %337 : vector<8x128xf32>
      %c0_122 = arith.constant 0 : index
      %c0_123 = arith.constant 0 : index
      %339 = vector.load %arg11[%c0_122, %c0_123] : memref<8x128xf32, #tpu.memory_space<vmem>>, vector<8x128xf32>
      tpu.vector_store %arg11[%c0_122, %c0_123], %338 {strides = array<i32>} : memref<8x128xf32, #tpu.memory_space<vmem>>, vector<8x128xf32>,
      %340 = tpu.iota {dimensions = array<i32: 1>} : vector<8x128xi32>
      %341 = vector.broadcast %331 : vector<8x1xf32> to vector<8x128xf32>
      %342 = arith.cmpf oge, %328, %341 : vector<8x128xf32>
      %c128_i32 = arith.constant 128 : i32
      %343 = vector.broadcast %c128_i32 : i32 to vector<8x128xi32>
      %344 = arith.select %342, %340, %343 : vector<8x128xi1>, vector<8x128xi32>
      %cst_124 = arith.constant dense<2147483647> : vector<8xi32>
      %345 = vector.multi_reduction <minsi>, %344, %cst_124 [1] : vector<8x128xi32> to vector<8xi32>
      %346 = vector.shape_cast %345 : vector<8xi32> to vector<8x1xi32>
      %c0_125 = arith.constant 0 : index
      %c0_126 = arith.constant 0 : index
      %347 = vector.load %arg12[%c0_125, %c0_126] : memref<8x1xi32, #tpu.memory_space<vmem>>, vector<8x1xi32>
      tpu.vector_store %arg12[%c0_125, %c0_126], %346 {strides = array<i32>} : memref<8x1xi32, #tpu.memory_space<vmem>>, vector<8x1xi32>,
    } else {
    }
    return
  }
  func.func @transform_0(%arg0: i32) -> (i32, i32, i32) {
    %c0_i32 = arith.constant 0 : i32
    %c0_i32_0 = arith.constant 0 : i32
    %c0_i32_1 = arith.constant 0 : i32
    return %arg0, %c0_i32, %c0_i32_0 : i32, i32, i32
  }
  func.func @transform_1(%arg0: i32) -> (i32, i32) {
    %c0_i32 = arith.constant 0 : i32
    %c0_i32_0 = arith.constant 0 : i32
    %c0_i32_1 = arith.constant 0 : i32
    return %c0_i32, %c0_i32_0 : i32, i32
  }
  func.func @transform_2(%arg0: i32) -> (i32, i32) {
    %c0_i32 = arith.constant 0 : i32
    %c0_i32_0 = arith.constant 0 : i32
    %c0_i32_1 = arith.constant 0 : i32
    return %c0_i32, %c0_i32_0 : i32, i32
  }
  func.func @transform_3(%arg0: i32) -> (i32, i32) {
    %c0_i32 = arith.constant 0 : i32
    %c0_i32_0 = arith.constant 0 : i32
    %c0_i32_1 = arith.constant 0 : i32
    return %c0_i32, %c0_i32_0 : i32, i32
  }
  func.func @transform_4(%arg0: i32) -> (i32, i32) {
    %c0_i32 = arith.constant 0 : i32
    %c0_i32_0 = arith.constant 0 : i32
    %c0_i32_1 = arith.constant 0 : i32
    return %c0_i32, %c0_i32_0 : i32, i32
  }
  func.func @transform_5(%arg0: i32) -> (i32, i32) {
    %c0_i32 = arith.constant 0 : i32
    %c0_i32_0 = arith.constant 0 : i32
    %c0_i32_1 = arith.constant 0 : i32
    return %c0_i32, %c0_i32_0 : i32, i32
  }
  func.func @transform_6(%arg0: i32) -> (i32, i32) {
    %c0_i32 = arith.constant 0 : i32
    %c0_i32_0 = arith.constant 0 : i32
    %c0_i32_1 = arith.constant 0 : i32
    return %c0_i32, %c0_i32_0 : i32, i32
  }
  func.func @transform_7(%arg0: i32) -> (i32, i32) {
    %c0_i32 = arith.constant 0 : i32
    %c0_i32_0 = arith.constant 0 : i32
    %c0_i32_1 = arith.constant 0 : i32
    return %c0_i32, %c0_i32_0 : i32, i32
  }
  func.func @transform_8(%arg0: i32) -> (i32, i32) {
    %c0_i32 = arith.constant 0 : i32
    %c0_i32_0 = arith.constant 0 : i32
    %c0_i32_1 = arith.constant 0 : i32
    return %c0_i32, %c0_i32_0 : i32, i32
  }
  func.func @transform_9(%arg0: i32) -> (i32, i32) {
    %c0_i32 = arith.constant 0 : i32
    %c0_i32_0 = arith.constant 0 : i32
    %c0_i32_1 = arith.constant 0 : i32
    return %c0_i32, %c0_i32_0 : i32, i32
  }
  func.func @transform_10(%arg0: i32) -> (i32, i32) {
    %c0_i32 = arith.constant 0 : i32
    %c0_i32_0 = arith.constant 0 : i32
    %c0_i32_1 = arith.constant 0 : i32
    return %c0_i32, %c0_i32_0 : i32, i32
  }
  func.func @transform_11(%arg0: i32) -> (i32, i32) {
    %c0_i32 = arith.constant 0 : i32
    %c0_i32_0 = arith.constant 0 : i32
    %c0_i32_1 = arith.constant 0 : i32
    return %c0_i32, %c0_i32_0 : i32, i32
  }
}

</mosaic_0001>

<llo_original>
// kernel: rte_forward.1
$region0: #{rte_forward.1}
  #allocation0 [shape = 'u32[]', space=smem, size = 0x4, offset = 0x4, fixed_abs, tag = 'smem constant byte address 0x4 - core index']
  #allocation1 [shape = 'u32[144,128]{1,0:T(1,128)}', space=vmem, size = 0x12000, scoped, tag = 'internal scratch']
  #allocation2 [shape = 'f32[16,128]{1,0:T(8,128)}', space=vmem, size = 0x2000, scoped, tag = 'scratch operand']
  #allocation3 [shape = 'f32[16,128]{1,0:T(8,128)}', space=vmem, size = 0x2000, scoped, tag = 'scratch operand']
  #allocation4 [shape = 'f32[16,128]{1,0:T(8,128)}', space=vmem, size = 0x2000, scoped, tag = 'scratch operand']
  #allocation5 [shape = 'f32[128,512]{1,0:T(8,128)}', space=vmem, size = 0x40000, scoped, tag = 'scratch operand']
  %s0 = inlined_call_operand.vmem [shape: bf16[1,128,16], index: 0, kind: input, shape index: {}]
  %s1 = inlined_call_operand.vmem [shape: s32[16,1], index: 1, kind: input, shape index: {}]
  %s2 = inlined_call_operand.vmem [shape: bf16[16,512], index: 2, kind: input, shape index: {}]
  %s3 = inlined_call_operand.vmem [shape: bf16[128,512], index: 3, kind: input, shape index: {}]
  %s4 = inlined_call_operand.vmem [shape: f32[1,512], index: 4, kind: input, shape index: {}]
  %s5 = inlined_call_operand.vmem [shape: bf16[512,128], index: 5, kind: input, shape index: {}]
  %s6 = inlined_call_operand.vmem [shape: f32[1,128], index: 6, kind: input, shape index: {}]
  %s7 = inlined_call_operand.vmem [shape: bf16[128,128], index: 7, kind: input, shape index: {}]
  %s8 = inlined_call_operand.vmem [shape: f32[1,128], index: 8, kind: input, shape index: {}]
  %s9 = inlined_call_operand.vmem [shape: f32[8,128], index: 9, kind: output, shape index: {0}]
  %s10 = inlined_call_operand.vmem [shape: f32[8,128], index: 10, kind: output, shape index: {1}]
  %s11 = inlined_call_operand.vmem [shape: s32[8,1], index: 11, kind: output, shape index: {2}]
  %12 = xla_tuple %s9, %s10, %s11
  %s13 = sld [smem:[#allocation0]]
  $region70: #{rte_forward.1} parent=0
    _
  %s15 = ssub.s32 1, %s13
  %s16 = scalar_select 0, %s15, %s13
  // Predicated region
  $region2: #{rte_forward.1} parent=0 // pred_check
    _
  $region3: #{rte_forward.1} parent=0 // pred_check_branch
    %18 = sbr.rel (0) target = $region5
  $region4: #{rte_forward.1} parent=0 // pred_region
    _
  $region5: #{rte_forward.1} parent=0 // pred_fallthru
    _
  // Predicated region
  $region6: #{rte_forward.1} parent=0 // pred_check
    _
  $region7: #{rte_forward.1} parent=0 // pred_check_branch
    %20 = sbr.rel (0) target = $region9
  $region8: #{rte_forward.1} parent=0 // pred_region
    _
  $region9: #{rte_forward.1} parent=0 // pred_fallthru
    _
  // Predicated region
  $region10: #{rte_forward.1} parent=0 // pred_check
    _
  $region11: #{rte_forward.1} parent=0 // pred_check_branch
    %22 = sbr.rel (0) target = $region13
  $region12: #{rte_forward.1} parent=0 // pred_region
    _
  $region13: #{rte_forward.1} parent=0 // pred_fallthru
    _
  // Predicated region
  $region14: #{rte_forward.1} parent=0 // pred_check
    _
  $region15: #{rte_forward.1} parent=0 // pred_check_branch
    %24 = sbr.rel (0) target = $region17
  $region16: #{rte_forward.1} parent=0 // pred_region
    _
  $region17: #{rte_forward.1} parent=0 // pred_fallthru
    _
  // Predicated region
  $region18: #{rte_forward.1} parent=0 // pred_check
    _
  $region19: #{rte_forward.1} parent=0 // pred_check_branch
    %26 = sbr.rel (0) target = $region21
  $region20: #{rte_forward.1} parent=0 // pred_region
    _
  $region21: #{rte_forward.1} parent=0 // pred_fallthru
    _
  // Predicated region
  $region22: #{rte_forward.1} parent=0 // pred_check
    _
  $region23: #{rte_forward.1} parent=0 // pred_check_branch
    %28 = sbr.rel (0) target = $region25
  $region24: #{rte_forward.1} parent=0 // pred_region
    _
  $region25: #{rte_forward.1} parent=0 // pred_fallthru
    _
  // Predicated region
  $region26: #{rte_forward.1} parent=0 // pred_check
    _
  $region27: #{rte_forward.1} parent=0 // pred_check_branch
    %30 = sbr.rel (0) target = $region29
  $region28: #{rte_forward.1} parent=0 // pred_region
    _
  $region29: #{rte_forward.1} parent=0 // pred_fallthru
    _
  // Predicated region
  $region30: #{rte_forward.1} parent=0 // pred_check
    _
  $region31: #{rte_forward.1} parent=0 // pred_check_branch
    %32 = sbr.rel (0) target = $region33
  $region32: #{rte_forward.1} parent=0 // pred_region
    _
  $region33: #{rte_forward.1} parent=0 // pred_fallthru
    _
  // Predicated region
  $region34: #{rte_forward.1} parent=0 // pred_check
    _
  $region35: #{rte_forward.1} parent=0 // pred_check_branch
    %34 = sbr.rel (0) target = $region37
  $region36: #{rte_forward.1} parent=0 // pred_region
    _
  $region37: #{rte_forward.1} parent=0 // pred_fallthru
    _
  %p36 = scmp.eq.s32.totalorder 0, 0
  // Predicated region
  $region38: #{rte_forward.1} parent=0 // pred_check
    %p37 = pneg %p36
  $region39: #{rte_forward.1} parent=0 // pred_check_branch
    %39 = sbr.rel (%p37) target = $region41
  $region40: #{rte_forward.1} parent=0 // pred_region
    %40 = vst [vmem:[#allocation2] sm:$0xff] 0.0
    %41 = vst [vmem:[#allocation2 + $0x8] sm:$0xff] 0.0
    %42 = vst [vmem:[#allocation3] sm:$0xff] 0.0
    %43 = vst [vmem:[#allocation3 + $0x8] sm:$0xff] 0.0
    %44 = vst [vmem:[#allocation4] sm:$0xff] -inf
    %45 = vst [vmem:[#allocation4 + $0x8] sm:$0xff] -inf
  $region41: #{rte_forward.1} parent=0 // pred_fallthru
    _
  %v46 = vld [vmem:[%s0] sm:$0xf]
  %v47 = vld [vmem:[%s0 + $0x4] sm:$0xf]
  %v48 = vld [vmem:[%s0 + $0x8] sm:$0xf]
  %v49 = vld [vmem:[%s0 + $0xc] sm:$0xf]
  %v50 = vld [vmem:[%s0 + $0x10] sm:$0xf]
  %v51 = vld [vmem:[%s0 + $0x14] sm:$0xf]
  %v52 = vld [vmem:[%s0 + $0x18] sm:$0xf]
  %v53 = vld [vmem:[%s0 + $0x1c] sm:$0xf]
  %v54 = vld [vmem:[%s0 + $0x20] sm:$0xf]
  %v55 = vld [vmem:[%s0 + $0x24] sm:$0xf]
  %v56 = vld [vmem:[%s0 + $0x28] sm:$0xf]
  %v57 = vld [vmem:[%s0 + $0x2c] sm:$0xf]
  %v58 = vld [vmem:[%s0 + $0x30] sm:$0xf]
  %v59 = vld [vmem:[%s0 + $0x34] sm:$0xf]
  %v60 = vld [vmem:[%s0 + $0x38] sm:$0xf]
  %v61 = vld [vmem:[%s0 + $0x3c] sm:$0xf]
  %v62 = vld [vmem:[%s2] sm:$0xff]
  %v63 = vld [vmem:[%s2 + $0x8] sm:$0xff]
  %v64 = vld [vmem:[%s2 + $0x10] sm:$0xff]
  %v65 = vld [vmem:[%s2 + $0x18] sm:$0xff]
  %v66 = vld [vmem:[%s4] sm:$0xf]
  %v68 = vlaneseq
  %v69 = vshrl.u32 %v68, 7
  %v70 = vsub.s32 0, %v69
  %v71 = vrot.slane %v66, %v70
  %v72 = vlaneseq
  %v73 = vshrl.u32 %v72, 7
  %v74 = vsub.s32 1, %v73
  %v75 = vrot.slane %v66, %v74
  %v76 = vlaneseq
  %v77 = vshrl.u32 %v76, 7
  %v78 = vsub.s32 2, %v77
  %v79 = vrot.slane %v66, %v78
  %v80 = vlaneseq
  %v81 = vshrl.u32 %v80, 7
  %v82 = vsub.s32 3, %v81
  %v83 = vrot.slane %v66, %v82
  %v104 = vunpack.c.l.b16 %v46
  %v105 = vunpack.c.l.b16 %v47
  %v106 = vunpack.c.l.b16 %v48
  %v107 = vunpack.c.l.b16 %v49
  %v108 = vunpack.c.l.b16 %v50
  %v109 = vunpack.c.l.b16 %v51
  %v110 = vunpack.c.l.b16 %v52
  %v111 = vunpack.c.l.b16 %v53
  %v112 = vunpack.c.l.b16 %v54
  %v113 = vunpack.c.l.b16 %v55
  %v114 = vunpack.c.l.b16 %v56
  %v115 = vunpack.c.l.b16 %v57
  %v116 = vunpack.c.l.b16 %v58
  %v117 = vunpack.c.l.b16 %v59
  %v118 = vunpack.c.l.b16 %v60
  %v119 = vunpack.c.l.b16 %v61
  %v120 = vpack.c.b16 %v105, %v104
  %v121 = vpack.c.b16 %v107, %v106
  %v122 = vpack.c.b16 %v109, %v108
  %v123 = vpack.c.b16 %v111, %v110
  %v124 = vpack.c.b16 %v113, %v112
  %v125 = vpack.c.b16 %v115, %v114
  %v126 = vpack.c.b16 %v117, %v116
  %v127 = vpack.c.b16 %v119, %v118
  %v132 = vunpack.c.l.b16 %v62
  %v133 = vunpack.c.h.b16 %v62
  %v134 = vunpack.c.l.b16 %v63
  %v135 = vunpack.c.h.b16 %v63
  %v136 = vunpack.c.l.b16 %v64
  %v137 = vunpack.c.h.b16 %v64
  %v138 = vunpack.c.l.b16 %v65
  %v139 = vunpack.c.h.b16 %v65
  %v140 = vpack.c.b16 %v136, %v132
  %v141 = vpack.c.b16 %v137, %v133
  %v142 = vpack.c.b16 %v138, %v134
  %v143 = vpack.c.b16 %v139, %v135
  %vm148 = vcmask 130048
  %v150 = vsel %vm148, %v120, 0
  %v153 = vsel %vm148, %v121, 0
  %v156 = vsel %vm148, %v122, 0
  %v159 = vsel %vm148, %v123, 0
  %v162 = vsel %vm148, %v124, 0
  %v165 = vsel %vm148, %v125, 0
  %v168 = vsel %vm148, %v126, 0
  %v171 = vsel %vm148, %v127, 0
  %173 = vmatprep.subr.bf16.mxu0 0
  %174 = vmatpush1.bf16.msra.mxu0 0
  %175 = vmatprep.subr.bf16.mxu0 0
  %176 = vmatpush1.bf16.msra.mxu0 0
  %177 = vmatprep.subr.bf16.mxu0 0
  %178 = vmatpush1.bf16.msra.mxu0 0
  %179 = vmatprep.subr.bf16.mxu0 0
  %180 = vmatpush1.bf16.msra.mxu0 0
  %181 = vmatprep.subr.bf16.mxu0 0
  %182 = vmatpush1.bf16.msra.mxu0 0
  %183 = vmatprep.subr.bf16.mxu0 0
  %184 = vmatpush1.bf16.msra.mxu0 0
  %185 = vmatprep.subr.bf16.mxu0 0
  %186 = vmatpush1.bf16.msra.mxu0 0
  %187 = vmatprep.subr.bf16.mxu0 %v141
  %188 = vmatpush1.bf16.msra.mxu0 %v140
  %189 = vmatprep.subr.bf16.mxu0 0
  %190 = vmatpush2.bf16.msra.mxu0 0
  %191 = vmatprep.subr.bf16.mxu0 0
  %192 = vmatpush2.bf16.msra.mxu0 0
  %193 = vmatprep.subr.bf16.mxu0 0
  %194 = vmatpush2.bf16.msra.mxu0 0
  %195 = vmatprep.subr.bf16.mxu0 0
  %196 = vmatpush2.bf16.msra.mxu0 0
  %197 = vmatprep.subr.bf16.mxu0 0
  %198 = vmatpush2.bf16.msra.mxu0 0
  %199 = vmatprep.subr.bf16.mxu0 0
  %200 = vmatpush2.bf16.msra.mxu0 0
  %201 = vmatprep.subr.bf16.mxu0 0
  %202 = vmatpush2.bf16.msra.mxu0 0
  %203 = vmatprep.subr.bf16.mxu0 0
  %204 = vmatpush2.bf16.msra.mxu0 0
  %205 = vmatprep.mubr.bf16.mxu0 0
  %206 = vmatmul.mubr.bf16.gmra.mxu0 %v150
  %v207 = vpop.f32.mrf.mxu0
  %v208 = vadd.f32 %v71, %v207
  %v209 = vpop.f32.mrf.mxu0
  %v210 = vadd.f32 %v75, %v209
  %v211 = vpop.f32.mrf.mxu0
  %v212 = vadd.f32 %v71, %v211
  %v213 = vpop.f32.mrf.mxu0
  %v214 = vadd.f32 %v75, %v213
  %215 = vmatprep.mubr.bf16.mxu0 0
  %216 = vmatmul.mubr.bf16.gmra.mxu0 %v153
  %v217 = vpop.f32.mrf.mxu0
  %v218 = vadd.f32 %v71, %v217
  %v219 = vpop.f32.mrf.mxu0
  %v220 = vadd.f32 %v75, %v219
  %v221 = vpop.f32.mrf.mxu0
  %v222 = vadd.f32 %v71, %v221
  %v223 = vpop.f32.mrf.mxu0
  %v224 = vadd.f32 %v75, %v223
  %225 = vmatprep.mubr.bf16.mxu0 0
  %226 = vmatmul.mubr.bf16.gmra.mxu0 %v156
  %v227 = vpop.f32.mrf.mxu0
  %v228 = vadd.f32 %v71, %v227
  %v229 = vpop.f32.mrf.mxu0
  %v230 = vadd.f32 %v75, %v229
  %v231 = vpop.f32.mrf.mxu0
  %v232 = vadd.f32 %v71, %v231
  %v233 = vpop.f32.mrf.mxu0
  %v234 = vadd.f32 %v75, %v233
  %235 = vmatprep.mubr.bf16.mxu0 0
  %236 = vmatmul.mubr.bf16.gmra.mxu0 %v159
  %v237 = vpop.f32.mrf.mxu0
  %v238 = vadd.f32 %v71, %v237
  %v239 = vpop.f32.mrf.mxu0
  %v240 = vadd.f32 %v75, %v239
  %v241 = vpop.f32.mrf.mxu0
  %v242 = vadd.f32 %v71, %v241
  %v243 = vpop.f32.mrf.mxu0
  %v244 = vadd.f32 %v75, %v243
  %245 = vmatprep.mubr.bf16.mxu0 0
  %246 = vmatmul.mubr.bf16.gmra.mxu0 %v162
  %v247 = vpop.f32.mrf.mxu0
  %v248 = vadd.f32 %v71, %v247
  %v249 = vpop.f32.mrf.mxu0
  %v250 = vadd.f32 %v75, %v249
  %v251 = vpop.f32.mrf.mxu0
  %v252 = vadd.f32 %v71, %v251
  %v253 = vpop.f32.mrf.mxu0
  %v254 = vadd.f32 %v75, %v253
  %255 = vmatprep.mubr.bf16.mxu0 0
  %256 = vmatmul.mubr.bf16.gmra.mxu0 %v165
  %v257 = vpop.f32.mrf.mxu0
  %v258 = vadd.f32 %v71, %v257
  %v259 = vpop.f32.mrf.mxu0
  %v260 = vadd.f32 %v75, %v259
  %v261 = vpop.f32.mrf.mxu0
  %v262 = vadd.f32 %v71, %v261
  %v263 = vpop.f32.mrf.mxu0
  %v264 = vadd.f32 %v75, %v263
  %265 = vmatprep.mubr.bf16.mxu0 0
  %266 = vmatmul.mubr.bf16.gmra.mxu0 %v168
  %v267 = vpop.f32.mrf.mxu0
  %v268 = vadd.f32 %v71, %v267
  %v269 = vpop.f32.mrf.mxu0
  %v270 = vadd.f32 %v75, %v269
  %v271 = vpop.f32.mrf.mxu0
  %v272 = vadd.f32 %v71, %v271
  %v273 = vpop.f32.mrf.mxu0
  %v274 = vadd.f32 %v75, %v273
  %275 = vmatprep.mubr.bf16.mxu0 0
  %276 = vmatmul.mubr.bf16.gmra.mxu0 %v171
  %v277 = vpop.f32.mrf.mxu0
  %v278 = vadd.f32 %v71, %v277
  %v279 = vpop.f32.mrf.mxu0
  %v280 = vadd.f32 %v75, %v279
  %v281 = vpop.f32.mrf.mxu0
  %v282 = vadd.f32 %v71, %v281
  %v283 = vpop.f32.mrf.mxu0
  %v284 = vadd.f32 %v75, %v283
  %285 = vdwg.mxu0
  %286 = vmatprep.subr.bf16.mxu0 0
  %287 = vmatpush1.bf16.msra.mxu0 0
  %288 = vmatprep.subr.bf16.mxu0 0
  %289 = vmatpush1.bf16.msra.mxu0 0
  %290 = vmatprep.subr.bf16.mxu0 0
  %291 = vmatpush1.bf16.msra.mxu0 0
  %292 = vmatprep.subr.bf16.mxu0 0
  %293 = vmatpush1.bf16.msra.mxu0 0
  %294 = vmatprep.subr.bf16.mxu0 0
  %295 = vmatpush1.bf16.msra.mxu0 0
  %296 = vmatprep.subr.bf16.mxu0 0
  %297 = vmatpush1.bf16.msra.mxu0 0
  %298 = vmatprep.subr.bf16.mxu0 0
  %299 = vmatpush1.bf16.msra.mxu0 0
  %300 = vmatprep.subr.bf16.mxu0 %v143
  %301 = vmatpush1.bf16.msra.mxu0 %v142
  %302 = vmatprep.subr.bf16.mxu0 0
  %303 = vmatpush2.bf16.msra.mxu0 0
  %304 = vmatprep.subr.bf16.mxu0 0
  %305 = vmatpush2.bf16.msra.mxu0 0
  %306 = vmatprep.subr.bf16.mxu0 0
  %307 = vmatpush2.bf16.msra.mxu0 0
  %308 = vmatprep.subr.bf16.mxu0 0
  %309 = vmatpush2.bf16.msra.mxu0 0
  %310 = vmatprep.subr.bf16.mxu0 0
  %311 = vmatpush2.bf16.msra.mxu0 0
  %312 = vmatprep.subr.bf16.mxu0 0
  %313 = vmatpush2.bf16.msra.mxu0 0
  %314 = vmatprep.subr.bf16.mxu0 0
  %315 = vmatpush2.bf16.msra.mxu0 0
  %316 = vmatprep.subr.bf16.mxu0 0
  %317 = vmatpush2.bf16.msra.mxu0 0
  %318 = vmatprep.mubr.bf16.mxu0 0
  %319 = vmatmul.mubr.bf16.gmra.mxu0 %v150
  %v320 = vpop.f32.mrf.mxu0
  %v321 = vadd.f32 %v79, %v320
  %v322 = vpop.f32.mrf.mxu0
  %v323 = vadd.f32 %v83, %v322
  %v324 = vpop.f32.mrf.mxu0
  %v325 = vadd.f32 %v79, %v324
  %v326 = vpop.f32.mrf.mxu0
  %v327 = vadd.f32 %v83, %v326
  %328 = vmatprep.mubr.bf16.mxu0 0
  %329 = vmatmul.mubr.bf16.gmra.mxu0 %v153
  %v330 = vpop.f32.mrf.mxu0
  %v331 = vadd.f32 %v79, %v330
  %v332 = vpop.f32.mrf.mxu0
  %v333 = vadd.f32 %v83, %v332
  %v334 = vpop.f32.mrf.mxu0
  %v335 = vadd.f32 %v79, %v334
  %v336 = vpop.f32.mrf.mxu0
  %v337 = vadd.f32 %v83, %v336
  %338 = vmatprep.mubr.bf16.mxu0 0
  %339 = vmatmul.mubr.bf16.gmra.mxu0 %v156
  %v340 = vpop.f32.mrf.mxu0
  %v341 = vadd.f32 %v79, %v340
  %v342 = vpop.f32.mrf.mxu0
  %v343 = vadd.f32 %v83, %v342
  %v344 = vpop.f32.mrf.mxu0
  %v345 = vadd.f32 %v79, %v344
  %v346 = vpop.f32.mrf.mxu0
  %v347 = vadd.f32 %v83, %v346
  %348 = vmatprep.mubr.bf16.mxu0 0
  %349 = vmatmul.mubr.bf16.gmra.mxu0 %v159
  %v350 = vpop.f32.mrf.mxu0
  %v351 = vadd.f32 %v79, %v350
  %v352 = vpop.f32.mrf.mxu0
  %v353 = vadd.f32 %v83, %v352
  %v354 = vpop.f32.mrf.mxu0
  %v355 = vadd.f32 %v79, %v354
  %v356 = vpop.f32.mrf.mxu0
  %v357 = vadd.f32 %v83, %v356
  %358 = vmatprep.mubr.bf16.mxu0 0
  %359 = vmatmul.mubr.bf16.gmra.mxu0 %v162
  %v360 = vpop.f32.mrf.mxu0
  %v361 = vadd.f32 %v79, %v360
  %v362 = vpop.f32.mrf.mxu0
  %v363 = vadd.f32 %v83, %v362
  %v364 = vpop.f32.mrf.mxu0
  %v365 = vadd.f32 %v79, %v364
  %v366 = vpop.f32.mrf.mxu0
  %v367 = vadd.f32 %v83, %v366
  %368 = vmatprep.mubr.bf16.mxu0 0
  %369 = vmatmul.mubr.bf16.gmra.mxu0 %v165
  %v370 = vpop.f32.mrf.mxu0
  %v371 = vadd.f32 %v79, %v370
  %v372 = vpop.f32.mrf.mxu0
  %v373 = vadd.f32 %v83, %v372
  %v374 = vpop.f32.mrf.mxu0
  %v375 = vadd.f32 %v79, %v374
  %v376 = vpop.f32.mrf.mxu0
  %v377 = vadd.f32 %v83, %v376
  %378 = vmatprep.mubr.bf16.mxu0 0
  %379 = vmatmul.mubr.bf16.gmra.mxu0 %v168
  %v380 = vpop.f32.mrf.mxu0
  %v381 = vadd.f32 %v79, %v380
  %v382 = vpop.f32.mrf.mxu0
  %v383 = vadd.f32 %v83, %v382
  %v384 = vpop.f32.mrf.mxu0
  %v385 = vadd.f32 %v79, %v384
  %v386 = vpop.f32.mrf.mxu0
  %v387 = vadd.f32 %v83, %v386
  %388 = vmatprep.mubr.bf16.mxu0 0
  %389 = vmatmul.mubr.bf16.gmra.mxu0 %v171
  %v390 = vpop.f32.mrf.mxu0
  %v391 = vadd.f32 %v79, %v390
  %v392 = vpop.f32.mrf.mxu0
  %v393 = vadd.f32 %v83, %v392
  %v394 = vpop.f32.mrf.mxu0
  %v395 = vadd.f32 %v79, %v394
  %v396 = vpop.f32.mrf.mxu0
  %v397 = vadd.f32 %v83, %v396
  %398 = vdwg.mxu0
  %399 = vst [vmem:[#allocation5] sm:$0xff] %v208
  %400 = vst [vmem:[#allocation5 + $0x8] sm:$0xff] %v210
  %401 = vst [vmem:[#allocation5 + $0x10] sm:$0xff] %v321
  %402 = vst [vmem:[#allocation5 + $0x18] sm:$0xff] %v323
  %403 = vst [vmem:[#allocation5 + $0x20] sm:$0xff] %v212
  %404 = vst [vmem:[#allocation5 + $0x28] sm:$0xff] %v214
  %405 = vst [vmem:[#allocation5 + $0x30] sm:$0xff] %v325
  %406 = vst [vmem:[#allocation5 + $0x38] sm:$0xff] %v327
  %407 = vst [vmem:[#allocation5 + $0x40] sm:$0xff] %v218
  %408 = vst [vmem:[#allocation5 + $0x48] sm:$0xff] %v220
  %409 = vst [vmem:[#allocation5 + $0x50] sm:$0xff] %v331
  %410 = vst [vmem:[#allocation5 + $0x58] sm:$0xff] %v333
  %411 = vst [vmem:[#allocation5 + $0x60] sm:$0xff] %v222
  %412 = vst [vmem:[#allocation5 + $0x68] sm:$0xff] %v224
  %413 = vst [vmem:[#allocation5 + $0x70] sm:$0xff] %v335
  %414 = vst [vmem:[#allocation5 + $0x78] sm:$0xff] %v337
  %415 = vst [vmem:[#allocation5 + $0x80] sm:$0xff] %v228
  %416 = vst [vmem:[#allocation5 + $0x88] sm:$0xff] %v230
  %417 = vst [vmem:[#allocation5 + $0x90] sm:$0xff] %v341
  %418 = vst [vmem:[#allocation5 + $0x98] sm:$0xff] %v343
  %419 = vst [vmem:[#allocation5 + $0xa0] sm:$0xff] %v232
  %420 = vst [vmem:[#allocation5 + $0xa8] sm:$0xff] %v234
  %421 = vst [vmem:[#allocation5 + $0xb0] sm:$0xff] %v345
  %422 = vst [vmem:[#allocation5 + $0xb8] sm:$0xff] %v347
  %423 = vst [vmem:[#allocation5 + $0xc0] sm:$0xff] %v238
  %424 = vst [vmem:[#allocation5 + $0xc8] sm:$0xff] %v240
  %425 = vst [vmem:[#allocation5 + $0xd0] sm:$0xff] %v351
  %426 = vst [vmem:[#allocation5 + $0xd8] sm:$0xff] %v353
  %427 = vst [vmem:[#allocation5 + $0xe0] sm:$0xff] %v242
  %428 = vst [vmem:[#allocation5 + $0xe8] sm:$0xff] %v244
  %429 = vst [vmem:[#allocation5 + $0xf0] sm:$0xff] %v355
  %430 = vst [vmem:[#allocation5 + $0xf8] sm:$0xff] %v357
  %431 = vst [vmem:[#allocation5 + $0x100] sm:$0xff] %v248
  %432 = vst [vmem:[#allocation5 + $0x108] sm:$0xff] %v250
  %433 = vst [vmem:[#allocation5 + $0x110] sm:$0xff] %v361
  %434 = vst [vmem:[#allocation5 + $0x118] sm:$0xff] %v363
  %435 = vst [vmem:[#allocation5 + $0x120] sm:$0xff] %v252
  %436 = vst [vmem:[#allocation5 + $0x128] sm:$0xff] %v254
  %437 = vst [vmem:[#allocation5 + $0x130] sm:$0xff] %v365
  %438 = vst [vmem:[#allocation5 + $0x138] sm:$0xff] %v367
  %439 = vst [vmem:[#allocation5 + $0x140] sm:$0xff] %v258
  %440 = vst [vmem:[#allocation5 + $0x148] sm:$0xff] %v260
  %441 = vst [vmem:[#allocation5 + $0x150] sm:$0xff] %v371
  %442 = vst [vmem:[#allocation5 + $0x158] sm:$0xff] %v373
  %443 = vst [vmem:[#allocation5 + $0x160] sm:$0xff] %v262
  %444 = vst [vmem:[#allocation5 + $0x168] sm:$0xff] %v264
  %445 = vst [vmem:[#allocation5 + $0x170] sm:$0xff] %v375
  %446 = vst [vmem:[#allocation5 + $0x178] sm:$0xff] %v377
  %447 = vst [vmem:[#allocation5 + $0x180] sm:$0xff] %v268
  %448 = vst [vmem:[#allocation5 + $0x188] sm:$0xff] %v270
  %449 = vst [vmem:[#allocation5 + $0x190] sm:$0xff] %v381
  %450 = vst [vmem:[#allocation5 + $0x198] sm:$0xff] %v383
  %451 = vst [vmem:[#allocation5 + $0x1a0] sm:$0xff] %v272
  %452 = vst [vmem:[#allocation5 + $0x1a8] sm:$0xff] %v274
  %453 = vst [vmem:[#allocation5 + $0x1b0] sm:$0xff] %v385
  %454 = vst [vmem:[#allocation5 + $0x1b8] sm:$0xff] %v387
  %455 = vst [vmem:[#allocation5 + $0x1c0] sm:$0xff] %v278
  %456 = vst [vmem:[#allocation5 + $0x1c8] sm:$0xff] %v280
  %457 = vst [vmem:[#allocation5 + $0x1d0] sm:$0xff] %v391
  %458 = vst [vmem:[#allocation5 + $0x1d8] sm:$0xff] %v393
  %459 = vst [vmem:[#allocation5 + $0x1e0] sm:$0xff] %v282
  %460 = vst [vmem:[#allocation5 + $0x1e8] sm:$0xff] %v284
  %461 = vst [vmem:[#allocation5 + $0x1f0] sm:$0xff] %v395
  %462 = vst [vmem:[#allocation5 + $0x1f8] sm:$0xff] %v397
  %v463 = vld [vmem:[%s1] sm:$0xff]
  %v464 = vld [vmem:[%s1 + $0x8] sm:$0xff]
  %v465 = vld [vmem:[%s3] sm:$0xff]
  %v466 = vld [vmem:[%s3 + $0x8] sm:$0xff]
  %v467 = vld [vmem:[%s3 + $0x10] sm:$0xff]
  %v468 = vld [vmem:[%s3 + $0x18] sm:$0xff]
  %v469 = vld [vmem:[%s3 + $0x20] sm:$0xff]
  %v470 = vld [vmem:[%s3 + $0x28] sm:$0xff]
  %v471 = vld [vmem:[%s3 + $0x30] sm:$0xff]
  %v472 = vld [vmem:[%s3 + $0x38] sm:$0xff]
  %v473 = vld [vmem:[%s3 + $0x40] sm:$0xff]
  %v474 = vld [vmem:[%s3 + $0x48] sm:$0xff]
  %v475 = vld [vmem:[%s3 + $0x50] sm:$0xff]
  %v476 = vld [vmem:[%s3 + $0x58] sm:$0xff]
  %v477 = vld [vmem:[%s3 + $0x60] sm:$0xff]
  %v478 = vld [vmem:[%s3 + $0x68] sm:$0xff]
  %v479 = vld [vmem:[%s3 + $0x70] sm:$0xff]
  %v480 = vld [vmem:[%s3 + $0x78] sm:$0xff]
  %v481 = vld [vmem:[%s3 + $0x80] sm:$0xff]
  %v482 = vld [vmem:[%s3 + $0x88] sm:$0xff]
  %v483 = vld [vmem:[%s3 + $0x90] sm:$0xff]
  %v484 = vld [vmem:[%s3 + $0x98] sm:$0xff]
  %v485 = vld [vmem:[%s3 + $0xa0] sm:$0xff]
  %v486 = vld [vmem:[%s3 + $0xa8] sm:$0xff]
  %v487 = vld [vmem:[%s3 + $0xb0] sm:$0xff]
  %v488 = vld [vmem:[%s3 + $0xb8] sm:$0xff]
  %v489 = vld [vmem:[%s3 + $0xc0] sm:$0xff]
  %v490 = vld [vmem:[%s3 + $0xc8] sm:$0xff]
  %v491 = vld [vmem:[%s3 + $0xd0] sm:$0xff]
  %v492 = vld [vmem:[%s3 + $0xd8] sm:$0xff]
  %v493 = vld [vmem:[%s3 + $0xe0] sm:$0xff]
  %v494 = vld [vmem:[%s3 + $0xe8] sm:$0xff]
  %v495 = vld [vmem:[%s3 + $0xf0] sm:$0xff]
  %v496 = vld [vmem:[%s3 + $0xf8] sm:$0xff]
  %v497 = vld [vmem:[#allocation2] sm:$0xff]
  %v498 = vld [vmem:[#allocation2 + $0x8] sm:$0xff]
  %v499 = vld [vmem:[#allocation3] sm:$0xff]
  %v500 = vld [vmem:[#allocation3 + $0x8] sm:$0xff]
  %v501 = vld [vmem:[#allocation4] sm:$0xff]
  %v502 = vld [vmem:[#allocation4 + $0x8] sm:$0xff]
  %s503 = smul.u32 0, 8
  %v504 = vpack.c.bf16 %v498, %v497
  %s505 = smul.u32 0, 4
  %s506 = smul.addr %s505, 8
  %s507 = scalar_lea.vmem [#allocation5], %s506
  %v508 = vld [vmem:[%s507] sm:$0xff]
  %v509 = vld [vmem:[%s507 + $0x8] sm:$0xff]
  %v510 = vld [vmem:[%s507 + $0x10] sm:$0xff]
  %v511 = vld [vmem:[%s507 + $0x18] sm:$0xff]
  %v512 = vld [vmem:[%s507 + $0x20] sm:$0xff]
  %v513 = vld [vmem:[%s507 + $0x28] sm:$0xff]
  %v514 = vld [vmem:[%s507 + $0x30] sm:$0xff]
  %v515 = vld [vmem:[%s507 + $0x38] sm:$0xff]
  %v548 = vunpack.c.l.b16 %v465
  %v549 = vunpack.c.h.b16 %v465
  %v550 = vunpack.c.l.b16 %v466
  %v551 = vunpack.c.h.b16 %v466
  %v552 = vunpack.c.l.b16 %v467
  %v553 = vunpack.c.h.b16 %v467
  %v554 = vunpack.c.l.b16 %v468
  %v555 = vunpack.c.h.b16 %v468
  %v556 = vunpack.c.l.b16 %v469
  %v557 = vunpack.c.h.b16 %v469
  %v558 = vunpack.c.l.b16 %v470
  %v559 = vunpack.c.h.b16 %v470
  %v560 = vunpack.c.l.b16 %v471
  %v561 = vunpack.c.h.b16 %v471
  %v562 = vunpack.c.l.b16 %v472
  %v563 = vunpack.c.h.b16 %v472
  %v564 = vunpack.c.l.b16 %v473
  %v565 = vunpack.c.h.b16 %v473
  %v566 = vunpack.c.l.b16 %v474
  %v567 = vunpack.c.h.b16 %v474
  %v568 = vunpack.c.l.b16 %v475
  %v569 = vunpack.c.h.b16 %v475
  %v570 = vunpack.c.l.b16 %v476
  %v571 = vunpack.c.h.b16 %v476
  %v572 = vunpack.c.l.b16 %v477
  %v573 = vunpack.c.h.b16 %v477
  %v574 = vunpack.c.l.b16 %v478
  %v575 = vunpack.c.h.b16 %v478
  %v576 = vunpack.c.l.b16 %v479
  %v577 = vunpack.c.h.b16 %v479
  %v578 = vunpack.c.l.b16 %v480
  %v579 = vunpack.c.h.b16 %v480
  %v580 = vunpack.c.l.b16 %v481
  %v581 = vunpack.c.h.b16 %v481
  %v582 = vunpack.c.l.b16 %v482
  %v583 = vunpack.c.h.b16 %v482
  %v584 = vunpack.c.l.b16 %v483
  %v585 = vunpack.c.h.b16 %v483
  %v586 = vunpack.c.l.b16 %v484
  %v587 = vunpack.c.h.b16 %v484
  %v588 = vunpack.c.l.b16 %v485
  %v589 = vunpack.c.h.b16 %v485
  %v590 = vunpack.c.l.b16 %v486
  %v591 = vunpack.c.h.b16 %v486
  %v592 = vunpack.c.l.b16 %v487
  %v593 = vunpack.c.h.b16 %v487
  %v594 = vunpack.c.l.b16 %v488
  %v595 = vunpack.c.h.b16 %v488
  %v596 = vunpack.c.l.b16 %v489
  %v597 = vunpack.c.h.b16 %v489
  %v598 = vunpack.c.l.b16 %v490
  %v599 = vunpack.c.h.b16 %v490
  %v600 = vunpack.c.l.b16 %v491
  %v601 = vunpack.c.h.b16 %v491
  %v602 = vunpack.c.l.b16 %v492
  %v603 = vunpack.c.h.b16 %v492
  %v604 = vunpack.c.l.b16 %v493
  %v605 = vunpack.c.h.b16 %v493
  %v606 = vunpack.c.l.b16 %v494
  %v607 = vunpack.c.h.b16 %v494
  %v608 = vunpack.c.l.b16 %v495
  %v609 = vunpack.c.h.b16 %v495
  %v610 = vunpack.c.l.b16 %v496
  %v611 = vunpack.c.h.b16 %v496
  %v612 = vpack.c.b16 %v552, %v548
  %v613 = vpack.c.b16 %v553, %v549
  %v614 = vpack.c.b16 %v554, %v550
  %v615 = vpack.c.b16 %v555, %v551
  %v616 = vpack.c.b16 %v560, %v556
  %v617 = vpack.c.b16 %v561, %v557
  %v618 = vpack.c.b16 %v562, %v558
  %v619 = vpack.c.b16 %v563, %v559
  %v620 = vpack.c.b16 %v568, %v564
  %v621 = vpack.c.b16 %v569, %v565
  %v622 = vpack.c.b16 %v570, %v566
  %v623 = vpack.c.b16 %v571, %v567
  %v624 = vpack.c.b16 %v576, %v572
  %v625 = vpack.c.b16 %v577, %v573
  %v626 = vpack.c.b16 %v578, %v574
  %v627 = vpack.c.b16 %v579, %v575
  %v628 = vpack.c.b16 %v584, %v580
  %v629 = vpack.c.b16 %v585, %v581
  %v630 = vpack.c.b16 %v586, %v582
  %v631 = vpack.c.b16 %v587, %v583
  %v632 = vpack.c.b16 %v592, %v588
  %v633 = vpack.c.b16 %v593, %v589
  %v634 = vpack.c.b16 %v594, %v590
  %v635 = vpack.c.b16 %v595, %v591
  %v636 = vpack.c.b16 %v600, %v596
  %v637 = vpack.c.b16 %v601, %v597
  %v638 = vpack.c.b16 %v602, %v598
  %v639 = vpack.c.b16 %v603, %v599
  %v640 = vpack.c.b16 %v608, %v604
  %v641 = vpack.c.b16 %v609, %v605
  %v642 = vpack.c.b16 %v610, %v606
  %v643 = vpack.c.b16 %v611, %v607
  %676 = vmatprep.subr.bf16.mxu0 %v641
  %677 = vmatpush1.bf16.msra.mxu0 %v640
  %678 = vmatprep.subr.bf16.mxu0 %v637
  %679 = vmatpush1.bf16.msra.mxu0 %v636
  %680 = vmatprep.subr.bf16.mxu0 %v633
  %681 = vmatpush1.bf16.msra.mxu0 %v632
  %682 = vmatprep.subr.bf16.mxu0 %v629
  %683 = vmatpush1.bf16.msra.mxu0 %v628
  %684 = vmatprep.subr.bf16.mxu0 %v625
  %685 = vmatpush1.bf16.msra.mxu0 %v624
  %686 = vmatprep.subr.bf16.mxu0 %v621
  %687 = vmatpush1.bf16.msra.mxu0 %v620
  %688 = vmatprep.subr.bf16.mxu0 %v617
  %689 = vmatpush1.bf16.msra.mxu0 %v616
  %690 = vmatprep.subr.bf16.mxu0 %v613
  %691 = vmatpush1.bf16.msra.mxu0 %v612
  %692 = vmatprep.subr.bf16.mxu0 0
  %693 = vmatpush2.bf16.msra.mxu0 0
  %694 = vmatprep.subr.bf16.mxu0 0
  %695 = vmatpush2.bf16.msra.mxu0 0
  %696 = vmatprep.subr.bf16.mxu0 0
  %697 = vmatpush2.bf16.msra.mxu0 0
  %698 = vmatprep.subr.bf16.mxu0 0
  %699 = vmatpush2.bf16.msra.mxu0 0
  %700 = vmatprep.subr.bf16.mxu0 0
  %701 = vmatpush2.bf16.msra.mxu0 0
  %702 = vmatprep.subr.bf16.mxu0 0
  %703 = vmatpush2.bf16.msra.mxu0 0
  %704 = vmatprep.subr.bf16.mxu0 0
  %705 = vmatpush2.bf16.msra.mxu0 0
  %706 = vmatprep.subr.bf16.mxu0 0
  %707 = vmatpush2.bf16.msra.mxu0 0
  %708 = vmatprep.mubr.bf16.mxu0 0
  %709 = vmatmul.mubr.bf16.gmra.mxu0 %v504
  %v710 = vpop.f32.mrf.mxu0
  %v711 = vadd.f32 %v508, %v710
  %v712 = vpop.f32.mrf.mxu0
  %v713 = vadd.f32 %v509, %v712
  %v714 = vpop.f32.mrf.mxu0
  %v715 = vadd.f32 %v512, %v714
  %v716 = vpop.f32.mrf.mxu0
  %v717 = vadd.f32 %v513, %v716
  %718 = vdwg.mxu0
  %719 = vmatprep.subr.bf16.mxu0 %v643
  %720 = vmatpush1.bf16.msra.mxu0 %v642
  %721 = vmatprep.subr.bf16.mxu0 %v639
  %722 = vmatpush1.bf16.msra.mxu0 %v638
  %723 = vmatprep.subr.bf16.mxu0 %v635
  %724 = vmatpush1.bf16.msra.mxu0 %v634
  %725 = vmatprep.subr.bf16.mxu0 %v631
  %726 = vmatpush1.bf16.msra.mxu0 %v630
  %727 = vmatprep.subr.bf16.mxu0 %v627
  %728 = vmatpush1.bf16.msra.mxu0 %v626
  %729 = vmatprep.subr.bf16.mxu0 %v623
  %730 = vmatpush1.bf16.msra.mxu0 %v622
  %731 = vmatprep.subr.bf16.mxu0 %v619
  %732 = vmatpush1.bf16.msra.mxu0 %v618
  %733 = vmatprep.subr.bf16.mxu0 %v615
  %734 = vmatpush1.bf16.msra.mxu0 %v614
  %735 = vmatprep.subr.bf16.mxu0 0
  %736 = vmatpush2.bf16.msra.mxu0 0
  %737 = vmatprep.subr.bf16.mxu0 0
  %738 = vmatpush2.bf16.msra.mxu0 0
  %739 = vmatprep.subr.bf16.mxu0 0
  %740 = vmatpush2.bf16.msra.mxu0 0
  %741 = vmatprep.subr.bf16.mxu0 0
  %742 = vmatpush2.bf16.msra.mxu0 0
  %743 = vmatprep.subr.bf16.mxu0 0
  %744 = vmatpush2.bf16.msra.mxu0 0
  %745 = vmatprep.subr.bf16.mxu0 0
  %746 = vmatpush2.bf16.msra.mxu0 0
  %747 = vmatprep.subr.bf16.mxu0 0
  %748 = vmatpush2.bf16.msra.mxu0 0
  %749 = vmatprep.subr.bf16.mxu0 0
  %750 = vmatpush2.bf16.msra.mxu0 0
  %751 = vmatprep.mubr.bf16.mxu0 0
  %752 = vmatmul.mubr.bf16.gmra.mxu0 %v504
  %v753 = vpop.f32.mrf.mxu0
  %v754 = vadd.f32 %v510, %v753
  %v755 = vpop.f32.mrf.mxu0
  %v756 = vadd.f32 %v511, %v755
  %v757 = vpop.f32.mrf.mxu0
  %v758 = vadd.f32 %v514, %v757
  %v759 = vpop.f32.mrf.mxu0
  %v760 = vadd.f32 %v515, %v759
  %761 = vdwg.mxu0
  %v762 = vmul.f32 %v711, 0.5
  %v763 = vmul.f32 %v713, 0.5
  %v764 = vmul.f32 %v754, 0.5
  %v765 = vmul.f32 %v715, 0.5
  %v766 = vmul.f32 %v717, 0.5
  %v767 = vmul.f32 %v758, 0.5
  %v768 = vtanh.pop %v762
  %v769 = vtanh.pop %v763
  %v770 = vtanh.pop %v764
  %v771 = vtanh.pop %v765
  %v772 = vtanh.pop %v766
  %v773 = vtanh.pop %v767
  %v774 = vadd.f32 %v768, 1.0
  %v775 = vadd.f32 %v769, 1.0
  %v776 = vadd.f32 %v770, 1.0
  %v777 = vadd.f32 %v771, 1.0
  %v778 = vadd.f32 %v772, 1.0
  %v779 = vadd.f32 %v773, 1.0
  %v780 = vmul.f32 %v774, 0.5
  %v781 = vmul.f32 %v775, 0.5
  %v782 = vmul.f32 %v776, 0.5
  %v783 = vmul.f32 %v777, 0.5
  %v784 = vmul.f32 %v778, 0.5
  %v785 = vmul.f32 %v779, 0.5
  %v786 = vtanh.pop %v756
  %v787 = vtanh.pop %v760
  %v788 = vmul.f32 %v781, %v499
  %v789 = vmul.f32 %v784, %v500
  %v790 = vmul.f32 %v780, %v786
  %v791 = vmul.f32 %v783, %v787
  %v792 = vadd.f32 %v788, %v790
  %v793 = vadd.f32 %v789, %v791
  %v794 = vtanh.pop %v792
  %v795 = vtanh.pop %v793
  %v796 = vmul.f32 %v782, %v794
  %v797 = vmul.f32 %v785, %v795
  %p798 = scmp.lt.s32.totalorder %s503, 8
  %s799 = scalar_select %p798, 0.0, -inf
  %v800 = vstv %s503
  %vm801 = vcmp.lt.s32.totalorder %v800, %v463
  %vm802 = vcmp.lt.s32.totalorder %v800, %v464
  %v803 = vsel %vm801, 1, 0
  %v804 = vsel %vm802, 1, 0
  %805 = vset.pattern.permute.xlu0 0
  %806 = vperm.xlu0 %805, %v803
  %v807 = vpop.permute.xlu0 %806
  %808 = vset.pattern.permute.xlu0 0
  %809 = vperm.xlu0 %808, %v804
  %v810 = vpop.permute.xlu0 %809
  %vm811 = vcmp.eq.s32.totalorder %v807, 1
  %vm812 = vcmp.eq.s32.totalorder %v810, 1
  %v813 = vstv %s799
  %v814 = vsel %vm811, %v796, %v813
  %v815 = vsel %vm812, %v797, %v813
  %v816 = vmax.f32 %v501, %v814
  %v817 = vmax.f32 %v502, %v815
  %s818 = sadd.s32 %s503, 1
  %v819 = vpack.c.bf16 %v797, %v796
  %s820 = smul.u32 2, 4
  %s821 = smul.addr %s820, 8
  %s822 = scalar_lea.vmem [#allocation5], %s821
  %v823 = vld [vmem:[%s822] sm:$0xff]
  %v824 = vld [vmem:[%s822 + $0x8] sm:$0xff]
  %v825 = vld [vmem:[%s822 + $0x10] sm:$0xff]
  %v826 = vld [vmem:[%s822 + $0x18] sm:$0xff]
  %v827 = vld [vmem:[%s822 + $0x20] sm:$0xff]
  %v828 = vld [vmem:[%s822 + $0x28] sm:$0xff]
  %v829 = vld [vmem:[%s822 + $0x30] sm:$0xff]
  %v830 = vld [vmem:[%s822 + $0x38] sm:$0xff]
  %831 = vmatprep.subr.bf16.mxu0 %v641
  %832 = vmatpush1.bf16.msra.mxu0 %v640
  %833 = vmatprep.subr.bf16.mxu0 %v637
  %834 = vmatpush1.bf16.msra.mxu0 %v636
  %835 = vmatprep.subr.bf16.mxu0 %v633
  %836 = vmatpush1.bf16.msra.mxu0 %v632
  %837 = vmatprep.subr.bf16.mxu0 %v629
  %838 = vmatpush1.bf16.msra.mxu0 %v628
  %839 = vmatprep.subr.bf16.mxu0 %v625
  %840 = vmatpush1.bf16.msra.mxu0 %v624
  %841 = vmatprep.subr.bf16.mxu0 %v621
  %842 = vmatpush1.bf16.msra.mxu0 %v620
  %843 = vmatprep.subr.bf16.mxu0 %v617
  %844 = vmatpush1.bf16.msra.mxu0 %v616
  %845 = vmatprep.subr.bf16.mxu0 %v613
  %846 = vmatpush1.bf16.msra.mxu0 %v612
  %847 = vmatprep.subr.bf16.mxu0 0
  %848 = vmatpush2.bf16.msra.mxu0 0
  %849 = vmatprep.subr.bf16.mxu0 0
  %850 = vmatpush2.bf16.msra.mxu0 0
  %851 = vmatprep.subr.bf16.mxu0 0
  %852 = vmatpush2.bf16.msra.mxu0 0
  %853 = vmatprep.subr.bf16.mxu0 0
  %854 = vmatpush2.bf16.msra.mxu0 0
  %855 = vmatprep.subr.bf16.mxu0 0
  %856 = vmatpush2.bf16.msra.mxu0 0
  %857 = vmatprep.subr.bf16.mxu0 0
  %858 = vmatpush2.bf16.msra.mxu0 0
  %859 = vmatprep.subr.bf16.mxu0 0
  %860 = vmatpush2.bf16.msra.mxu0 0
  %861 = vmatprep.subr.bf16.mxu0 0
  %862 = vmatpush2.bf16.msra.mxu0 0
  %863 = vmatprep.mubr.bf16.mxu0 0
  %864 = vmatmul.mubr.bf16.gmra.mxu0 %v819
  %v865 = vpop.f32.mrf.mxu0
  %v866 = vadd.f32 %v823, %v865
  %v867 = vpop.f32.mrf.mxu0
  %v868 = vadd.f32 %v824, %v867
  %v869 = vpop.f32.mrf.mxu0
  %v870 = vadd.f32 %v827, %v869
  %v871 = vpop.f32.mrf.mxu0
  %v872 = vadd.f32 %v828, %v871
  %873 = vdwg.mxu0
  %874 = vmatprep.subr.bf16.mxu0 %v643
  %875 = vmatpush1.bf16.msra.mxu0 %v642
  %876 = vmatprep.subr.bf16.mxu0 %v639
  %877 = vmatpush1.bf16.msra.mxu0 %v638
  %878 = vmatprep.subr.bf16.mxu0 %v635
  %879 = vmatpush1.bf16.msra.mxu0 %v634
  %880 = vmatprep.subr.bf16.mxu0 %v631
  %881 = vmatpush1.bf16.msra.mxu0 %v630
  %882 = vmatprep.subr.bf16.mxu0 %v627
  %883 = vmatpush1.bf16.msra.mxu0 %v626
  %884 = vmatprep.subr.bf16.mxu0 %v623
  %885 = vmatpush1.bf16.msra.mxu0 %v622
  %886 = vmatprep.subr.bf16.mxu0 %v619
  %887 = vmatpush1.bf16.msra.mxu0 %v618
  %888 = vmatprep.subr.bf16.mxu0 %v615
  %889 = vmatpush1.bf16.msra.mxu0 %v614
  %890 = vmatprep.subr.bf16.mxu0 0
  %891 = vmatpush2.bf16.msra.mxu0 0
  %892 = vmatprep.subr.bf16.mxu0 0
  %893 = vmatpush2.bf16.msra.mxu0 0
  %894 = vmatprep.subr.bf16.mxu0 0
  %895 = vmatpush2.bf16.msra.mxu0 0
  %896 = vmatprep.subr.bf16.mxu0 0
  %897 = vmatpush2.bf16.msra.mxu0 0
  %898 = vmatprep.subr.bf16.mxu0 0
  %899 = vmatpush2.bf16.msra.mxu0 0
  %900 = vmatprep.subr.bf16.mxu0 0
  %901 = vmatpush2.bf16.msra.mxu0 0
  %902 = vmatprep.subr.bf16.mxu0 0
  %903 = vmatpush2.bf16.msra.mxu0 0
  %904 = vmatprep.subr.bf16.mxu0 0
  %905 = vmatpush2.bf16.msra.mxu0 0
  %906 = vmatprep.mubr.bf16.mxu0 0
  %907 = vmatmul.mubr.bf16.gmra.mxu0 %v819
  %v908 = vpop.f32.mrf.mxu0
  %v909 = vadd.f32 %v825, %v908
  %v910 = vpop.f32.mrf.mxu0
  %v911 = vadd.f32 %v826, %v910
  %v912 = vpop.f32.mrf.mxu0
  %v913 = vadd.f32 %v829, %v912
  %v914 = vpop.f32.mrf.mxu0
  %v915 = vadd.f32 %v830, %v914
  %916 = vdwg.mxu0
  %v917 = vmul.f32 %v866, 0.5
  %v918 = vmul.f32 %v868, 0.5
  %v919 = vmul.f32 %v909, 0.5
  %v920 = vmul.f32 %v870, 0.5
  %v921 = vmul.f32 %v872, 0.5
  %v922 = vmul.f32 %v913, 0.5
  %v923 = vtanh.pop %v917
  %v924 = vtanh.pop %v918
  %v925 = vtanh.pop %v919
  %v926 = vtanh.pop %v920
  %v927 = vtanh.pop %v921
  %v928 = vtanh.pop %v922
  %v929 = vadd.f32 %v923, 1.0
  %v930 = vadd.f32 %v924, 1.0
  %v931 = vadd.f32 %v925, 1.0
  %v932 = vadd.f32 %v926, 1.0
  %v933 = vadd.f32 %v927, 1.0
  %v934 = vadd.f32 %v928, 1.0
  %v935 = vmul.f32 %v929, 0.5
  %v936 = vmul.f32 %v930, 0.5
  %v937 = vmul.f32 %v931, 0.5
  %v938 = vmul.f32 %v932, 0.5
  %v939 = vmul.f32 %v933, 0.5
  %v940 = vmul.f32 %v934, 0.5
  %v941 = vtanh.pop %v911
  %v942 = vtanh.pop %v915
  %v943 = vmul.f32 %v936, %v792
  %v944 = vmul.f32 %v939, %v793
  %v945 = vmul.f32 %v935, %v941
  %v946 = vmul.f32 %v938, %v942
  %v947 = vadd.f32 %v943, %v945
  %v948 = vadd.f32 %v944, %v946
  %v949 = vtanh.pop %v947
  %v950 = vtanh.pop %v948
  %v951 = vmul.f32 %v937, %v949
  %v952 = vmul.f32 %v940, %v950
  %p953 = scmp.lt.s32.totalorder %s818, 8
  %s954 = scalar_select %p953, 0.0, -inf
  %v955 = vstv %s818
  %vm956 = vcmp.lt.s32.totalorder %v955, %v463
  %vm957 = vcmp.lt.s32.totalorder %v955, %v464
  %v958 = vsel %vm956, 1, 0
  %v959 = vsel %vm957, 1, 0
  %960 = vset.pattern.permute.xlu0 0
  %961 = vperm.xlu0 %960, %v958
  %v962 = vpop.permute.xlu0 %961
  %963 = vset.pattern.permute.xlu0 0
  %964 = vperm.xlu0 %963, %v959
  %v965 = vpop.permute.xlu0 %964
  %vm966 = vcmp.eq.s32.totalorder %v962, 1
  %vm967 = vcmp.eq.s32.totalorder %v965, 1
  %v968 = vstv %s954
  %v969 = vsel %vm966, %v951, %v968
  %v970 = vsel %vm967, %v952, %v968
  %v971 = vmax.f32 %v816, %v969
  %v972 = vmax.f32 %v817, %v970
  %s973 = sadd.s32 %s503, 2
  %v974 = vpack.c.bf16 %v952, %v951
  %s975 = smul.u32 4, 4
  %s976 = smul.addr %s975, 8
  %s977 = scalar_lea.vmem [#allocation5], %s976
  %v978 = vld [vmem:[%s977] sm:$0xff]
  %v979 = vld [vmem:[%s977 + $0x8] sm:$0xff]
  %v980 = vld [vmem:[%s977 + $0x10] sm:$0xff]
  %v981 = vld [vmem:[%s977 + $0x18] sm:$0xff]
  %v982 = vld [vmem:[%s977 + $0x20] sm:$0xff]
  %v983 = vld [vmem:[%s977 + $0x28] sm:$0xff]
  %v984 = vld [vmem:[%s977 + $0x30] sm:$0xff]
  %v985 = vld [vmem:[%s977 + $0x38] sm:$0xff]
  %986 = vmatprep.subr.bf16.mxu0 %v641
  %987 = vmatpush1.bf16.msra.mxu0 %v640
  %988 = vmatprep.subr.bf16.mxu0 %v637
  %989 = vmatpush1.bf16.msra.mxu0 %v636
  %990 = vmatprep.subr.bf16.mxu0 %v633
  %991 = vmatpush1.bf16.msra.mxu0 %v632
  %992 = vmatprep.subr.bf16.mxu0 %v629
  %993 = vmatpush1.bf16.msra.mxu0 %v628
  %994 = vmatprep.subr.bf16.mxu0 %v625
  %995 = vmatpush1.bf16.msra.mxu0 %v624
  %996 = vmatprep.subr.bf16.mxu0 %v621
  %997 = vmatpush1.bf16.msra.mxu0 %v620
  %998 = vmatprep.subr.bf16.mxu0 %v617
  %999 = vmatpush1.bf16.msra.mxu0 %v616
  %1000 = vmatprep.subr.bf16.mxu0 %v613
  %1001 = vmatpush1.bf16.msra.mxu0 %v612
  %1002 = vmatprep.subr.bf16.mxu0 0
  %1003 = vmatpush2.bf16.msra.mxu0 0
  %1004 = vmatprep.subr.bf16.mxu0 0
  %1005 = vmatpush2.bf16.msra.mxu0 0
  %1006 = vmatprep.subr.bf16.mxu0 0
  %1007 = vmatpush2.bf16.msra.mxu0 0
  %1008 = vmatprep.subr.bf16.mxu0 0
  %1009 = vmatpush2.bf16.msra.mxu0 0
  %1010 = vmatprep.subr.bf16.mxu0 0
  %1011 = vmatpush2.bf16.msra.mxu0 0
  %1012 = vmatprep.subr.bf16.mxu0 0
  %1013 = vmatpush2.bf16.msra.mxu0 0
  %1014 = vmatprep.subr.bf16.mxu0 0
  %1015 = vmatpush2.bf16.msra.mxu0 0
  %1016 = vmatprep.subr.bf16.mxu0 0
  %1017 = vmatpush2.bf16.msra.mxu0 0
  %1018 = vmatprep.mubr.bf16.mxu0 0
  %1019 = vmatmul.mubr.bf16.gmra.mxu0 %v974
  %v1020 = vpop.f32.mrf.mxu0
  %v1021 = vadd.f32 %v978, %v1020
  %v1022 = vpop.f32.mrf.mxu0
  %v1023 = vadd.f32 %v979, %v1022
  %v1024 = vpop.f32.mrf.mxu0
  %v1025 = vadd.f32 %v982, %v1024
  %v1026 = vpop.f32.mrf.mxu0
  %v1027 = vadd.f32 %v983, %v1026
  %1028 = vdwg.mxu0
  %1029 = vmatprep.subr.bf16.mxu0 %v643
  %1030 = vmatpush1.bf16.msra.mxu0 %v642
  %1031 = vmatprep.subr.bf16.mxu0 %v639
  %1032 = vmatpush1.bf16.msra.mxu0 %v638
  %1033 = vmatprep.subr.bf16.mxu0 %v635
  %1034 = vmatpush1.bf16.msra.mxu0 %v634
  %1035 = vmatprep.subr.bf16.mxu0 %v631
  %1036 = vmatpush1.bf16.msra.mxu0 %v630
  %1037 = vmatprep.subr.bf16.mxu0 %v627
  %1038 = vmatpush1.bf16.msra.mxu0 %v626
  %1039 = vmatprep.subr.bf16.mxu0 %v623
  %1040 = vmatpush1.bf16.msra.mxu0 %v622
  %1041 = vmatprep.subr.bf16.mxu0 %v619
  %1042 = vmatpush1.bf16.msra.mxu0 %v618
  %1043 = vmatprep.subr.bf16.mxu0 %v615
  %1044 = vmatpush1.bf16.msra.mxu0 %v614
  %1045 = vmatprep.subr.bf16.mxu0 0
  %1046 = vmatpush2.bf16.msra.mxu0 0
  %1047 = vmatprep.subr.bf16.mxu0 0
  %1048 = vmatpush2.bf16.msra.mxu0 0
  %1049 = vmatprep.subr.bf16.mxu0 0
  %1050 = vmatpush2.bf16.msra.mxu0 0
  %1051 = vmatprep.subr.bf16.mxu0 0
  %1052 = vmatpush2.bf16.msra.mxu0 0
  %1053 = vmatprep.subr.bf16.mxu0 0
  %1054 = vmatpush2.bf16.msra.mxu0 0
  %1055 = vmatprep.subr.bf16.mxu0 0
  %1056 = vmatpush2.bf16.msra.mxu0 0
  %1057 = vmatprep.subr.bf16.mxu0 0
  %1058 = vmatpush2.bf16.msra.mxu0 0
  %1059 = vmatprep.subr.bf16.mxu0 0
  %1060 = vmatpush2.bf16.msra.mxu0 0
  %1061 = vmatprep.mubr.bf16.mxu0 0
  %1062 = vmatmul.mubr.bf16.gmra.mxu0 %v974
  %v1063 = vpop.f32.mrf.mxu0
  %v1064 = vadd.f32 %v980, %v1063
  %v1065 = vpop.f32.mrf.mxu0
  %v1066 = vadd.f32 %v981, %v1065
  %v1067 = vpop.f32.mrf.mxu0
  %v1068 = vadd.f32 %v984, %v1067
  %v1069 = vpop.f32.mrf.mxu0
  %v1070 = vadd.f32 %v985, %v1069
  %1071 = vdwg.mxu0
  %v1072 = vmul.f32 %v1021, 0.5
  %v1073 = vmul.f32 %v1023, 0.5
  %v1074 = vmul.f32 %v1064, 0.5
  %v1075 = vmul.f32 %v1025, 0.5
  %v1076 = vmul.f32 %v1027, 0.5
  %v1077 = vmul.f32 %v1068, 0.5
  %v1078 = vtanh.pop %v1072
  %v1079 = vtanh.pop %v1073
  %v1080 = vtanh.pop %v1074
  %v1081 = vtanh.pop %v1075
  %v1082 = vtanh.pop %v1076
  %v1083 = vtanh.pop %v1077
  %v1084 = vadd.f32 %v1078, 1.0
  %v1085 = vadd.f32 %v1079, 1.0
  %v1086 = vadd.f32 %v1080, 1.0
  %v1087 = vadd.f32 %v1081, 1.0
  %v1088 = vadd.f32 %v1082, 1.0
  %v1089 = vadd.f32 %v1083, 1.0
  %v1090 = vmul.f32 %v1084, 0.5
  %v1091 = vmul.f32 %v1085, 0.5
  %v1092 = vmul.f32 %v1086, 0.5
  %v1093 = vmul.f32 %v1087, 0.5
  %v1094 = vmul.f32 %v1088, 0.5
  %v1095 = vmul.f32 %v1089, 0.5
  %v1096 = vtanh.pop %v1066
  %v1097 = vtanh.pop %v1070
  %v1098 = vmul.f32 %v1091, %v947
  %v1099 = vmul.f32 %v1094, %v948
  %v1100 = vmul.f32 %v1090, %v1096
  %v1101 = vmul.f32 %v1093, %v1097
  %v1102 = vadd.f32 %v1098, %v1100
  %v1103 = vadd.f32 %v1099, %v1101
  %v1104 = vtanh.pop %v1102
  %v1105 = vtanh.pop %v1103
  %v1106 = vmul.f32 %v1092, %v1104
  %v1107 = vmul.f32 %v1095, %v1105
  %p1108 = scmp.lt.s32.totalorder %s973, 8
  %s1109 = scalar_select %p1108, 0.0, -inf
  %v1110 = vstv %s973
  %vm1111 = vcmp.lt.s32.totalorder %v1110, %v463
  %vm1112 = vcmp.lt.s32.totalorder %v1110, %v464
  %v1113 = vsel %vm1111, 1, 0
  %v1114 = vsel %vm1112, 1, 0
  %1115 = vset.pattern.permute.xlu0 0
  %1116 = vperm.xlu0 %1115, %v1113
  %v1117 = vpop.permute.xlu0 %1116
  %1118 = vset.pattern.permute.xlu0 0
  %1119 = vperm.xlu0 %1118, %v1114
  %v1120 = vpop.permute.xlu0 %1119
  %vm1121 = vcmp.eq.s32.totalorder %v1117, 1
  %vm1122 = vcmp.eq.s32.totalorder %v1120, 1
  %v1123 = vstv %s1109
  %v1124 = vsel %vm1121, %v1106, %v1123
  %v1125 = vsel %vm1122, %v1107, %v1123
  %v1126 = vmax.f32 %v971, %v1124
  %v1127 = vmax.f32 %v972, %v1125
  %s1128 = sadd.s32 %s503, 3
  %v1129 = vpack.c.bf16 %v1107, %v1106
  %s1130 = smul.u32 6, 4
  %s1131 = smul.addr %s1130, 8
  %s1132 = scalar_lea.vmem [#allocation5], %s1131
  %v1133 = vld [vmem:[%s1132] sm:$0xff]
  %v1134 = vld [vmem:[%s1132 + $0x8] sm:$0xff]
  %v1135 = vld [vmem:[%s1132 + $0x10] sm:$0xff]
  %v1136 = vld [vmem:[%s1132 + $0x18] sm:$0xff]
  %v1137 = vld [vmem:[%s1132 + $0x20] sm:$0xff]
  %v1138 = vld [vmem:[%s1132 + $0x28] sm:$0xff]
  %v1139 = vld [vmem:[%s1132 + $0x30] sm:$0xff]
  %v1140 = vld [vmem:[%s1132 + $0x38] sm:$0xff]
  %1141 = vmatprep.subr.bf16.mxu0 %v641
  %1142 = vmatpush1.bf16.msra.mxu0 %v640
  %1143 = vmatprep.subr.bf16.mxu0 %v637
  %1144 = vmatpush1.bf16.msra.mxu0 %v636
  %1145 = vmatprep.subr.bf16.mxu0 %v633
  %1146 = vmatpush1.bf16.msra.mxu0 %v632
  %1147 = vmatprep.subr.bf16.mxu0 %v629
  %1148 = vmatpush1.bf16.msra.mxu0 %v628
  %1149 = vmatprep.subr.bf16.mxu0 %v625
  %1150 = vmatpush1.bf16.msra.mxu0 %v624
  %1151 = vmatprep.subr.bf16.mxu0 %v621
  %1152 = vmatpush1.bf16.msra.mxu0 %v620
  %1153 = vmatprep.subr.bf16.mxu0 %v617
  %1154 = vmatpush1.bf16.msra.mxu0 %v616
  %1155 = vmatprep.subr.bf16.mxu0 %v613
  %1156 = vmatpush1.bf16.msra.mxu0 %v612
  %1157 = vmatprep.subr.bf16.mxu0 0
  %1158 = vmatpush2.bf16.msra.mxu0 0
  %1159 = vmatprep.subr.bf16.mxu0 0
  %1160 = vmatpush2.bf16.msra.mxu0 0
  %1161 = vmatprep.subr.bf16.mxu0 0
  %1162 = vmatpush2.bf16.msra.mxu0 0
  %1163 = vmatprep.subr.bf16.mxu0 0
  %1164 = vmatpush2.bf16.msra.mxu0 0
  %1165 = vmatprep.subr.bf16.mxu0 0
  %1166 = vmatpush2.bf16.msra.mxu0 0
  %1167 = vmatprep.subr.bf16.mxu0 0
  %1168 = vmatpush2.bf16.msra.mxu0 0
  %1169 = vmatprep.subr.bf16.mxu0 0
  %1170 = vmatpush2.bf16.msra.mxu0 0
  %1171 = vmatprep.subr.bf16.mxu0 0
  %1172 = vmatpush2.bf16.msra.mxu0 0
  %1173 = vmatprep.mubr.bf16.mxu0 0
  %1174 = vmatmul.mubr.bf16.gmra.mxu0 %v1129
  %v1175 = vpop.f32.mrf.mxu0
  %v1176 = vadd.f32 %v1133, %v1175
  %v1177 = vpop.f32.mrf.mxu0
  %v1178 = vadd.f32 %v1134, %v1177
  %v1179 = vpop.f32.mrf.mxu0
  %v1180 = vadd.f32 %v1137, %v1179
  %v1181 = vpop.f32.mrf.mxu0
  %v1182 = vadd.f32 %v1138, %v1181
  %1183 = vdwg.mxu0
  %1184 = vmatprep.subr.bf16.mxu0 %v643
  %1185 = vmatpush1.bf16.msra.mxu0 %v642
  %1186 = vmatprep.subr.bf16.mxu0 %v639
  %1187 = vmatpush1.bf16.msra.mxu0 %v638
  %1188 = vmatprep.subr.bf16.mxu0 %v635
  %1189 = vmatpush1.bf16.msra.mxu0 %v634
  %1190 = vmatprep.subr.bf16.mxu0 %v631
  %1191 = vmatpush1.bf16.msra.mxu0 %v630
  %1192 = vmatprep.subr.bf16.mxu0 %v627
  %1193 = vmatpush1.bf16.msra.mxu0 %v626
  %1194 = vmatprep.subr.bf16.mxu0 %v623
  %1195 = vmatpush1.bf16.msra.mxu0 %v622
  %1196 = vmatprep.subr.bf16.mxu0 %v619
  %1197 = vmatpush1.bf16.msra.mxu0 %v618
  %1198 = vmatprep.subr.bf16.mxu0 %v615
  %1199 = vmatpush1.bf16.msra.mxu0 %v614
  %1200 = vmatprep.subr.bf16.mxu0 0
  %1201 = vmatpush2.bf16.msra.mxu0 0
  %1202 = vmatprep.subr.bf16.mxu0 0
  %1203 = vmatpush2.bf16.msra.mxu0 0
  %1204 = vmatprep.subr.bf16.mxu0 0
  %1205 = vmatpush2.bf16.msra.mxu0 0
  %1206 = vmatprep.subr.bf16.mxu0 0
  %1207 = vmatpush2.bf16.msra.mxu0 0
  %1208 = vmatprep.subr.bf16.mxu0 0
  %1209 = vmatpush2.bf16.msra.mxu0 0
  %1210 = vmatprep.subr.bf16.mxu0 0
  %1211 = vmatpush2.bf16.msra.mxu0 0
  %1212 = vmatprep.subr.bf16.mxu0 0
  %1213 = vmatpush2.bf16.msra.mxu0 0
  %1214 = vmatprep.subr.bf16.mxu0 0
  %1215 = vmatpush2.bf16.msra.mxu0 0
  %1216 = vmatprep.mubr.bf16.mxu0 0
  %1217 = vmatmul.mubr.bf16.gmra.mxu0 %v1129
  %v1218 = vpop.f32.mrf.mxu0
  %v1219 = vadd.f32 %v1135, %v1218
  %v1220 = vpop.f32.mrf.mxu0
  %v1221 = vadd.f32 %v1136, %v1220
  %v1222 = vpop.f32.mrf.mxu0
  %v1223 = vadd.f32 %v1139, %v1222
  %v1224 = vpop.f32.mrf.mxu0
  %v1225 = vadd.f32 %v1140, %v1224
  %1226 = vdwg.mxu0
  %v1227 = vmul.f32 %v1176, 0.5
  %v1228 = vmul.f32 %v1178, 0.5
  %v1229 = vmul.f32 %v1219, 0.5
  %v1230 = vmul.f32 %v1180, 0.5
  %v1231 = vmul.f32 %v1182, 0.5
  %v1232 = vmul.f32 %v1223, 0.5
  %v1233 = vtanh.pop %v1227
  %v1234 = vtanh.pop %v1228
  %v1235 = vtanh.pop %v1229
  %v1236 = vtanh.pop %v1230
  %v1237 = vtanh.pop %v1231
  %v1238 = vtanh.pop %v1232
  %v1239 = vadd.f32 %v1233, 1.0
  %v1240 = vadd.f32 %v1234, 1.0
  %v1241 = vadd.f32 %v1235, 1.0
  %v1242 = vadd.f32 %v1236, 1.0
  %v1243 = vadd.f32 %v1237, 1.0
  %v1244 = vadd.f32 %v1238, 1.0
  %v1245 = vmul.f32 %v1239, 0.5
  %v1246 = vmul.f32 %v1240, 0.5
  %v1247 = vmul.f32 %v1241, 0.5
  %v1248 = vmul.f32 %v1242, 0.5
  %v1249 = vmul.f32 %v1243, 0.5
  %v1250 = vmul.f32 %v1244, 0.5
  %v1251 = vtanh.pop %v1221
  %v1252 = vtanh.pop %v1225
  %v1253 = vmul.f32 %v1246, %v1102
  %v1254 = vmul.f32 %v1249, %v1103
  %v1255 = vmul.f32 %v1245, %v1251
  %v1256 = vmul.f32 %v1248, %v1252
  %v1257 = vadd.f32 %v1253, %v1255
  %v1258 = vadd.f32 %v1254, %v1256
  %v1259 = vtanh.pop %v1257
  %v1260 = vtanh.pop %v1258
  %v1261 = vmul.f32 %v1247, %v1259
  %v1262 = vmul.f32 %v1250, %v1260
  %p1263 = scmp.lt.s32.totalorder %s1128, 8
  %s1264 = scalar_select %p1263, 0.0, -inf
  %v1265 = vstv %s1128
  %vm1266 = vcmp.lt.s32.totalorder %v1265, %v463
  %vm1267 = vcmp.lt.s32.totalorder %v1265, %v464
  %v1268 = vsel %vm1266, 1, 0
  %v1269 = vsel %vm1267, 1, 0
  %1270 = vset.pattern.permute.xlu0 0
  %1271 = vperm.xlu0 %1270, %v1268
  %v1272 = vpop.permute.xlu0 %1271
  %1273 = vset.pattern.permute.xlu0 0
  %1274 = vperm.xlu0 %1273, %v1269
  %v1275 = vpop.permute.xlu0 %1274
  %vm1276 = vcmp.eq.s32.totalorder %v1272, 1
  %vm1277 = vcmp.eq.s32.totalorder %v1275, 1
  %v1278 = vstv %s1264
  %v1279 = vsel %vm1276, %v1261, %v1278
  %v1280 = vsel %vm1277, %v1262, %v1278
  %v1281 = vmax.f32 %v1126, %v1279
  %v1282 = vmax.f32 %v1127, %v1280
  %s1283 = sadd.s32 %s503, 4
  %v1284 = vpack.c.bf16 %v1262, %v1261
  %s1285 = smul.u32 8, 4
  %s1286 = smul.addr %s1285, 8
  %s1287 = scalar_lea.vmem [#allocation5], %s1286
  %v1288 = vld [vmem:[%s1287] sm:$0xff]
  %v1289 = vld [vmem:[%s1287 + $0x8] sm:$0xff]
  %v1290 = vld [vmem:[%s1287 + $0x10] sm:$0xff]
  %v1291 = vld [vmem:[%s1287 + $0x18] sm:$0xff]
  %v1292 = vld [vmem:[%s1287 + $0x20] sm:$0xff]
  %v1293 = vld [vmem:[%s1287 + $0x28] sm:$0xff]
  %v1294 = vld [vmem:[%s1287 + $0x30] sm:$0xff]
  %v1295 = vld [vmem:[%s1287 + $0x38] sm:$0xff]
  %1296 = vmatprep.subr.bf16.mxu0 %v641
  %1297 = vmatpush1.bf16.msra.mxu0 %v640
  %1298 = vmatprep.subr.bf16.mxu0 %v637
  %1299 = vmatpush1.bf16.msra.mxu0 %v636
  %1300 = vmatprep.subr.bf16.mxu0 %v633
  %1301 = vmatpush1.bf16.msra.mxu0 %v632
  %1302 = vmatprep.subr.bf16.mxu0 %v629
  %1303 = vmatpush1.bf16.msra.mxu0 %v628
  %1304 = vmatprep.subr.bf16.mxu0 %v625
  %1305 = vmatpush1.bf16.msra.mxu0 %v624
  %1306 = vmatprep.subr.bf16.mxu0 %v621
  %1307 = vmatpush1.bf16.msra.mxu0 %v620
  %1308 = vmatprep.subr.bf16.mxu0 %v617
  %1309 = vmatpush1.bf16.msra.mxu0 %v616
  %1310 = vmatprep.subr.bf16.mxu0 %v613
  %1311 = vmatpush1.bf16.msra.mxu0 %v612
  %1312 = vmatprep.subr.bf16.mxu0 0
  %1313 = vmatpush2.bf16.msra.mxu0 0
  %1314 = vmatprep.subr.bf16.mxu0 0
  %1315 = vmatpush2.bf16.msra.mxu0 0
  %1316 = vmatprep.subr.bf16.mxu0 0
  %1317 = vmatpush2.bf16.msra.mxu0 0
  %1318 = vmatprep.subr.bf16.mxu0 0
  %1319 = vmatpush2.bf16.msra.mxu0 0
  %1320 = vmatprep.subr.bf16.mxu0 0
  %1321 = vmatpush2.bf16.msra.mxu0 0
  %1322 = vmatprep.subr.bf16.mxu0 0
  %1323 = vmatpush2.bf16.msra.mxu0 0
  %1324 = vmatprep.subr.bf16.mxu0 0
  %1325 = vmatpush2.bf16.msra.mxu0 0
  %1326 = vmatprep.subr.bf16.mxu0 0
  %1327 = vmatpush2.bf16.msra.mxu0 0
  %1328 = vmatprep.mubr.bf16.mxu0 0
  %1329 = vmatmul.mubr.bf16.gmra.mxu0 %v1284
  %v1330 = vpop.f32.mrf.mxu0
  %v1331 = vadd.f32 %v1288, %v1330
  %v1332 = vpop.f32.mrf.mxu0
  %v1333 = vadd.f32 %v1289, %v1332
  %v1334 = vpop.f32.mrf.mxu0
  %v1335 = vadd.f32 %v1292, %v1334
  %v1336 = vpop.f32.mrf.mxu0
  %v1337 = vadd.f32 %v1293, %v1336
  %1338 = vdwg.mxu0
  %1339 = vmatprep.subr.bf16.mxu0 %v643
  %1340 = vmatpush1.bf16.msra.mxu0 %v642
  %1341 = vmatprep.subr.bf16.mxu0 %v639
  %1342 = vmatpush1.bf16.msra.mxu0 %v638
  %1343 = vmatprep.subr.bf16.mxu0 %v635
  %1344 = vmatpush1.bf16.msra.mxu0 %v634
  %1345 = vmatprep.subr.bf16.mxu0 %v631
  %1346 = vmatpush1.bf16.msra.mxu0 %v630
  %1347 = vmatprep.subr.bf16.mxu0 %v627
  %1348 = vmatpush1.bf16.msra.mxu0 %v626
  %1349 = vmatprep.subr.bf16.mxu0 %v623
  %1350 = vmatpush1.bf16.msra.mxu0 %v622
  %1351 = vmatprep.subr.bf16.mxu0 %v619
  %1352 = vmatpush1.bf16.msra.mxu0 %v618
  %1353 = vmatprep.subr.bf16.mxu0 %v615
  %1354 = vmatpush1.bf16.msra.mxu0 %v614
  %1355 = vmatprep.subr.bf16.mxu0 0
  %1356 = vmatpush2.bf16.msra.mxu0 0
  %1357 = vmatprep.subr.bf16.mxu0 0
  %1358 = vmatpush2.bf16.msra.mxu0 0
  %1359 = vmatprep.subr.bf16.mxu0 0
  %1360 = vmatpush2.bf16.msra.mxu0 0
  %1361 = vmatprep.subr.bf16.mxu0 0
  %1362 = vmatpush2.bf16.msra.mxu0 0
  %1363 = vmatprep.subr.bf16.mxu0 0
  %1364 = vmatpush2.bf16.msra.mxu0 0
  %1365 = vmatprep.subr.bf16.mxu0 0
  %1366 = vmatpush2.bf16.msra.mxu0 0
  %1367 = vmatprep.subr.bf16.mxu0 0
  %1368 = vmatpush2.bf16.msra.mxu0 0
  %1369 = vmatprep.subr.bf16.mxu0 0
  %1370 = vmatpush2.bf16.msra.mxu0 0
  %1371 = vmatprep.mubr.bf16.mxu0 0
  %1372 = vmatmul.mubr.bf16.gmra.mxu0 %v1284
  %v1373 = vpop.f32.mrf.mxu0
  %v1374 = vadd.f32 %v1290, %v1373
  %v1375 = vpop.f32.mrf.mxu0
  %v1376 = vadd.f32 %v1291, %v1375
  %v1377 = vpop.f32.mrf.mxu0
  %v1378 = vadd.f32 %v1294, %v1377
  %v1379 = vpop.f32.mrf.mxu0
  %v1380 = vadd.f32 %v1295, %v1379
  %1381 = vdwg.mxu0
  %v1382 = vmul.f32 %v1331, 0.5
  %v1383 = vmul.f32 %v1333, 0.5
  %v1384 = vmul.f32 %v1374, 0.5
  %v1385 = vmul.f32 %v1335, 0.5
  %v1386 = vmul.f32 %v1337, 0.5
  %v1387 = vmul.f32 %v1378, 0.5
  %v1388 = vtanh.pop %v1382
  %v1389 = vtanh.pop %v1383
  %v1390 = vtanh.pop %v1384
  %v1391 = vtanh.pop %v1385
  %v1392 = vtanh.pop %v1386
  %v1393 = vtanh.pop %v1387
  %v1394 = vadd.f32 %v1388, 1.0
  %v1395 = vadd.f32 %v1389, 1.0
  %v1396 = vadd.f32 %v1390, 1.0
  %v1397 = vadd.f32 %v1391, 1.0
  %v1398 = vadd.f32 %v1392, 1.0
  %v1399 = vadd.f32 %v1393, 1.0
  %v1400 = vmul.f32 %v1394, 0.5
  %v1401 = vmul.f32 %v1395, 0.5
  %v1402 = vmul.f32 %v1396, 0.5
  %v1403 = vmul.f32 %v1397, 0.5
  %v1404 = vmul.f32 %v1398, 0.5
  %v1405 = vmul.f32 %v1399, 0.5
  %v1406 = vtanh.pop %v1376
  %v1407 = vtanh.pop %v1380
  %v1408 = vmul.f32 %v1401, %v1257
  %v1409 = vmul.f32 %v1404, %v1258
  %v1410 = vmul.f32 %v1400, %v1406
  %v1411 = vmul.f32 %v1403, %v1407
  %v1412 = vadd.f32 %v1408, %v1410
  %v1413 = vadd.f32 %v1409, %v1411
  %v1414 = vtanh.pop %v1412
  %v1415 = vtanh.pop %v1413
  %v1416 = vmul.f32 %v1402, %v1414
  %v1417 = vmul.f32 %v1405, %v1415
  %p1418 = scmp.lt.s32.totalorder %s1283, 8
  %s1419 = scalar_select %p1418, 0.0, -inf
  %v1420 = vstv %s1283
  %vm1421 = vcmp.lt.s32.totalorder %v1420, %v463
  %vm1422 = vcmp.lt.s32.totalorder %v1420, %v464
  %v1423 = vsel %vm1421, 1, 0
  %v1424 = vsel %vm1422, 1, 0
  %1425 = vset.pattern.permute.xlu0 0
  %1426 = vperm.xlu0 %1425, %v1423
  %v1427 = vpop.permute.xlu0 %1426
  %1428 = vset.pattern.permute.xlu0 0
  %1429 = vperm.xlu0 %1428, %v1424
  %v1430 = vpop.permute.xlu0 %1429
  %vm1431 = vcmp.eq.s32.totalorder %v1427, 1
  %vm1432 = vcmp.eq.s32.totalorder %v1430, 1
  %v1433 = vstv %s1419
  %v1434 = vsel %vm1431, %v1416, %v1433
  %v1435 = vsel %vm1432, %v1417, %v1433
  %v1436 = vmax.f32 %v1281, %v1434
  %v1437 = vmax.f32 %v1282, %v1435
  %s1438 = sadd.s32 %s503, 5
  %v1439 = vpack.c.bf16 %v1417, %v1416
  %s1440 = smul.u32 10, 4
  %s1441 = smul.addr %s1440, 8
  %s1442 = scalar_lea.vmem [#allocation5], %s1441
  %v1443 = vld [vmem:[%s1442] sm:$0xff]
  %v1444 = vld [vmem:[%s1442 + $0x8] sm:$0xff]
  %v1445 = vld [vmem:[%s1442 + $0x10] sm:$0xff]
  %v1446 = vld [vmem:[%s1442 + $0x18] sm:$0xff]
  %v1447 = vld [vmem:[%s1442 + $0x20] sm:$0xff]
  %v1448 = vld [vmem:[%s1442 + $0x28] sm:$0xff]
  %v1449 = vld [vmem:[%s1442 + $0x30] sm:$0xff]
  %v1450 = vld [vmem:[%s1442 + $0x38] sm:$0xff]
  %1451 = vmatprep.subr.bf16.mxu0 %v641
  %1452 = vmatpush1.bf16.msra.mxu0 %v640
  %1453 = vmatprep.subr.bf16.mxu0 %v637
  %1454 = vmatpush1.bf16.msra.mxu0 %v636
  %1455 = vmatprep.subr.bf16.mxu0 %v633
  %1456 = vmatpush1.bf16.msra.mxu0 %v632
  %1457 = vmatprep.subr.bf16.mxu0 %v629
  %1458 = vmatpush1.bf16.msra.mxu0 %v628
  %1459 = vmatprep.subr.bf16.mxu0 %v625
  %1460 = vmatpush1.bf16.msra.mxu0 %v624
  %1461 = vmatprep.subr.bf16.mxu0 %v621
  %1462 = vmatpush1.bf16.msra.mxu0 %v620
  %1463 = vmatprep.subr.bf16.mxu0 %v617
  %1464 = vmatpush1.bf16.msra.mxu0 %v616
  %1465 = vmatprep.subr.bf16.mxu0 %v613
  %1466 = vmatpush1.bf16.msra.mxu0 %v612
  %1467 = vmatprep.subr.bf16.mxu0 0
  %1468 = vmatpush2.bf16.msra.mxu0 0
  %1469 = vmatprep.subr.bf16.mxu0 0
  %1470 = vmatpush2.bf16.msra.mxu0 0
  %1471 = vmatprep.subr.bf16.mxu0 0
  %1472 = vmatpush2.bf16.msra.mxu0 0
  %1473 = vmatprep.subr.bf16.mxu0 0
  %1474 = vmatpush2.bf16.msra.mxu0 0
  %1475 = vmatprep.subr.bf16.mxu0 0
  %1476 = vmatpush2.bf16.msra.mxu0 0
  %1477 = vmatprep.subr.bf16.mxu0 0
  %1478 = vmatpush2.bf16.msra.mxu0 0
  %1479 = vmatprep.subr.bf16.mxu0 0
  %1480 = vmatpush2.bf16.msra.mxu0 0
  %1481 = vmatprep.subr.bf16.mxu0 0
  %1482 = vmatpush2.bf16.msra.mxu0 0
  %1483 = vmatprep.mubr.bf16.mxu0 0
  %1484 = vmatmul.mubr.bf16.gmra.mxu0 %v1439
  %v1485 = vpop.f32.mrf.mxu0
  %v1486 = vadd.f32 %v1443, %v1485
  %v1487 = vpop.f32.mrf.mxu0
  %v1488 = vadd.f32 %v1444, %v1487
  %v1489 = vpop.f32.mrf.mxu0
  %v1490 = vadd.f32 %v1447, %v1489
  %v1491 = vpop.f32.mrf.mxu0
  %v1492 = vadd.f32 %v1448, %v1491
  %1493 = vdwg.mxu0
  %1494 = vmatprep.subr.bf16.mxu0 %v643
  %1495 = vmatpush1.bf16.msra.mxu0 %v642
  %1496 = vmatprep.subr.bf16.mxu0 %v639
  %1497 = vmatpush1.bf16.msra.mxu0 %v638
  %1498 = vmatprep.subr.bf16.mxu0 %v635
  %1499 = vmatpush1.bf16.msra.mxu0 %v634
  %1500 = vmatprep.subr.bf16.mxu0 %v631
  %1501 = vmatpush1.bf16.msra.mxu0 %v630
  %1502 = vmatprep.subr.bf16.mxu0 %v627
  %1503 = vmatpush1.bf16.msra.mxu0 %v626
  %1504 = vmatprep.subr.bf16.mxu0 %v623
  %1505 = vmatpush1.bf16.msra.mxu0 %v622
  %1506 = vmatprep.subr.bf16.mxu0 %v619
  %1507 = vmatpush1.bf16.msra.mxu0 %v618
  %1508 = vmatprep.subr.bf16.mxu0 %v615
  %1509 = vmatpush1.bf16.msra.mxu0 %v614
  %1510 = vmatprep.subr.bf16.mxu0 0
  %1511 = vmatpush2.bf16.msra.mxu0 0
  %1512 = vmatprep.subr.bf16.mxu0 0
  %1513 = vmatpush2.bf16.msra.mxu0 0
  %1514 = vmatprep.subr.bf16.mxu0 0
  %1515 = vmatpush2.bf16.msra.mxu0 0
  %1516 = vmatprep.subr.bf16.mxu0 0
  %1517 = vmatpush2.bf16.msra.mxu0 0
  %1518 = vmatprep.subr.bf16.mxu0 0
  %1519 = vmatpush2.bf16.msra.mxu0 0
  %1520 = vmatprep.subr.bf16.mxu0 0
  %1521 = vmatpush2.bf16.msra.mxu0 0
  %1522 = vmatprep.subr.bf16.mxu0 0
  %1523 = vmatpush2.bf16.msra.mxu0 0
  %1524 = vmatprep.subr.bf16.mxu0 0
  %1525 = vmatpush2.bf16.msra.mxu0 0
  %1526 = vmatprep.mubr.bf16.mxu0 0
  %1527 = vmatmul.mubr.bf16.gmra.mxu0 %v1439
  %v1528 = vpop.f32.mrf.mxu0
  %v1529 = vadd.f32 %v1445, %v1528
  %v1530 = vpop.f32.mrf.mxu0
  %v1531 = vadd.f32 %v1446, %v1530
  %v1532 = vpop.f32.mrf.mxu0
  %v1533 = vadd.f32 %v1449, %v1532
  %v1534 = vpop.f32.mrf.mxu0
  %v1535 = vadd.f32 %v1450, %v1534
  %1536 = vdwg.mxu0
  %v1537 = vmul.f32 %v1486, 0.5
  %v1538 = vmul.f32 %v1488, 0.5
  %v1539 = vmul.f32 %v1529, 0.5
  %v1540 = vmul.f32 %v1490, 0.5
  %v1541 = vmul.f32 %v1492, 0.5
  %v1542 = vmul.f32 %v1533, 0.5
  %v1543 = vtanh.pop %v1537
  %v1544 = vtanh.pop %v1538
  %v1545 = vtanh.pop %v1539
  %v1546 = vtanh.pop %v1540
  %v1547 = vtanh.pop %v1541
  %v1548 = vtanh.pop %v1542
  %v1549 = vadd.f32 %v1543, 1.0
  %v1550 = vadd.f32 %v1544, 1.0
  %v1551 = vadd.f32 %v1545, 1.0
  %v1552 = vadd.f32 %v1546, 1.0
  %v1553 = vadd.f32 %v1547, 1.0
  %v1554 = vadd.f32 %v1548, 1.0
  %v1555 = vmul.f32 %v1549, 0.5
  %v1556 = vmul.f32 %v1550, 0.5
  %v1557 = vmul.f32 %v1551, 0.5
  %v1558 = vmul.f32 %v1552, 0.5
  %v1559 = vmul.f32 %v1553, 0.5
  %v1560 = vmul.f32 %v1554, 0.5
  %v1561 = vtanh.pop %v1531
  %v1562 = vtanh.pop %v1535
  %v1563 = vmul.f32 %v1556, %v1412
  %v1564 = vmul.f32 %v1559, %v1413
  %v1565 = vmul.f32 %v1555, %v1561
  %v1566 = vmul.f32 %v1558, %v1562
  %v1567 = vadd.f32 %v1563, %v1565
  %v1568 = vadd.f32 %v1564, %v1566
  %v1569 = vtanh.pop %v1567
  %v1570 = vtanh.pop %v1568
  %v1571 = vmul.f32 %v1557, %v1569
  %v1572 = vmul.f32 %v1560, %v1570
  %p1573 = scmp.lt.s32.totalorder %s1438, 8
  %s1574 = scalar_select %p1573, 0.0, -inf
  %v1575 = vstv %s1438
  %vm1576 = vcmp.lt.s32.totalorder %v1575, %v463
  %vm1577 = vcmp.lt.s32.totalorder %v1575, %v464
  %v1578 = vsel %vm1576, 1, 0
  %v1579 = vsel %vm1577, 1, 0
  %1580 = vset.pattern.permute.xlu0 0
  %1581 = vperm.xlu0 %1580, %v1578
  %v1582 = vpop.permute.xlu0 %1581
  %1583 = vset.pattern.permute.xlu0 0
  %1584 = vperm.xlu0 %1583, %v1579
  %v1585 = vpop.permute.xlu0 %1584
  %vm1586 = vcmp.eq.s32.totalorder %v1582, 1
  %vm1587 = vcmp.eq.s32.totalorder %v1585, 1
  %v1588 = vstv %s1574
  %v1589 = vsel %vm1586, %v1571, %v1588
  %v1590 = vsel %vm1587, %v1572, %v1588
  %v1591 = vmax.f32 %v1436, %v1589
  %v1592 = vmax.f32 %v1437, %v1590
  %s1593 = sadd.s32 %s503, 6
  %v1594 = vpack.c.bf16 %v1572, %v1571
  %s1595 = smul.u32 12, 4
  %s1596 = smul.addr %s1595, 8
  %s1597 = scalar_lea.vmem [#allocation5], %s1596
  %v1598 = vld [vmem:[%s1597] sm:$0xff]
  %v1599 = vld [vmem:[%s1597 + $0x8] sm:$0xff]
  %v1600 = vld [vmem:[%s1597 + $0x10] sm:$0xff]
  %v1601 = vld [vmem:[%s1597 + $0x18] sm:$0xff]
  %v1602 = vld [vmem:[%s1597 + $0x20] sm:$0xff]
  %v1603 = vld [vmem:[%s1597 + $0x28] sm:$0xff]
  %v1604 = vld [vmem:[%s1597 + $0x30] sm:$0xff]
  %v1605 = vld [vmem:[%s1597 + $0x38] sm:$0xff]
  %1606 = vmatprep.subr.bf16.mxu0 %v641
  %1607 = vmatpush1.bf16.msra.mxu0 %v640
  %1608 = vmatprep.subr.bf16.mxu0 %v637
  %1609 = vmatpush1.bf16.msra.mxu0 %v636
  %1610 = vmatprep.subr.bf16.mxu0 %v633
  %1611 = vmatpush1.bf16.msra.mxu0 %v632
  %1612 = vmatprep.subr.bf16.mxu0 %v629
  %1613 = vmatpush1.bf16.msra.mxu0 %v628
  %1614 = vmatprep.subr.bf16.mxu0 %v625
  %1615 = vmatpush1.bf16.msra.mxu0 %v624
  %1616 = vmatprep.subr.bf16.mxu0 %v621
  %1617 = vmatpush1.bf16.msra.mxu0 %v620
  %1618 = vmatprep.subr.bf16.mxu0 %v617
  %1619 = vmatpush1.bf16.msra.mxu0 %v616
  %1620 = vmatprep.subr.bf16.mxu0 %v613
  %1621 = vmatpush1.bf16.msra.mxu0 %v612
  %1622 = vmatprep.subr.bf16.mxu0 0
  %1623 = vmatpush2.bf16.msra.mxu0 0
  %1624 = vmatprep.subr.bf16.mxu0 0
  %1625 = vmatpush2.bf16.msra.mxu0 0
  %1626 = vmatprep.subr.bf16.mxu0 0
  %1627 = vmatpush2.bf16.msra.mxu0 0
  %1628 = vmatprep.subr.bf16.mxu0 0
  %1629 = vmatpush2.bf16.msra.mxu0 0
  %1630 = vmatprep.subr.bf16.mxu0 0
  %1631 = vmatpush2.bf16.msra.mxu0 0
  %1632 = vmatprep.subr.bf16.mxu0 0
  %1633 = vmatpush2.bf16.msra.mxu0 0
  %1634 = vmatprep.subr.bf16.mxu0 0
  %1635 = vmatpush2.bf16.msra.mxu0 0
  %1636 = vmatprep.subr.bf16.mxu0 0
  %1637 = vmatpush2.bf16.msra.mxu0 0
  %1638 = vmatprep.mubr.bf16.mxu0 0
  %1639 = vmatmul.mubr.bf16.gmra.mxu0 %v1594
  %v1640 = vpop.f32.mrf.mxu0
  %v1641 = vadd.f32 %v1598, %v1640
  %v1642 = vpop.f32.mrf.mxu0
  %v1643 = vadd.f32 %v1599, %v1642
  %v1644 = vpop.f32.mrf.mxu0
  %v1645 = vadd.f32 %v1602, %v1644
  %v1646 = vpop.f32.mrf.mxu0
  %v1647 = vadd.f32 %v1603, %v1646
  %1648 = vdwg.mxu0
  %1649 = vmatprep.subr.bf16.mxu0 %v643
  %1650 = vmatpush1.bf16.msra.mxu0 %v642
  %1651 = vmatprep.subr.bf16.mxu0 %v639
  %1652 = vmatpush1.bf16.msra.mxu0 %v638
  %1653 = vmatprep.subr.bf16.mxu0 %v635
  %1654 = vmatpush1.bf16.msra.mxu0 %v634
  %1655 = vmatprep.subr.bf16.mxu0 %v631
  %1656 = vmatpush1.bf16.msra.mxu0 %v630
  %1657 = vmatprep.subr.bf16.mxu0 %v627
  %1658 = vmatpush1.bf16.msra.mxu0 %v626
  %1659 = vmatprep.subr.bf16.mxu0 %v623
  %1660 = vmatpush1.bf16.msra.mxu0 %v622
  %1661 = vmatprep.subr.bf16.mxu0 %v619
  %1662 = vmatpush1.bf16.msra.mxu0 %v618
  %1663 = vmatprep.subr.bf16.mxu0 %v615
  %1664 = vmatpush1.bf16.msra.mxu0 %v614
  %1665 = vmatprep.subr.bf16.mxu0 0
  %1666 = vmatpush2.bf16.msra.mxu0 0
  %1667 = vmatprep.subr.bf16.mxu0 0
  %1668 = vmatpush2.bf16.msra.mxu0 0
  %1669 = vmatprep.subr.bf16.mxu0 0
  %1670 = vmatpush2.bf16.msra.mxu0 0
  %1671 = vmatprep.subr.bf16.mxu0 0
  %1672 = vmatpush2.bf16.msra.mxu0 0
  %1673 = vmatprep.subr.bf16.mxu0 0
  %1674 = vmatpush2.bf16.msra.mxu0 0
  %1675 = vmatprep.subr.bf16.mxu0 0
  %1676 = vmatpush2.bf16.msra.mxu0 0
  %1677 = vmatprep.subr.bf16.mxu0 0
  %1678 = vmatpush2.bf16.msra.mxu0 0
  %1679 = vmatprep.subr.bf16.mxu0 0
  %1680 = vmatpush2.bf16.msra.mxu0 0
  %1681 = vmatprep.mubr.bf16.mxu0 0
  %1682 = vmatmul.mubr.bf16.gmra.mxu0 %v1594
  %v1683 = vpop.f32.mrf.mxu0
  %v1684 = vadd.f32 %v1600, %v1683
  %v1685 = vpop.f32.mrf.mxu0
  %v1686 = vadd.f32 %v1601, %v1685
  %v1687 = vpop.f32.mrf.mxu0
  %v1688 = vadd.f32 %v1604, %v1687
  %v1689 = vpop.f32.mrf.mxu0
  %v1690 = vadd.f32 %v1605, %v1689
  %1691 = vdwg.mxu0
  %v1692 = vmul.f32 %v1641, 0.5
  %v1693 = vmul.f32 %v1643, 0.5
  %v1694 = vmul.f32 %v1684, 0.5
  %v1695 = vmul.f32 %v1645, 0.5
  %v1696 = vmul.f32 %v1647, 0.5
  %v1697 = vmul.f32 %v1688, 0.5
  %v1698 = vtanh.pop %v1692
  %v1699 = vtanh.pop %v1693
  %v1700 = vtanh.pop %v1694
  %v1701 = vtanh.pop %v1695
  %v1702 = vtanh.pop %v1696
  %v1703 = vtanh.pop %v1697
  %v1704 = vadd.f32 %v1698, 1.0
  %v1705 = vadd.f32 %v1699, 1.0
  %v1706 = vadd.f32 %v1700, 1.0
  %v1707 = vadd.f32 %v1701, 1.0
  %v1708 = vadd.f32 %v1702, 1.0
  %v1709 = vadd.f32 %v1703, 1.0
  %v1710 = vmul.f32 %v1704, 0.5
  %v1711 = vmul.f32 %v1705, 0.5
  %v1712 = vmul.f32 %v1706, 0.5
  %v1713 = vmul.f32 %v1707, 0.5
  %v1714 = vmul.f32 %v1708, 0.5
  %v1715 = vmul.f32 %v1709, 0.5
  %v1716 = vtanh.pop %v1686
  %v1717 = vtanh.pop %v1690
  %v1718 = vmul.f32 %v1711, %v1567
  %v1719 = vmul.f32 %v1714, %v1568
  %v1720 = vmul.f32 %v1710, %v1716
  %v1721 = vmul.f32 %v1713, %v1717
  %v1722 = vadd.f32 %v1718, %v1720
  %v1723 = vadd.f32 %v1719, %v1721
  %v1724 = vtanh.pop %v1722
  %v1725 = vtanh.pop %v1723
  %v1726 = vmul.f32 %v1712, %v1724
  %v1727 = vmul.f32 %v1715, %v1725
  %p1728 = scmp.lt.s32.totalorder %s1593, 8
  %s1729 = scalar_select %p1728, 0.0, -inf
  %v1730 = vstv %s1593
  %vm1731 = vcmp.lt.s32.totalorder %v1730, %v463
  %vm1732 = vcmp.lt.s32.totalorder %v1730, %v464
  %v1733 = vsel %vm1731, 1, 0
  %v1734 = vsel %vm1732, 1, 0
  %1735 = vset.pattern.permute.xlu0 0
  %1736 = vperm.xlu0 %1735, %v1733
  %v1737 = vpop.permute.xlu0 %1736
  %1738 = vset.pattern.permute.xlu0 0
  %1739 = vperm.xlu0 %1738, %v1734
  %v1740 = vpop.permute.xlu0 %1739
  %vm1741 = vcmp.eq.s32.totalorder %v1737, 1
  %vm1742 = vcmp.eq.s32.totalorder %v1740, 1
  %v1743 = vstv %s1729
  %v1744 = vsel %vm1741, %v1726, %v1743
  %v1745 = vsel %vm1742, %v1727, %v1743
  %v1746 = vmax.f32 %v1591, %v1744
  %v1747 = vmax.f32 %v1592, %v1745
  %s1748 = sadd.s32 %s503, 7
  %v1749 = vpack.c.bf16 %v1727, %v1726
  %s1750 = smul.u32 14, 4
  %s1751 = smul.addr %s1750, 8
  %s1752 = scalar_lea.vmem [#allocation5], %s1751
  %v1753 = vld [vmem:[%s1752] sm:$0xff]
  %v1754 = vld [vmem:[%s1752 + $0x8] sm:$0xff]
  %v1755 = vld [vmem:[%s1752 + $0x10] sm:$0xff]
  %v1756 = vld [vmem:[%s1752 + $0x18] sm:$0xff]
  %v1757 = vld [vmem:[%s1752 + $0x20] sm:$0xff]
  %v1758 = vld [vmem:[%s1752 + $0x28] sm:$0xff]
  %v1759 = vld [vmem:[%s1752 + $0x30] sm:$0xff]
  %v1760 = vld [vmem:[%s1752 + $0x38] sm:$0xff]
  %1761 = vmatprep.subr.bf16.mxu0 %v641
  %1762 = vmatpush1.bf16.msra.mxu0 %v640
  %1763 = vmatprep.subr.bf16.mxu0 %v637
  %1764 = vmatpush1.bf16.msra.mxu0 %v636
  %1765 = vmatprep.subr.bf16.mxu0 %v633
  %1766 = vmatpush1.bf16.msra.mxu0 %v632
  %1767 = vmatprep.subr.bf16.mxu0 %v629
  %1768 = vmatpush1.bf16.msra.mxu0 %v628
  %1769 = vmatprep.subr.bf16.mxu0 %v625
  %1770 = vmatpush1.bf16.msra.mxu0 %v624
  %1771 = vmatprep.subr.bf16.mxu0 %v621
  %1772 = vmatpush1.bf16.msra.mxu0 %v620
  %1773 = vmatprep.subr.bf16.mxu0 %v617
  %1774 = vmatpush1.bf16.msra.mxu0 %v616
  %1775 = vmatprep.subr.bf16.mxu0 %v613
  %1776 = vmatpush1.bf16.msra.mxu0 %v612
  %1777 = vmatprep.subr.bf16.mxu0 0
  %1778 = vmatpush2.bf16.msra.mxu0 0
  %1779 = vmatprep.subr.bf16.mxu0 0
  %1780 = vmatpush2.bf16.msra.mxu0 0
  %1781 = vmatprep.subr.bf16.mxu0 0
  %1782 = vmatpush2.bf16.msra.mxu0 0
  %1783 = vmatprep.subr.bf16.mxu0 0
  %1784 = vmatpush2.bf16.msra.mxu0 0
  %1785 = vmatprep.subr.bf16.mxu0 0
  %1786 = vmatpush2.bf16.msra.mxu0 0
  %1787 = vmatprep.subr.bf16.mxu0 0
  %1788 = vmatpush2.bf16.msra.mxu0 0
  %1789 = vmatprep.subr.bf16.mxu0 0
  %1790 = vmatpush2.bf16.msra.mxu0 0
  %1791 = vmatprep.subr.bf16.mxu0 0
  %1792 = vmatpush2.bf16.msra.mxu0 0
  %1793 = vmatprep.mubr.bf16.mxu0 0
  %1794 = vmatmul.mubr.bf16.gmra.mxu0 %v1749
  %v1795 = vpop.f32.mrf.mxu0
  %v1796 = vadd.f32 %v1753, %v1795
  %v1797 = vpop.f32.mrf.mxu0
  %v1798 = vadd.f32 %v1754, %v1797
  %v1799 = vpop.f32.mrf.mxu0
  %v1800 = vadd.f32 %v1757, %v1799
  %v1801 = vpop.f32.mrf.mxu0
  %v1802 = vadd.f32 %v1758, %v1801
  %1803 = vdwg.mxu0
  %1804 = vmatprep.subr.bf16.mxu0 %v643
  %1805 = vmatpush1.bf16.msra.mxu0 %v642
  %1806 = vmatprep.subr.bf16.mxu0 %v639
  %1807 = vmatpush1.bf16.msra.mxu0 %v638
  %1808 = vmatprep.subr.bf16.mxu0 %v635
  %1809 = vmatpush1.bf16.msra.mxu0 %v634
  %1810 = vmatprep.subr.bf16.mxu0 %v631
  %1811 = vmatpush1.bf16.msra.mxu0 %v630
  %1812 = vmatprep.subr.bf16.mxu0 %v627
  %1813 = vmatpush1.bf16.msra.mxu0 %v626
  %1814 = vmatprep.subr.bf16.mxu0 %v623
  %1815 = vmatpush1.bf16.msra.mxu0 %v622
  %1816 = vmatprep.subr.bf16.mxu0 %v619
  %1817 = vmatpush1.bf16.msra.mxu0 %v618
  %1818 = vmatprep.subr.bf16.mxu0 %v615
  %1819 = vmatpush1.bf16.msra.mxu0 %v614
  %1820 = vmatprep.subr.bf16.mxu0 0
  %1821 = vmatpush2.bf16.msra.mxu0 0
  %1822 = vmatprep.subr.bf16.mxu0 0
  %1823 = vmatpush2.bf16.msra.mxu0 0
  %1824 = vmatprep.subr.bf16.mxu0 0
  %1825 = vmatpush2.bf16.msra.mxu0 0
  %1826 = vmatprep.subr.bf16.mxu0 0
  %1827 = vmatpush2.bf16.msra.mxu0 0
  %1828 = vmatprep.subr.bf16.mxu0 0
  %1829 = vmatpush2.bf16.msra.mxu0 0
  %1830 = vmatprep.subr.bf16.mxu0 0
  %1831 = vmatpush2.bf16.msra.mxu0 0
  %1832 = vmatprep.subr.bf16.mxu0 0
  %1833 = vmatpush2.bf16.msra.mxu0 0
  %1834 = vmatprep.subr.bf16.mxu0 0
  %1835 = vmatpush2.bf16.msra.mxu0 0
  %1836 = vmatprep.mubr.bf16.mxu0 0
  %1837 = vmatmul.mubr.bf16.gmra.mxu0 %v1749
  %v1838 = vpop.f32.mrf.mxu0
  %v1839 = vadd.f32 %v1755, %v1838
  %v1840 = vpop.f32.mrf.mxu0
  %v1841 = vadd.f32 %v1756, %v1840
  %v1842 = vpop.f32.mrf.mxu0
  %v1843 = vadd.f32 %v1759, %v1842
  %v1844 = vpop.f32.mrf.mxu0
  %v1845 = vadd.f32 %v1760, %v1844
  %1846 = vdwg.mxu0
  %v1847 = vmul.f32 %v1796, 0.5
  %v1848 = vmul.f32 %v1798, 0.5
  %v1849 = vmul.f32 %v1839, 0.5
  %v1850 = vmul.f32 %v1800, 0.5
  %v1851 = vmul.f32 %v1802, 0.5
  %v1852 = vmul.f32 %v1843, 0.5
  %v1853 = vtanh.pop %v1847
  %v1854 = vtanh.pop %v1848
  %v1855 = vtanh.pop %v1849
  %v1856 = vtanh.pop %v1850
  %v1857 = vtanh.pop %v1851
  %v1858 = vtanh.pop %v1852
  %v1859 = vadd.f32 %v1853, 1.0
  %v1860 = vadd.f32 %v1854, 1.0
  %v1861 = vadd.f32 %v1855, 1.0
  %v1862 = vadd.f32 %v1856, 1.0
  %v1863 = vadd.f32 %v1857, 1.0
  %v1864 = vadd.f32 %v1858, 1.0
  %v1865 = vmul.f32 %v1859, 0.5
  %v1866 = vmul.f32 %v1860, 0.5
  %v1867 = vmul.f32 %v1861, 0.5
  %v1868 = vmul.f32 %v1862, 0.5
  %v1869 = vmul.f32 %v1863, 0.5
  %v1870 = vmul.f32 %v1864, 0.5
  %v1871 = vtanh.pop %v1841
  %v1872 = vtanh.pop %v1845
  %v1873 = vmul.f32 %v1866, %v1722
  %v1874 = vmul.f32 %v1869, %v1723
  %v1875 = vmul.f32 %v1865, %v1871
  %v1876 = vmul.f32 %v1868, %v1872
  %v1877 = vadd.f32 %v1873, %v1875
  %v1878 = vadd.f32 %v1874, %v1876
  %v1879 = vtanh.pop %v1877
  %v1880 = vtanh.pop %v1878
  %v1881 = vmul.f32 %v1867, %v1879
  %v1882 = vmul.f32 %v1870, %v1880
  %p1883 = scmp.lt.s32.totalorder %s1748, 8
  %s1884 = scalar_select %p1883, 0.0, -inf
  %v1885 = vstv %s1748
  %vm1886 = vcmp.lt.s32.totalorder %v1885, %v463
  %vm1887 = vcmp.lt.s32.totalorder %v1885, %v464
  %v1888 = vsel %vm1886, 1, 0
  %v1889 = vsel %vm1887, 1, 0
  %1890 = vset.pattern.permute.xlu0 0
  %1891 = vperm.xlu0 %1890, %v1888
  %v1892 = vpop.permute.xlu0 %1891
  %1893 = vset.pattern.permute.xlu0 0
  %1894 = vperm.xlu0 %1893, %v1889
  %v1895 = vpop.permute.xlu0 %1894
  %vm1896 = vcmp.eq.s32.totalorder %v1892, 1
  %vm1897 = vcmp.eq.s32.totalorder %v1895, 1
  %v1898 = vstv %s1884
  %v1899 = vsel %vm1896, %v1881, %v1898
  %v1900 = vsel %vm1897, %v1882, %v1898
  %v1901 = vmax.f32 %v1746, %v1899
  %v1902 = vmax.f32 %v1747, %v1900
  %1903 = vst [vmem:[#allocation2] sm:$0xff] %v1881
  %1904 = vst [vmem:[#allocation2 + $0x8] sm:$0xff] %v1882
  %1905 = vst [vmem:[#allocation3] sm:$0xff] %v1877
  %1906 = vst [vmem:[#allocation3 + $0x8] sm:$0xff] %v1878
  %1907 = vst [vmem:[#allocation4] sm:$0xff] %v1901
  %1908 = vst [vmem:[#allocation4 + $0x8] sm:$0xff] %v1902
  // Predicated region
  $region42: #{rte_forward.1} parent=0 // pred_check
    %p1909 = pneg %p36
  $region43: #{rte_forward.1} parent=0 // pred_check_branch
    %1911 = sbr.rel (%p1909) target = $region45
  $region44: #{rte_forward.1} parent=0 // pred_region
    %v1912 = vsub.f32 %v1901, %v1902
    %v1913 = vmul.f32 %v1901, %v1902
    %v1914 = vpack.c.bf16 %v1901, %v1901
    %v1915 = vpack.c.bf16 %v1902, %v1902
    %v1916 = vpack.c.bf16 %v1912, %v1912
    %v1917 = vpack.c.bf16 %v1913, %v1913
    %v1918 = vld [vmem:[%s5] sm:$0xf]
    %v1919 = vld [vmem:[%s5 + $0x4] sm:$0xf]
    %v1920 = vld [vmem:[%s5 + $0x8] sm:$0xf]
    %v1921 = vld [vmem:[%s5 + $0xc] sm:$0xf]
    %v1922 = vld [vmem:[%s5 + $0x10] sm:$0xf]
    %v1923 = vld [vmem:[%s5 + $0x14] sm:$0xf]
    %v1924 = vld [vmem:[%s5 + $0x18] sm:$0xf]
    %v1925 = vld [vmem:[%s5 + $0x1c] sm:$0xf]
    %v1926 = vld [vmem:[%s5 + $0x20] sm:$0xf]
    %v1927 = vld [vmem:[%s5 + $0x24] sm:$0xf]
    %v1928 = vld [vmem:[%s5 + $0x28] sm:$0xf]
    %v1929 = vld [vmem:[%s5 + $0x2c] sm:$0xf]
    %v1930 = vld [vmem:[%s5 + $0x30] sm:$0xf]
    %v1931 = vld [vmem:[%s5 + $0x34] sm:$0xf]
    %v1932 = vld [vmem:[%s5 + $0x38] sm:$0xf]
    %v1933 = vld [vmem:[%s5 + $0x3c] sm:$0xf]
    %v1934 = vld [vmem:[%s5 + $0x40] sm:$0xf]
    %v1935 = vld [vmem:[%s5 + $0x44] sm:$0xf]
    %v1936 = vld [vmem:[%s5 + $0x48] sm:$0xf]
    %v1937 = vld [vmem:[%s5 + $0x4c] sm:$0xf]
    %v1938 = vld [vmem:[%s5 + $0x50] sm:$0xf]
    %v1939 = vld [vmem:[%s5 + $0x54] sm:$0xf]
    %v1940 = vld [vmem:[%s5 + $0x58] sm:$0xf]
    %v1941 = vld [vmem:[%s5 + $0x5c] sm:$0xf]
    %v1942 = vld [vmem:[%s5 + $0x60] sm:$0xf]
    %v1943 = vld [vmem:[%s5 + $0x64] sm:$0xf]
    %v1944 = vld [vmem:[%s5 + $0x68] sm:$0xf]
    %v1945 = vld [vmem:[%s5 + $0x6c] sm:$0xf]
    %v1946 = vld [vmem:[%s5 + $0x70] sm:$0xf]
    %v1947 = vld [vmem:[%s5 + $0x74] sm:$0xf]
    %v1948 = vld [vmem:[%s5 + $0x78] sm:$0xf]
    %v1949 = vld [vmem:[%s5 + $0x7c] sm:$0xf]
    %v1950 = vld [vmem:[%s5 + $0x80] sm:$0xf]
    %v1951 = vld [vmem:[%s5 + $0x84] sm:$0xf]
    %v1952 = vld [vmem:[%s5 + $0x88] sm:$0xf]
    %v1953 = vld [vmem:[%s5 + $0x8c] sm:$0xf]
    %v1954 = vld [vmem:[%s5 + $0x90] sm:$0xf]
    %v1955 = vld [vmem:[%s5 + $0x94] sm:$0xf]
    %v1956 = vld [vmem:[%s5 + $0x98] sm:$0xf]
    %v1957 = vld [vmem:[%s5 + $0x9c] sm:$0xf]
    %v1958 = vld [vmem:[%s5 + $0xa0] sm:$0xf]
    %v1959 = vld [vmem:[%s5 + $0xa4] sm:$0xf]
    %v1960 = vld [vmem:[%s5 + $0xa8] sm:$0xf]
    %v1961 = vld [vmem:[%s5 + $0xac] sm:$0xf]
    %v1962 = vld [vmem:[%s5 + $0xb0] sm:$0xf]
    %v1963 = vld [vmem:[%s5 + $0xb4] sm:$0xf]
    %v1964 = vld [vmem:[%s5 + $0xb8] sm:$0xf]
    %v1965 = vld [vmem:[%s5 + $0xbc] sm:$0xf]
    %v1966 = vld [vmem:[%s5 + $0xc0] sm:$0xf]
    %v1967 = vld [vmem:[%s5 + $0xc4] sm:$0xf]
    %v1968 = vld [vmem:[%s5 + $0xc8] sm:$0xf]
    %v1969 = vld [vmem:[%s5 + $0xcc] sm:$0xf]
    %v1970 = vld [vmem:[%s5 + $0xd0] sm:$0xf]
    %v1971 = vld [vmem:[%s5 + $0xd4] sm:$0xf]
    %v1972 = vld [vmem:[%s5 + $0xd8] sm:$0xf]
    %v1973 = vld [vmem:[%s5 + $0xdc] sm:$0xf]
    %v1974 = vld [vmem:[%s5 + $0xe0] sm:$0xf]
    %v1975 = vld [vmem:[%s5 + $0xe4] sm:$0xf]
    %v1976 = vld [vmem:[%s5 + $0xe8] sm:$0xf]
    %v1977 = vld [vmem:[%s5 + $0xec] sm:$0xf]
    %v1978 = vld [vmem:[%s5 + $0xf0] sm:$0xf]
    %v1979 = vld [vmem:[%s5 + $0xf4] sm:$0xf]
    %v1980 = vld [vmem:[%s5 + $0xf8] sm:$0xf]
    %v1981 = vld [vmem:[%s5 + $0xfc] sm:$0xf]
    %v1982 = vld [vmem:[%s6] sm:$0x1]
    %v1984 = vlaneseq
    %v1985 = vshrl.u32 %v1984, 7
    %v1986 = vsub.s32 0, %v1985
    %v1987 = vrot.slane %v1982, %v1986
    %v2053 = vunpack.c.l.b16 %v1918
    %v2054 = vunpack.c.l.b16 %v1919
    %v2055 = vunpack.c.l.b16 %v1920
    %v2056 = vunpack.c.l.b16 %v1921
    %v2057 = vunpack.c.l.b16 %v1922
    %v2058 = vunpack.c.l.b16 %v1923
    %v2059 = vunpack.c.l.b16 %v1924
    %v2060 = vunpack.c.l.b16 %v1925
    %v2061 = vunpack.c.l.b16 %v1926
    %v2062 = vunpack.c.l.b16 %v1927
    %v2063 = vunpack.c.l.b16 %v1928
    %v2064 = vunpack.c.l.b16 %v1929
    %v2065 = vunpack.c.l.b16 %v1930
    %v2066 = vunpack.c.l.b16 %v1931
    %v2067 = vunpack.c.l.b16 %v1932
    %v2068 = vunpack.c.l.b16 %v1933
    %v2069 = vunpack.c.l.b16 %v1934
    %v2070 = vunpack.c.l.b16 %v1935
    %v2071 = vunpack.c.l.b16 %v1936
    %v2072 = vunpack.c.l.b16 %v1937
    %v2073 = vunpack.c.l.b16 %v1938
    %v2074 = vunpack.c.l.b16 %v1939
    %v2075 = vunpack.c.l.b16 %v1940
    %v2076 = vunpack.c.l.b16 %v1941
    %v2077 = vunpack.c.l.b16 %v1942
    %v2078 = vunpack.c.l.b16 %v1943
    %v2079 = vunpack.c.l.b16 %v1944
    %v2080 = vunpack.c.l.b16 %v1945
    %v2081 = vunpack.c.l.b16 %v1946
    %v2082 = vunpack.c.l.b16 %v1947
    %v2083 = vunpack.c.l.b16 %v1948
    %v2084 = vunpack.c.l.b16 %v1949
    %v2085 = vunpack.c.l.b16 %v1950
    %v2086 = vunpack.c.l.b16 %v1951
    %v2087 = vunpack.c.l.b16 %v1952
    %v2088 = vunpack.c.l.b16 %v1953
    %v2089 = vunpack.c.l.b16 %v1954
    %v2090 = vunpack.c.l.b16 %v1955
    %v2091 = vunpack.c.l.b16 %v1956
    %v2092 = vunpack.c.l.b16 %v1957
    %v2093 = vunpack.c.l.b16 %v1958
    %v2094 = vunpack.c.l.b16 %v1959
    %v2095 = vunpack.c.l.b16 %v1960
    %v2096 = vunpack.c.l.b16 %v1961
    %v2097 = vunpack.c.l.b16 %v1962
    %v2098 = vunpack.c.l.b16 %v1963
    %v2099 = vunpack.c.l.b16 %v1964
    %v2100 = vunpack.c.l.b16 %v1965
    %v2101 = vunpack.c.l.b16 %v1966
    %v2102 = vunpack.c.l.b16 %v1967
    %v2103 = vunpack.c.l.b16 %v1968
    %v2104 = vunpack.c.l.b16 %v1969
    %v2105 = vunpack.c.l.b16 %v1970
    %v2106 = vunpack.c.l.b16 %v1971
    %v2107 = vunpack.c.l.b16 %v1972
    %v2108 = vunpack.c.l.b16 %v1973
    %v2109 = vunpack.c.l.b16 %v1974
    %v2110 = vunpack.c.l.b16 %v1975
    %v2111 = vunpack.c.l.b16 %v1976
    %v2112 = vunpack.c.l.b16 %v1977
    %v2113 = vunpack.c.l.b16 %v1978
    %v2114 = vunpack.c.l.b16 %v1979
    %v2115 = vunpack.c.l.b16 %v1980
    %v2116 = vunpack.c.l.b16 %v1981
    %v2117 = vpack.c.b16 %v2054, %v2053
    %v2118 = vpack.c.b16 %v2056, %v2055
    %v2119 = vpack.c.b16 %v2058, %v2057
    %v2120 = vpack.c.b16 %v2060, %v2059
    %v2121 = vpack.c.b16 %v2062, %v2061
    %v2122 = vpack.c.b16 %v2064, %v2063
    %v2123 = vpack.c.b16 %v2066, %v2065
    %v2124 = vpack.c.b16 %v2068, %v2067
    %v2125 = vpack.c.b16 %v2070, %v2069
    %v2126 = vpack.c.b16 %v2072, %v2071
    %v2127 = vpack.c.b16 %v2074, %v2073
    %v2128 = vpack.c.b16 %v2076, %v2075
    %v2129 = vpack.c.b16 %v2078, %v2077
    %v2130 = vpack.c.b16 %v2080, %v2079
    %v2131 = vpack.c.b16 %v2082, %v2081
    %v2132 = vpack.c.b16 %v2084, %v2083
    %v2133 = vpack.c.b16 %v2086, %v2085
    %v2134 = vpack.c.b16 %v2088, %v2087
    %v2135 = vpack.c.b16 %v2090, %v2089
    %v2136 = vpack.c.b16 %v2092, %v2091
    %v2137 = vpack.c.b16 %v2094, %v2093
    %v2138 = vpack.c.b16 %v2096, %v2095
    %v2139 = vpack.c.b16 %v2098, %v2097
    %v2140 = vpack.c.b16 %v2100, %v2099
    %v2141 = vpack.c.b16 %v2102, %v2101
    %v2142 = vpack.c.b16 %v2104, %v2103
    %v2143 = vpack.c.b16 %v2106, %v2105
    %v2144 = vpack.c.b16 %v2108, %v2107
    %v2145 = vpack.c.b16 %v2110, %v2109
    %v2146 = vpack.c.b16 %v2112, %v2111
    %v2147 = vpack.c.b16 %v2114, %v2113
    %v2148 = vpack.c.b16 %v2116, %v2115
    %2181 = vmatprep.subr.bf16.mxu0 0
    %2182 = vmatpush1.bf16.msra.mxu0 %v2124
    %2183 = vmatprep.subr.bf16.mxu0 0
    %2184 = vmatpush1.bf16.msra.mxu0 %v2123
    %2185 = vmatprep.subr.bf16.mxu0 0
    %2186 = vmatpush1.bf16.msra.mxu0 %v2122
    %2187 = vmatprep.subr.bf16.mxu0 0
    %2188 = vmatpush1.bf16.msra.mxu0 %v2121
    %2189 = vmatprep.subr.bf16.mxu0 0
    %2190 = vmatpush1.bf16.msra.mxu0 %v2120
    %2191 = vmatprep.subr.bf16.mxu0 0
    %2192 = vmatpush1.bf16.msra.mxu0 %v2119
    %2193 = vmatprep.subr.bf16.mxu0 0
    %2194 = vmatpush1.bf16.msra.mxu0 %v2118
    %2195 = vmatprep.subr.bf16.mxu0 0
    %2196 = vmatpush1.bf16.msra.mxu0 %v2117
    %2197 = vmatprep.subr.bf16.mxu0 0
    %2198 = vmatpush2.bf16.msra.mxu0 %v2132
    %2199 = vmatprep.subr.bf16.mxu0 0
    %2200 = vmatpush2.bf16.msra.mxu0 %v2131
    %2201 = vmatprep.subr.bf16.mxu0 0
    %2202 = vmatpush2.bf16.msra.mxu0 %v2130
    %2203 = vmatprep.subr.bf16.mxu0 0
    %2204 = vmatpush2.bf16.msra.mxu0 %v2129
    %2205 = vmatprep.subr.bf16.mxu0 0
    %2206 = vmatpush2.bf16.msra.mxu0 %v2128
    %2207 = vmatprep.subr.bf16.mxu0 0
    %2208 = vmatpush2.bf16.msra.mxu0 %v2127
    %2209 = vmatprep.subr.bf16.mxu0 0
    %2210 = vmatpush2.bf16.msra.mxu0 %v2126
    %2211 = vmatprep.subr.bf16.mxu0 0
    %2212 = vmatpush2.bf16.msra.mxu0 %v2125
    %2213 = vmatprep.mubr.bf16.mxu0 %v1915
    %2214 = vmatmul.mubr.bf16.gmra.mxu0 %v1914
    %v2215 = vpop.f32.mrf.mxu0
    %v2216 = vadd.f32 %v1987, %v2215
    %v2217 = vpop.f32.mrf.mxu0
    %v2218 = vpop.f32.mrf.mxu0
    %v2219 = vpop.f32.mrf.mxu0
    %2220 = vdwg.mxu0
    %2221 = vmatprep.subr.bf16.mxu0 0
    %2222 = vmatpush1.bf16.msra.mxu0 %v2140
    %2223 = vmatprep.subr.bf16.mxu0 0
    %2224 = vmatpush1.bf16.msra.mxu0 %v2139
    %2225 = vmatprep.subr.bf16.mxu0 0
    %2226 = vmatpush1.bf16.msra.mxu0 %v2138
    %2227 = vmatprep.subr.bf16.mxu0 0
    %2228 = vmatpush1.bf16.msra.mxu0 %v2137
    %2229 = vmatprep.subr.bf16.mxu0 0
    %2230 = vmatpush1.bf16.msra.mxu0 %v2136
    %2231 = vmatprep.subr.bf16.mxu0 0
    %2232 = vmatpush1.bf16.msra.mxu0 %v2135
    %2233 = vmatprep.subr.bf16.mxu0 0
    %2234 = vmatpush1.bf16.msra.mxu0 %v2134
    %2235 = vmatprep.subr.bf16.mxu0 0
    %2236 = vmatpush1.bf16.msra.mxu0 %v2133
    %2237 = vmatprep.subr.bf16.mxu0 0
    %2238 = vmatpush2.bf16.msra.mxu0 %v2148
    %2239 = vmatprep.subr.bf16.mxu0 0
    %2240 = vmatpush2.bf16.msra.mxu0 %v2147
    %2241 = vmatprep.subr.bf16.mxu0 0
    %2242 = vmatpush2.bf16.msra.mxu0 %v2146
    %2243 = vmatprep.subr.bf16.mxu0 0
    %2244 = vmatpush2.bf16.msra.mxu0 %v2145
    %2245 = vmatprep.subr.bf16.mxu0 0
    %2246 = vmatpush2.bf16.msra.mxu0 %v2144
    %2247 = vmatprep.subr.bf16.mxu0 0
    %2248 = vmatpush2.bf16.msra.mxu0 %v2143
    %2249 = vmatprep.subr.bf16.mxu0 0
    %2250 = vmatpush2.bf16.msra.mxu0 %v2142
    %2251 = vmatprep.subr.bf16.mxu0 0
    %2252 = vmatpush2.bf16.msra.mxu0 %v2141
    %2253 = vmatprep.mubr.bf16.mxu0 %v1917
    %2254 = vmatmul.mubr.bf16.gmra.mxu0 %v1916
    %v2255 = vpop.f32.mrf.mxu0
    %v2256 = vadd.f32 %v2216, %v2255
    %v2257 = vpop.f32.mrf.mxu0
    %v2258 = vpop.f32.mrf.mxu0
    %v2259 = vpop.f32.mrf.mxu0
    %2260 = vdwg.mxu0
    %v2261 = vmax.f32 %v2256, 0.0
    %v2262 = vpack.c.bf16 %v2261, %v2261
    %v2263 = vld [vmem:[%s7] sm:$0xf]
    %v2264 = vld [vmem:[%s7 + $0x4] sm:$0xf]
    %v2265 = vld [vmem:[%s7 + $0x8] sm:$0xf]
    %v2266 = vld [vmem:[%s7 + $0xc] sm:$0xf]
    %v2267 = vld [vmem:[%s7 + $0x10] sm:$0xf]
    %v2268 = vld [vmem:[%s7 + $0x14] sm:$0xf]
    %v2269 = vld [vmem:[%s7 + $0x18] sm:$0xf]
    %v2270 = vld [vmem:[%s7 + $0x1c] sm:$0xf]
    %v2271 = vld [vmem:[%s7 + $0x20] sm:$0xf]
    %v2272 = vld [vmem:[%s7 + $0x24] sm:$0xf]
    %v2273 = vld [vmem:[%s7 + $0x28] sm:$0xf]
    %v2274 = vld [vmem:[%s7 + $0x2c] sm:$0xf]
    %v2275 = vld [vmem:[%s7 + $0x30] sm:$0xf]
    %v2276 = vld [vmem:[%s7 + $0x34] sm:$0xf]
    %v2277 = vld [vmem:[%s7 + $0x38] sm:$0xf]
    %v2278 = vld [vmem:[%s7 + $0x3c] sm:$0xf]
    %v2279 = vld [vmem:[%s8] sm:$0x1]
    %v2281 = vlaneseq
    %v2282 = vshrl.u32 %v2281, 7
    %v2283 = vsub.s32 0, %v2282
    %v2284 = vrot.slane %v2279, %v2283
    %v2302 = vunpack.c.l.b16 %v2263
    %v2303 = vunpack.c.l.b16 %v2264
    %v2304 = vunpack.c.l.b16 %v2265
    %v2305 = vunpack.c.l.b16 %v2266
    %v2306 = vunpack.c.l.b16 %v2267
    %v2307 = vunpack.c.l.b16 %v2268
    %v2308 = vunpack.c.l.b16 %v2269
    %v2309 = vunpack.c.l.b16 %v2270
    %v2310 = vunpack.c.l.b16 %v2271
    %v2311 = vunpack.c.l.b16 %v2272
    %v2312 = vunpack.c.l.b16 %v2273
    %v2313 = vunpack.c.l.b16 %v2274
    %v2314 = vunpack.c.l.b16 %v2275
    %v2315 = vunpack.c.l.b16 %v2276
    %v2316 = vunpack.c.l.b16 %v2277
    %v2317 = vunpack.c.l.b16 %v2278
    %v2318 = vpack.c.b16 %v2303, %v2302
    %v2319 = vpack.c.b16 %v2305, %v2304
    %v2320 = vpack.c.b16 %v2307, %v2306
    %v2321 = vpack.c.b16 %v2309, %v2308
    %v2322 = vpack.c.b16 %v2311, %v2310
    %v2323 = vpack.c.b16 %v2313, %v2312
    %v2324 = vpack.c.b16 %v2315, %v2314
    %v2325 = vpack.c.b16 %v2317, %v2316
    %2334 = vmatprep.subr.bf16.mxu0 0
    %2335 = vmatpush1.bf16.msra.mxu0 %v2325
    %2336 = vmatprep.subr.bf16.mxu0 0
    %2337 = vmatpush1.bf16.msra.mxu0 %v2324
    %2338 = vmatprep.subr.bf16.mxu0 0
    %2339 = vmatpush1.bf16.msra.mxu0 %v2323
    %2340 = vmatprep.subr.bf16.mxu0 0
    %2341 = vmatpush1.bf16.msra.mxu0 %v2322
    %2342 = vmatprep.subr.bf16.mxu0 0
    %2343 = vmatpush1.bf16.msra.mxu0 %v2321
    %2344 = vmatprep.subr.bf16.mxu0 0
    %2345 = vmatpush1.bf16.msra.mxu0 %v2320
    %2346 = vmatprep.subr.bf16.mxu0 0
    %2347 = vmatpush1.bf16.msra.mxu0 %v2319
    %2348 = vmatprep.subr.bf16.mxu0 0
    %2349 = vmatpush1.bf16.msra.mxu0 %v2318
    %2350 = vmatprep.subr.bf16.mxu0 0
    %2351 = vmatpush2.bf16.msra.mxu0 0
    %2352 = vmatprep.subr.bf16.mxu0 0
    %2353 = vmatpush2.bf16.msra.mxu0 0
    %2354 = vmatprep.subr.bf16.mxu0 0
    %2355 = vmatpush2.bf16.msra.mxu0 0
    %2356 = vmatprep.subr.bf16.mxu0 0
    %2357 = vmatpush2.bf16.msra.mxu0 0
    %2358 = vmatprep.subr.bf16.mxu0 0
    %2359 = vmatpush2.bf16.msra.mxu0 0
    %2360 = vmatprep.subr.bf16.mxu0 0
    %2361 = vmatpush2.bf16.msra.mxu0 0
    %2362 = vmatprep.subr.bf16.mxu0 0
    %2363 = vmatpush2.bf16.msra.mxu0 0
    %2364 = vmatprep.subr.bf16.mxu0 0
    %2365 = vmatpush2.bf16.msra.mxu0 0
    %2366 = vmatprep.mubr.bf16.mxu0 0
    %2367 = vmatmul.mubr.bf16.gmra.mxu0 %v2262
    %v2368 = vpop.f32.mrf.mxu0
    %v2369 = vadd.f32 %v2284, %v2368
    %v2370 = vpop.f32.mrf.mxu0
    %v2371 = vpop.f32.mrf.mxu0
    %v2372 = vpop.f32.mrf.mxu0
    %2373 = vdwg.mxu0
    %2374 = vst [vmem:[%s9] sm:$0xff] %v2369
    %2375 = vmax.xlane.f32.xlu0 %v2369
    %v2376 = vpop.xlane.xlu0 %2375
    %v2377 = vsub.f32 %v2369, %v2376
    %v2378 = vmul.f32 %v2377, 1.442695
    %v2379 = vpow.pop %v2378
    %2380 = vadd.xlane.f32.xlu0 %v2379
    %v2381 = vpop.xlane.xlu0 %2380
    %v2382 = vrcp.pop %v2381
    %v2383 = vmul.f32 %v2379, %v2382
    %2384 = vst [vmem:[%s10] sm:$0xff] %v2383
    %v2385 = vlaneseq
    %v2386 = vand.u32 %v2385, 127
    %vm2387 = vcmp.ge.f32.partialorder %v2369, %v2376
    %v2388 = vsel %vm2387, %v2386, 128
    %v2389 = vand.u32 %v2388, 65535
    %v2390 = vshra.s32 %v2388, 16
    %v2391 = vcvt.s32.f32 %v2389
    %v2392 = vcvt.s32.f32 %v2390
    %2393 = vmin.xlane.f32.xlu0 %v2392
    %v2394 = vpop.xlane.xlu0 %2393
    %vm2395 = vcmp.eq.f32.partialorder %v2392, %v2394
    %v2396 = vsel %vm2395, %v2391, inf
    %2397 = vmin.xlane.f32.xlu0 %v2396
    %v2398 = vpop.xlane.xlu0 %2397
    %v2399 = vcvt.f32.s32 %v2398
    %v2400 = vcvt.f32.s32 %v2394
    %v2401 = vshll.u32 %v2400, 16
    %v2402 = vadd.s32 %v2401, %v2399
    %vm2403 = vcmask 7168
    %2404 = vst.msk [vmem:[%s11] sm:$0xff] %vm2403, %v2402
  $region45: #{rte_forward.1} parent=0 // pred_fallthru
    _
  // Predicated region
  $region46: #{rte_forward.1} parent=0 // pred_check
    _
  $region47: #{rte_forward.1} parent=0 // pred_check_branch
    %2406 = sbr.rel (0) target = $region49
  $region48: #{rte_forward.1} parent=0 // pred_region
    _
  $region49: #{rte_forward.1} parent=0 // pred_fallthru
    _
  // Predicated region
  $region50: #{rte_forward.1} parent=0 // pred_check
    _
  $region51: #{rte_forward.1} parent=0 // pred_check_branch
    %2408 = sbr.rel (0) target = $region53
  $region52: #{rte_forward.1} parent=0 // pred_region
    _
  $region53: #{rte_forward.1} parent=0 // pred_fallthru
    _
  // Predicated region
  $region54: #{rte_forward.1} parent=0 // pred_check
    _
  $region55: #{rte_forward.1} parent=0 // pred_check_branch
    %2410 = sbr.rel (0) target = $region57
  $region56: #{rte_forward.1} parent=0 // pred_region
    _
  $region57: #{rte_forward.1} parent=0 // pred_fallthru
    _
  // Predicated region
  $region58: #{rte_forward.1} parent=0 // pred_check
    _
  $region59: #{rte_forward.1} parent=0 // pred_check_branch
    %2412 = sbr.rel (0) target = $region61
  $region60: #{rte_forward.1} parent=0 // pred_region
    _
  $region61: #{rte_forward.1} parent=0 // pred_fallthru
    _
  // Predicated region
  $region62: #{rte_forward.1} parent=0 // pred_check
    _
  $region63: #{rte_forward.1} parent=0 // pred_check_branch
    %2414 = sbr.rel (0) target = $region65
  $region64: #{rte_forward.1} parent=0 // pred_region
    _
  $region65: #{rte_forward.1} parent=0 // pred_fallthru
    _
  // Predicated region
  $region66: #{rte_forward.1} parent=0 // pred_check
    _
  $region67: #{rte_forward.1} parent=0 // pred_check_branch
    %2416 = sbr.rel (0) target = $region69
  $region68: #{rte_forward.1} parent=0 // pred_region
    _
  $region69: #{rte_forward.1} parent=0 // pred_fallthru
    _

</llo_original>
